<compile_context>
chip_gen: v7x
topology: tpu7x:2x2x1
jax: 0.10.0
libtpu: 0.0.40
codegen_flags: <defaults>
</compile_context>

<pallas_src>
import functools

import jax
import jax.numpy as jnp
from jax import lax
from jax.experimental import pallas as pl
from jax.experimental.pallas import tpu as pltpu

C_IN = 3
C_IN_PAD = 8           # pad the 3 input channels to one full sublane tile
C_OUT = 32
LRN_SIZE = 5
LRN_ALPHA = 1e-4
LRN_BETA = 0.75
LRN_K = 1.0

_TAPS = tuple((dy, dx) for dy in range(3) for dx in range(3))


def _dcf_kernel(x_ref, w1_ref, b1_ref, w2_ref, b2_ref, band_ref, mask_ref,
                o_ref, *, BB, HWP, W):
    """One grid step = BB images, fully lane-dense (no staging scratch).

    x_ref    : (C_IN_PAD, BB*HWP)   channel-major flattened input (pad rows 0)
    w1_ref   : (9*C_OUT, C_IN_PAD)  conv1 weights, per-tap (cout, cin) blocks
    b1_ref   : (C_OUT, 1)
    w2_ref   : (9*C_OUT, C_OUT)     conv2 weights, per-tap (cout, cin) blocks
    b2_ref   : (C_OUT, 1)
    band_ref : (C_OUT, C_OUT)       LRN |i-j| <= 2 band matrix
    mask_ref : (9, 1, BB*HWP)       per-tap "same"-padding validity masks
    o_ref    : (BB, C_OUT, HWP)     NCHW-flat output (lane-padded per image)
    """
    M = BB * HWP
    x = x_ref[...]                                         # (C_IN_PAD, M)

    def conv3x3(act, w_ref):
        # 3x3 "same" conv as 9 accumulated (C_OUT, cin) @ (cin, M) matmuls on
        # lane-rolled, boundary-masked activations (rolls -> XLU, masks -> VPU,
        # matmuls -> MXU; no VMEM patch staging).
        acc = None
        for t, (dy, dx) in enumerate(_TAPS):
            s = (dy - 1) * W + (dx - 1)                    # flat tap offset
            rolled = act if s == 0 else pltpu.roll(act, (-s) % M, axis=1)
            masked = rolled * mask_ref[t]                  # (cin, M) * (1, M)
            w_t = w_ref[t * C_OUT:(t + 1) * C_OUT, :]      # (C_OUT, cin)
            contrib = jnp.dot(w_t, masked, preferred_element_type=jnp.float32)
            acc = contrib if acc is None else acc + contrib
        return acc                                         # (C_OUT, M)

    # conv1 + bias + ReLU
    a1 = jnp.maximum(conv3x3(x, w1_ref) + b1_ref[...], 0.0)
    # conv2 + bias
    z = conv3x3(a1, w2_ref) + b2_ref[...]

    # LocalResponseNorm across channels: windowed sum of squares via a banded
    # matmul, then base**(-0.75) via rsqrt (shorter chain than exp/log).
    ssum = jnp.dot(band_ref[...], z * z, preferred_element_type=jnp.float32)
    base = LRN_K + (LRN_ALPHA / LRN_SIZE) * ssum           # always >= 1
    r = lax.rsqrt(base)
    out = z * (r * jnp.sqrt(r))                            # z * base**(-3/4)

    # Lane-aligned per-image stores (HWP is a multiple of 128, offsets static).
    for i in range(BB):
        o_ref[i] = out[:, i * HWP:(i + 1) * HWP]


def _pick_batch_block(N, HWP):
    """Largest divisor of N that (a) keeps the per-step f32 working set under
    ~12 MiB (safe under default scoped-VMEM limits on v5e/v6e/v7x) and
    (b) leaves >= 2 grid steps so both v7x TensorCores get work."""
    budget = 12 * 1024 * 1024
    # Rough per-image footprint: double-buffered in/out blocks, masks, and a
    # few live (C_OUT, HWP) activation intermediates (compiler-managed).
    per_image = (2 * C_IN_PAD + 9 + 2 * C_OUT + 4 * C_OUT) * HWP * 4
    bb = 1
    for cand in range(1, N + 1):
        if N % cand:
            continue
        if cand * per_image > budget:
            continue
        if N > 1 and N // cand < 2:
            continue                      # keep >= 2 grid steps (v7x megacore)
        bb = cand
    return bb


def _make_tap_masks(H, W, HWP, BB):
    """(9, 1, BB*HWP) f32 masks: 1 where the tap's source pixel is inside the
    image, 0 on the zero-padding border and on the per-image lane padding."""
    HW = H * W
    p = jnp.arange(HWP)
    y, x = p // W, p % W
    in_img = p < HW
    rows = []
    for dy, dx in _TAPS:
        yy, xx = y + dy - 1, x + dx - 1
        rows.append(in_img & (yy >= 0) & (yy < H) & (xx >= 0) & (xx < W))
    m = jnp.stack(rows).astype(jnp.float32)            # (9, HWP)
    m = jnp.tile(m, (1, BB))                           # (9, BB*HWP)
    return m.reshape(9, 1, BB * HWP)


def dcfnet_feature(x_nchw, w1, b1, w2, b2):
    """x_nchw: (N, 3, H, W) f32; w1: (3,3,3,32) HWIO; w2: (3,3,32,32) HWIO.

    Returns (N, 32, H, W) f32, matching PyTorch DCFNetFeature.forward.
    """
    N, C, H, W = x_nchw.shape
    assert C == C_IN
    HW = H * W
    HWP = ((HW + 127) // 128) * 128        # lane-pad each image's pixel axis
    BB = _pick_batch_block(N, HWP)
    M = BB * HWP

    # Channel-major, lane-dense input: (C_IN_PAD, N*HWP), pads are zero.
    xf = x_nchw.astype(jnp.float32).reshape(N, C_IN, HW)
    xf = jnp.pad(xf, ((0, 0), (0, C_IN_PAD - C_IN), (0, HWP - HW)))
    x2d = jnp.transpose(xf, (1, 0, 2)).reshape(C_IN_PAD, N * HWP)

    # Per-tap (cout, cin) weight blocks stacked along sublanes.
    w1s = jnp.transpose(w1.astype(jnp.float32).reshape(9, C_IN, C_OUT), (0, 2, 1))
    w1s = jnp.pad(w1s, ((0, 0), (0, 0), (0, C_IN_PAD - C_IN)))
    w1s = w1s.reshape(9 * C_OUT, C_IN_PAD)                       # (288, 8)
    w2s = jnp.transpose(w2.astype(jnp.float32).reshape(9, C_OUT, C_OUT),
                        (0, 2, 1)).reshape(9 * C_OUT, C_OUT)     # (288, 32)
    b1p = b1.reshape(C_OUT, 1).astype(jnp.float32)
    b2p = b2.reshape(C_OUT, 1).astype(jnp.float32)

    # LRN cross-channel band (|i-j| <= size//2).
    idx = jnp.arange(C_OUT)
    band = (jnp.abs(idx[:, None] - idx[None, :]) <= LRN_SIZE // 2)
    band = band.astype(jnp.float32)

    masks = _make_tap_masks(H, W, HWP, BB)

    kernel = functools.partial(_dcf_kernel, BB=BB, HWP=HWP, W=W)

    # TODO(synk): for very large H*W (per-image working set > VMEM budget) add
    # a spatial grid axis with one-row halos; currently only batch-blocked.
    out = pl.pallas_call(
        kernel,
        out_shape=jax.ShapeDtypeStruct((N, C_OUT, HWP), jnp.float32),
        grid_spec=pltpu.PrefetchScalarGridSpec(
            num_scalar_prefetch=0,
            grid=(N // BB,),
            in_specs=[
                pl.BlockSpec((C_IN_PAD, M), lambda b: (0, b)),
                pl.BlockSpec((9 * C_OUT, C_IN_PAD), lambda b: (0, 0)),
                pl.BlockSpec((C_OUT, 1), lambda b: (0, 0)),
                pl.BlockSpec((9 * C_OUT, C_OUT), lambda b: (0, 0)),
                pl.BlockSpec((C_OUT, 1), lambda b: (0, 0)),
                pl.BlockSpec((C_OUT, C_OUT), lambda b: (0, 0)),
                pl.BlockSpec((9, 1, M), lambda b: (0, 0, 0)),
            ],
            out_specs=pl.BlockSpec((BB, C_OUT, HWP), lambda b: (b, 0, 0)),
        ),
        compiler_params=pltpu.CompilerParams(
            dimension_semantics=("parallel",),
        ),
    )(x2d, w1s, b1p, w2s, b2p, band, masks)

    return out[:, :, :HW].reshape(N, C_OUT, H, W)


def _reference(x_nchw, w1, b1, w2, b2):
    """Plain-JAX reference (matches PyTorch semantics) for a sanity check."""
    x = jnp.transpose(x_nchw, (0, 2, 3, 1))
    dn = ("NHWC", "HWIO", "NHWC")
    y = lax.conv_general_dilated(x, w1, (1, 1), "SAME", dimension_numbers=dn) + b1
    y = jnp.maximum(y, 0.0)
    z = lax.conv_general_dilated(y, w2, (1, 1), "SAME", dimension_numbers=dn) + b2
    sq = z * z
    sq_pad = jnp.pad(sq, ((0, 0), (0, 0), (0, 0),
                          (LRN_SIZE // 2, (LRN_SIZE - 1) // 2)))
    ssum = sum(sq_pad[..., s:s + C_OUT] for s in range(LRN_SIZE))
    div = (LRN_K + (LRN_ALPHA / LRN_SIZE) * ssum) ** LRN_BETA
    out = z / div
    return jnp.transpose(out, (0, 3, 1, 2))


if __name__ == "__main__":
    key = jax.random.PRNGKey(0)
    kx, k1, k2, k3, k4 = jax.random.split(key, 5)

    N, H, W = 2, 16, 16
    x = jax.random.normal(kx, (N, C_IN, H, W), jnp.float32)

    # Deterministic synthetic parameters (HWIO layout for conv weights).
    w1 = jax.random.normal(k1, (3, 3, C_IN, C_OUT), jnp.float32) * 0.1
    b1 = jax.random.normal(k2, (C_OUT,), jnp.float32) * 0.1
    w2 = jax.random.normal(k3, (3, 3, C_OUT, C_OUT), jnp.float32) * 0.1
    b2 = jax.random.normal(k4, (C_OUT,), jnp.float32) * 0.1

    out = dcfnet_feature(x, w1, b1, w2, b2)
    jax.block_until_ready(out)

    ref = _reference(x, w1, b1, w2, b2)
    assert out.shape == (N, C_OUT, H, W)
    assert jnp.allclose(out, ref, rtol=1e-4, atol=2e-4), "mismatch vs reference"

    print("KERNEL_OK")
</pallas_src>

<mosaic_0001>
module attributes {stable_mosaic.version = 11 : i64} {
  func.func @_dcf_kernel(%arg0: i32, %arg1: memref<8x256xf32, #tpu.memory_space<vmem>>, %arg2: memref<288x8xf32, #tpu.memory_space<vmem>>, %arg3: memref<32x1xf32, #tpu.memory_space<vmem>>, %arg4: memref<288x32xf32, #tpu.memory_space<vmem>>, %arg5: memref<32x1xf32, #tpu.memory_space<vmem>>, %arg6: memref<32x32xf32, #tpu.memory_space<vmem>>, %arg7: memref<9x1x256xf32, #tpu.memory_space<vmem>>, %arg8: memref<1x32x256xf32, #tpu.memory_space<vmem>>) attributes {dimension_semantics = [#tpu.dimension_semantics<parallel>], iteration_bounds = array<i64: 2>, scalar_prefetch = 0 : i64, scratch_operands = 0 : i64, tpu.core_type = #tpu.core_type<tc>, window_params = [{transform_indices = @transform_0, window_bounds = array<i64: 8, 256>}, {pipeline_mode = #tpu.pipeline_mode<synchronous>, transform_indices = @transform_1, window_bounds = array<i64: 288, 8>}, {pipeline_mode = #tpu.pipeline_mode<synchronous>, transform_indices = @transform_2, window_bounds = array<i64: 32, 1>}, {pipeline_mode = #tpu.pipeline_mode<synchronous>, transform_indices = @transform_3, window_bounds = array<i64: 288, 32>}, {pipeline_mode = #tpu.pipeline_mode<synchronous>, transform_indices = @transform_4, window_bounds = array<i64: 32, 1>}, {pipeline_mode = #tpu.pipeline_mode<synchronous>, transform_indices = @transform_5, window_bounds = array<i64: 32, 32>}, {pipeline_mode = #tpu.pipeline_mode<synchronous>, transform_indices = @transform_6, window_bounds = array<i64: 9, 1, 256>}, {transform_indices = @transform_7, window_bounds = array<i64: 1, 32, 256>}]} {
    %c0 = arith.constant 0 : index
    %c0_0 = arith.constant 0 : index
    %0 = vector.load %arg1[%c0, %c0_0] : memref<8x256xf32, #tpu.memory_space<vmem>>, vector<8x256xf32>
    %c17_i32 = arith.constant 17 : i32
    %1 = tpu.dynamic_rotate %0 by %c17_i32 dim 1 : vector<8x256xf32>, i32 -> vector<8x256xf32>
    %c0_1 = arith.constant 0 : index
    %c0_2 = arith.constant 0 : index
    %c0_3 = arith.constant 0 : index
    %2 = vector.load %arg7[%c0_1, %c0_2, %c0_3] : memref<9x1x256xf32, #tpu.memory_space<vmem>>, vector<1x1x256xf32>
    %3 = vector.shape_cast %2 : vector<1x1x256xf32> to vector<1x256xf32>
    %4 = vector.broadcast %3 : vector<1x256xf32> to vector<8x256xf32>
    %5 = arith.mulf %1, %4 : vector<8x256xf32>
    %c0_4 = arith.constant 0 : index
    %c0_5 = arith.constant 0 : index
    %6 = vector.load %arg2[%c0_4, %c0_5] : memref<288x8xf32, #tpu.memory_space<vmem>>, vector<32x8xf32>
    %cst = arith.constant dense<0.000000e+00> : vector<32x256xf32>
    %7 = tpu.matmul %6, %5, %cst {dimension_numbers = #tpu.dot_dimension_numbers<[1], [0], [0], [1], [0, 0, 1, 1], [], []>} : vector<32x8xf32>, vector<8x256xf32>, vector<32x256xf32> -> vector<32x256xf32>
    %c16_i32 = arith.constant 16 : i32
    %8 = tpu.dynamic_rotate %0 by %c16_i32 dim 1 : vector<8x256xf32>, i32 -> vector<8x256xf32>
    %c1 = arith.constant 1 : index
    %c0_6 = arith.constant 0 : index
    %c0_7 = arith.constant 0 : index
    %9 = vector.load %arg7[%c1, %c0_6, %c0_7] : memref<9x1x256xf32, #tpu.memory_space<vmem>>, vector<1x1x256xf32>
    %10 = vector.shape_cast %9 : vector<1x1x256xf32> to vector<1x256xf32>
    %11 = vector.broadcast %10 : vector<1x256xf32> to vector<8x256xf32>
    %12 = arith.mulf %8, %11 : vector<8x256xf32>
    %c32 = arith.constant 32 : index
    %c0_8 = arith.constant 0 : index
    %13 = vector.load %arg2[%c32, %c0_8] : memref<288x8xf32, #tpu.memory_space<vmem>>, vector<32x8xf32>
    %cst_9 = arith.constant dense<0.000000e+00> : vector<32x256xf32>
    %14 = tpu.matmul %13, %12, %cst_9 {dimension_numbers = #tpu.dot_dimension_numbers<[1], [0], [0], [1], [0, 0, 1, 1], [], []>} : vector<32x8xf32>, vector<8x256xf32>, vector<32x256xf32> -> vector<32x256xf32>
    %15 = arith.addf %7, %14 : vector<32x256xf32>
    %c15_i32 = arith.constant 15 : i32
    %16 = tpu.dynamic_rotate %0 by %c15_i32 dim 1 : vector<8x256xf32>, i32 -> vector<8x256xf32>
    %c2 = arith.constant 2 : index
    %c0_10 = arith.constant 0 : index
    %c0_11 = arith.constant 0 : index
    %17 = vector.load %arg7[%c2, %c0_10, %c0_11] : memref<9x1x256xf32, #tpu.memory_space<vmem>>, vector<1x1x256xf32>
    %18 = vector.shape_cast %17 : vector<1x1x256xf32> to vector<1x256xf32>
    %19 = vector.broadcast %18 : vector<1x256xf32> to vector<8x256xf32>
    %20 = arith.mulf %16, %19 : vector<8x256xf32>
    %c64 = arith.constant 64 : index
    %c0_12 = arith.constant 0 : index
    %21 = vector.load %arg2[%c64, %c0_12] : memref<288x8xf32, #tpu.memory_space<vmem>>, vector<32x8xf32>
    %cst_13 = arith.constant dense<0.000000e+00> : vector<32x256xf32>
    %22 = tpu.matmul %21, %20, %cst_13 {dimension_numbers = #tpu.dot_dimension_numbers<[1], [0], [0], [1], [0, 0, 1, 1], [], []>} : vector<32x8xf32>, vector<8x256xf32>, vector<32x256xf32> -> vector<32x256xf32>
    %23 = arith.addf %15, %22 : vector<32x256xf32>
    %c1_i32 = arith.constant 1 : i32
    %24 = tpu.dynamic_rotate %0 by %c1_i32 dim 1 : vector<8x256xf32>, i32 -> vector<8x256xf32>
    %c3 = arith.constant 3 : index
    %c0_14 = arith.constant 0 : index
    %c0_15 = arith.constant 0 : index
    %25 = vector.load %arg7[%c3, %c0_14, %c0_15] : memref<9x1x256xf32, #tpu.memory_space<vmem>>, vector<1x1x256xf32>
    %26 = vector.shape_cast %25 : vector<1x1x256xf32> to vector<1x256xf32>
    %27 = vector.broadcast %26 : vector<1x256xf32> to vector<8x256xf32>
    %28 = arith.mulf %24, %27 : vector<8x256xf32>
    %c96 = arith.constant 96 : index
    %c0_16 = arith.constant 0 : index
    %29 = vector.load %arg2[%c96, %c0_16] : memref<288x8xf32, #tpu.memory_space<vmem>>, vector<32x8xf32>
    %cst_17 = arith.constant dense<0.000000e+00> : vector<32x256xf32>
    %30 = tpu.matmul %29, %28, %cst_17 {dimension_numbers = #tpu.dot_dimension_numbers<[1], [0], [0], [1], [0, 0, 1, 1], [], []>} : vector<32x8xf32>, vector<8x256xf32>, vector<32x256xf32> -> vector<32x256xf32>
    %31 = arith.addf %23, %30 : vector<32x256xf32>
    %c4 = arith.constant 4 : index
    %c0_18 = arith.constant 0 : index
    %c0_19 = arith.constant 0 : index
    %32 = vector.load %arg7[%c4, %c0_18, %c0_19] : memref<9x1x256xf32, #tpu.memory_space<vmem>>, vector<1x1x256xf32>
    %33 = vector.shape_cast %32 : vector<1x1x256xf32> to vector<1x256xf32>
    %34 = vector.broadcast %33 : vector<1x256xf32> to vector<8x256xf32>
    %35 = arith.mulf %0, %34 : vector<8x256xf32>
    %c128 = arith.constant 128 : index
    %c0_20 = arith.constant 0 : index
    %36 = vector.load %arg2[%c128, %c0_20] : memref<288x8xf32, #tpu.memory_space<vmem>>, vector<32x8xf32>
    %cst_21 = arith.constant dense<0.000000e+00> : vector<32x256xf32>
    %37 = tpu.matmul %36, %35, %cst_21 {dimension_numbers = #tpu.dot_dimension_numbers<[1], [0], [0], [1], [0, 0, 1, 1], [], []>} : vector<32x8xf32>, vector<8x256xf32>, vector<32x256xf32> -> vector<32x256xf32>
    %38 = arith.addf %31, %37 : vector<32x256xf32>
    %c255_i32 = arith.constant 255 : i32
    %39 = tpu.dynamic_rotate %0 by %c255_i32 dim 1 : vector<8x256xf32>, i32 -> vector<8x256xf32>
    %c5 = arith.constant 5 : index
    %c0_22 = arith.constant 0 : index
    %c0_23 = arith.constant 0 : index
    %40 = vector.load %arg7[%c5, %c0_22, %c0_23] : memref<9x1x256xf32, #tpu.memory_space<vmem>>, vector<1x1x256xf32>
    %41 = vector.shape_cast %40 : vector<1x1x256xf32> to vector<1x256xf32>
    %42 = vector.broadcast %41 : vector<1x256xf32> to vector<8x256xf32>
    %43 = arith.mulf %39, %42 : vector<8x256xf32>
    %c160 = arith.constant 160 : index
    %c0_24 = arith.constant 0 : index
    %44 = vector.load %arg2[%c160, %c0_24] : memref<288x8xf32, #tpu.memory_space<vmem>>, vector<32x8xf32>
    %cst_25 = arith.constant dense<0.000000e+00> : vector<32x256xf32>
    %45 = tpu.matmul %44, %43, %cst_25 {dimension_numbers = #tpu.dot_dimension_numbers<[1], [0], [0], [1], [0, 0, 1, 1], [], []>} : vector<32x8xf32>, vector<8x256xf32>, vector<32x256xf32> -> vector<32x256xf32>
    %46 = arith.addf %38, %45 : vector<32x256xf32>
    %c241_i32 = arith.constant 241 : i32
    %47 = tpu.dynamic_rotate %0 by %c241_i32 dim 1 : vector<8x256xf32>, i32 -> vector<8x256xf32>
    %c6 = arith.constant 6 : index
    %c0_26 = arith.constant 0 : index
    %c0_27 = arith.constant 0 : index
    %48 = vector.load %arg7[%c6, %c0_26, %c0_27] : memref<9x1x256xf32, #tpu.memory_space<vmem>>, vector<1x1x256xf32>
    %49 = vector.shape_cast %48 : vector<1x1x256xf32> to vector<1x256xf32>
    %50 = vector.broadcast %49 : vector<1x256xf32> to vector<8x256xf32>
    %51 = arith.mulf %47, %50 : vector<8x256xf32>
    %c192 = arith.constant 192 : index
    %c0_28 = arith.constant 0 : index
    %52 = vector.load %arg2[%c192, %c0_28] : memref<288x8xf32, #tpu.memory_space<vmem>>, vector<32x8xf32>
    %cst_29 = arith.constant dense<0.000000e+00> : vector<32x256xf32>
    %53 = tpu.matmul %52, %51, %cst_29 {dimension_numbers = #tpu.dot_dimension_numbers<[1], [0], [0], [1], [0, 0, 1, 1], [], []>} : vector<32x8xf32>, vector<8x256xf32>, vector<32x256xf32> -> vector<32x256xf32>
    %54 = arith.addf %46, %53 : vector<32x256xf32>
    %c240_i32 = arith.constant 240 : i32
    %55 = tpu.dynamic_rotate %0 by %c240_i32 dim 1 : vector<8x256xf32>, i32 -> vector<8x256xf32>
    %c7 = arith.constant 7 : index
    %c0_30 = arith.constant 0 : index
    %c0_31 = arith.constant 0 : index
    %56 = vector.load %arg7[%c7, %c0_30, %c0_31] : memref<9x1x256xf32, #tpu.memory_space<vmem>>, vector<1x1x256xf32>
    %57 = vector.shape_cast %56 : vector<1x1x256xf32> to vector<1x256xf32>
    %58 = vector.broadcast %57 : vector<1x256xf32> to vector<8x256xf32>
    %59 = arith.mulf %55, %58 : vector<8x256xf32>
    %c224 = arith.constant 224 : index
    %c0_32 = arith.constant 0 : index
    %60 = vector.load %arg2[%c224, %c0_32] : memref<288x8xf32, #tpu.memory_space<vmem>>, vector<32x8xf32>
    %cst_33 = arith.constant dense<0.000000e+00> : vector<32x256xf32>
    %61 = tpu.matmul %60, %59, %cst_33 {dimension_numbers = #tpu.dot_dimension_numbers<[1], [0], [0], [1], [0, 0, 1, 1], [], []>} : vector<32x8xf32>, vector<8x256xf32>, vector<32x256xf32> -> vector<32x256xf32>
    %62 = arith.addf %54, %61 : vector<32x256xf32>
    %c239_i32 = arith.constant 239 : i32
    %63 = tpu.dynamic_rotate %0 by %c239_i32 dim 1 : vector<8x256xf32>, i32 -> vector<8x256xf32>
    %c8 = arith.constant 8 : index
    %c0_34 = arith.constant 0 : index
    %c0_35 = arith.constant 0 : index
    %64 = vector.load %arg7[%c8, %c0_34, %c0_35] : memref<9x1x256xf32, #tpu.memory_space<vmem>>, vector<1x1x256xf32>
    %65 = vector.shape_cast %64 : vector<1x1x256xf32> to vector<1x256xf32>
    %66 = vector.broadcast %65 : vector<1x256xf32> to vector<8x256xf32>
    %67 = arith.mulf %63, %66 : vector<8x256xf32>
    %c256 = arith.constant 256 : index
    %c0_36 = arith.constant 0 : index
    %68 = vector.load %arg2[%c256, %c0_36] : memref<288x8xf32, #tpu.memory_space<vmem>>, vector<32x8xf32>
    %cst_37 = arith.constant dense<0.000000e+00> : vector<32x256xf32>
    %69 = tpu.matmul %68, %67, %cst_37 {dimension_numbers = #tpu.dot_dimension_numbers<[1], [0], [0], [1], [0, 0, 1, 1], [], []>} : vector<32x8xf32>, vector<8x256xf32>, vector<32x256xf32> -> vector<32x256xf32>
    %70 = arith.addf %62, %69 : vector<32x256xf32>
    %c0_38 = arith.constant 0 : index
    %c0_39 = arith.constant 0 : index
    %71 = vector.load %arg3[%c0_38, %c0_39] : memref<32x1xf32, #tpu.memory_space<vmem>>, vector<32x1xf32>
    %72 = vector.broadcast %71 : vector<32x1xf32> to vector<32x256xf32>
    %73 = arith.addf %70, %72 : vector<32x256xf32>
    %cst_40 = arith.constant 0.000000e+00 : f32
    %74 = vector.broadcast %cst_40 : f32 to vector<32x256xf32>
    %75 = arith.maximumf %73, %74 : vector<32x256xf32>
    %c17_i32_41 = arith.constant 17 : i32
    %76 = tpu.dynamic_rotate %75 by %c17_i32_41 dim 1 : vector<32x256xf32>, i32 -> vector<32x256xf32>
    %c0_42 = arith.constant 0 : index
    %c0_43 = arith.constant 0 : index
    %c0_44 = arith.constant 0 : index
    %77 = vector.load %arg7[%c0_42, %c0_43, %c0_44] : memref<9x1x256xf32, #tpu.memory_space<vmem>>, vector<1x1x256xf32>
    %78 = vector.shape_cast %77 : vector<1x1x256xf32> to vector<1x256xf32>
    %79 = vector.broadcast %78 : vector<1x256xf32> to vector<32x256xf32>
    %80 = arith.mulf %76, %79 : vector<32x256xf32>
    %c0_45 = arith.constant 0 : index
    %c0_46 = arith.constant 0 : index
    %81 = vector.load %arg4[%c0_45, %c0_46] : memref<288x32xf32, #tpu.memory_space<vmem>>, vector<32x32xf32>
    %cst_47 = arith.constant dense<0.000000e+00> : vector<32x256xf32>
    %82 = tpu.matmul %81, %80, %cst_47 {dimension_numbers = #tpu.dot_dimension_numbers<[1], [0], [0], [1], [0, 0, 1, 1], [], []>} : vector<32x32xf32>, vector<32x256xf32>, vector<32x256xf32> -> vector<32x256xf32>
    %c16_i32_48 = arith.constant 16 : i32
    %83 = tpu.dynamic_rotate %75 by %c16_i32_48 dim 1 : vector<32x256xf32>, i32 -> vector<32x256xf32>
    %c1_49 = arith.constant 1 : index
    %c0_50 = arith.constant 0 : index
    %c0_51 = arith.constant 0 : index
    %84 = vector.load %arg7[%c1_49, %c0_50, %c0_51] : memref<9x1x256xf32, #tpu.memory_space<vmem>>, vector<1x1x256xf32>
    %85 = vector.shape_cast %84 : vector<1x1x256xf32> to vector<1x256xf32>
    %86 = vector.broadcast %85 : vector<1x256xf32> to vector<32x256xf32>
    %87 = arith.mulf %83, %86 : vector<32x256xf32>
    %c32_52 = arith.constant 32 : index
    %c0_53 = arith.constant 0 : index
    %88 = vector.load %arg4[%c32_52, %c0_53] : memref<288x32xf32, #tpu.memory_space<vmem>>, vector<32x32xf32>
    %cst_54 = arith.constant dense<0.000000e+00> : vector<32x256xf32>
    %89 = tpu.matmul %88, %87, %cst_54 {dimension_numbers = #tpu.dot_dimension_numbers<[1], [0], [0], [1], [0, 0, 1, 1], [], []>} : vector<32x32xf32>, vector<32x256xf32>, vector<32x256xf32> -> vector<32x256xf32>
    %90 = arith.addf %82, %89 : vector<32x256xf32>
    %c15_i32_55 = arith.constant 15 : i32
    %91 = tpu.dynamic_rotate %75 by %c15_i32_55 dim 1 : vector<32x256xf32>, i32 -> vector<32x256xf32>
    %c2_56 = arith.constant 2 : index
    %c0_57 = arith.constant 0 : index
    %c0_58 = arith.constant 0 : index
    %92 = vector.load %arg7[%c2_56, %c0_57, %c0_58] : memref<9x1x256xf32, #tpu.memory_space<vmem>>, vector<1x1x256xf32>
    %93 = vector.shape_cast %92 : vector<1x1x256xf32> to vector<1x256xf32>
    %94 = vector.broadcast %93 : vector<1x256xf32> to vector<32x256xf32>
    %95 = arith.mulf %91, %94 : vector<32x256xf32>
    %c64_59 = arith.constant 64 : index
    %c0_60 = arith.constant 0 : index
    %96 = vector.load %arg4[%c64_59, %c0_60] : memref<288x32xf32, #tpu.memory_space<vmem>>, vector<32x32xf32>
    %cst_61 = arith.constant dense<0.000000e+00> : vector<32x256xf32>
    %97 = tpu.matmul %96, %95, %cst_61 {dimension_numbers = #tpu.dot_dimension_numbers<[1], [0], [0], [1], [0, 0, 1, 1], [], []>} : vector<32x32xf32>, vector<32x256xf32>, vector<32x256xf32> -> vector<32x256xf32>
    %98 = arith.addf %90, %97 : vector<32x256xf32>
    %c1_i32_62 = arith.constant 1 : i32
    %99 = tpu.dynamic_rotate %75 by %c1_i32_62 dim 1 : vector<32x256xf32>, i32 -> vector<32x256xf32>
    %c3_63 = arith.constant 3 : index
    %c0_64 = arith.constant 0 : index
    %c0_65 = arith.constant 0 : index
    %100 = vector.load %arg7[%c3_63, %c0_64, %c0_65] : memref<9x1x256xf32, #tpu.memory_space<vmem>>, vector<1x1x256xf32>
    %101 = vector.shape_cast %100 : vector<1x1x256xf32> to vector<1x256xf32>
    %102 = vector.broadcast %101 : vector<1x256xf32> to vector<32x256xf32>
    %103 = arith.mulf %99, %102 : vector<32x256xf32>
    %c96_66 = arith.constant 96 : index
    %c0_67 = arith.constant 0 : index
    %104 = vector.load %arg4[%c96_66, %c0_67] : memref<288x32xf32, #tpu.memory_space<vmem>>, vector<32x32xf32>
    %cst_68 = arith.constant dense<0.000000e+00> : vector<32x256xf32>
    %105 = tpu.matmul %104, %103, %cst_68 {dimension_numbers = #tpu.dot_dimension_numbers<[1], [0], [0], [1], [0, 0, 1, 1], [], []>} : vector<32x32xf32>, vector<32x256xf32>, vector<32x256xf32> -> vector<32x256xf32>
    %106 = arith.addf %98, %105 : vector<32x256xf32>
    %c4_69 = arith.constant 4 : index
    %c0_70 = arith.constant 0 : index
    %c0_71 = arith.constant 0 : index
    %107 = vector.load %arg7[%c4_69, %c0_70, %c0_71] : memref<9x1x256xf32, #tpu.memory_space<vmem>>, vector<1x1x256xf32>
    %108 = vector.shape_cast %107 : vector<1x1x256xf32> to vector<1x256xf32>
    %109 = vector.broadcast %108 : vector<1x256xf32> to vector<32x256xf32>
    %110 = arith.mulf %75, %109 : vector<32x256xf32>
    %c128_72 = arith.constant 128 : index
    %c0_73 = arith.constant 0 : index
    %111 = vector.load %arg4[%c128_72, %c0_73] : memref<288x32xf32, #tpu.memory_space<vmem>>, vector<32x32xf32>
    %cst_74 = arith.constant dense<0.000000e+00> : vector<32x256xf32>
    %112 = tpu.matmul %111, %110, %cst_74 {dimension_numbers = #tpu.dot_dimension_numbers<[1], [0], [0], [1], [0, 0, 1, 1], [], []>} : vector<32x32xf32>, vector<32x256xf32>, vector<32x256xf32> -> vector<32x256xf32>
    %113 = arith.addf %106, %112 : vector<32x256xf32>
    %c255_i32_75 = arith.constant 255 : i32
    %114 = tpu.dynamic_rotate %75 by %c255_i32_75 dim 1 : vector<32x256xf32>, i32 -> vector<32x256xf32>
    %c5_76 = arith.constant 5 : index
    %c0_77 = arith.constant 0 : index
    %c0_78 = arith.constant 0 : index
    %115 = vector.load %arg7[%c5_76, %c0_77, %c0_78] : memref<9x1x256xf32, #tpu.memory_space<vmem>>, vector<1x1x256xf32>
    %116 = vector.shape_cast %115 : vector<1x1x256xf32> to vector<1x256xf32>
    %117 = vector.broadcast %116 : vector<1x256xf32> to vector<32x256xf32>
    %118 = arith.mulf %114, %117 : vector<32x256xf32>
    %c160_79 = arith.constant 160 : index
    %c0_80 = arith.constant 0 : index
    %119 = vector.load %arg4[%c160_79, %c0_80] : memref<288x32xf32, #tpu.memory_space<vmem>>, vector<32x32xf32>
    %cst_81 = arith.constant dense<0.000000e+00> : vector<32x256xf32>
    %120 = tpu.matmul %119, %118, %cst_81 {dimension_numbers = #tpu.dot_dimension_numbers<[1], [0], [0], [1], [0, 0, 1, 1], [], []>} : vector<32x32xf32>, vector<32x256xf32>, vector<32x256xf32> -> vector<32x256xf32>
    %121 = arith.addf %113, %120 : vector<32x256xf32>
    %c241_i32_82 = arith.constant 241 : i32
    %122 = tpu.dynamic_rotate %75 by %c241_i32_82 dim 1 : vector<32x256xf32>, i32 -> vector<32x256xf32>
    %c6_83 = arith.constant 6 : index
    %c0_84 = arith.constant 0 : index
    %c0_85 = arith.constant 0 : index
    %123 = vector.load %arg7[%c6_83, %c0_84, %c0_85] : memref<9x1x256xf32, #tpu.memory_space<vmem>>, vector<1x1x256xf32>
    %124 = vector.shape_cast %123 : vector<1x1x256xf32> to vector<1x256xf32>
    %125 = vector.broadcast %124 : vector<1x256xf32> to vector<32x256xf32>
    %126 = arith.mulf %122, %125 : vector<32x256xf32>
    %c192_86 = arith.constant 192 : index
    %c0_87 = arith.constant 0 : index
    %127 = vector.load %arg4[%c192_86, %c0_87] : memref<288x32xf32, #tpu.memory_space<vmem>>, vector<32x32xf32>
    %cst_88 = arith.constant dense<0.000000e+00> : vector<32x256xf32>
    %128 = tpu.matmul %127, %126, %cst_88 {dimension_numbers = #tpu.dot_dimension_numbers<[1], [0], [0], [1], [0, 0, 1, 1], [], []>} : vector<32x32xf32>, vector<32x256xf32>, vector<32x256xf32> -> vector<32x256xf32>
    %129 = arith.addf %121, %128 : vector<32x256xf32>
    %c240_i32_89 = arith.constant 240 : i32
    %130 = tpu.dynamic_rotate %75 by %c240_i32_89 dim 1 : vector<32x256xf32>, i32 -> vector<32x256xf32>
    %c7_90 = arith.constant 7 : index
    %c0_91 = arith.constant 0 : index
    %c0_92 = arith.constant 0 : index
    %131 = vector.load %arg7[%c7_90, %c0_91, %c0_92] : memref<9x1x256xf32, #tpu.memory_space<vmem>>, vector<1x1x256xf32>
    %132 = vector.shape_cast %131 : vector<1x1x256xf32> to vector<1x256xf32>
    %133 = vector.broadcast %132 : vector<1x256xf32> to vector<32x256xf32>
    %134 = arith.mulf %130, %133 : vector<32x256xf32>
    %c224_93 = arith.constant 224 : index
    %c0_94 = arith.constant 0 : index
    %135 = vector.load %arg4[%c224_93, %c0_94] : memref<288x32xf32, #tpu.memory_space<vmem>>, vector<32x32xf32>
    %cst_95 = arith.constant dense<0.000000e+00> : vector<32x256xf32>
    %136 = tpu.matmul %135, %134, %cst_95 {dimension_numbers = #tpu.dot_dimension_numbers<[1], [0], [0], [1], [0, 0, 1, 1], [], []>} : vector<32x32xf32>, vector<32x256xf32>, vector<32x256xf32> -> vector<32x256xf32>
    %137 = arith.addf %129, %136 : vector<32x256xf32>
    %c239_i32_96 = arith.constant 239 : i32
    %138 = tpu.dynamic_rotate %75 by %c239_i32_96 dim 1 : vector<32x256xf32>, i32 -> vector<32x256xf32>
    %c8_97 = arith.constant 8 : index
    %c0_98 = arith.constant 0 : index
    %c0_99 = arith.constant 0 : index
    %139 = vector.load %arg7[%c8_97, %c0_98, %c0_99] : memref<9x1x256xf32, #tpu.memory_space<vmem>>, vector<1x1x256xf32>
    %140 = vector.shape_cast %139 : vector<1x1x256xf32> to vector<1x256xf32>
    %141 = vector.broadcast %140 : vector<1x256xf32> to vector<32x256xf32>
    %142 = arith.mulf %138, %141 : vector<32x256xf32>
    %c256_100 = arith.constant 256 : index
    %c0_101 = arith.constant 0 : index
    %143 = vector.load %arg4[%c256_100, %c0_101] : memref<288x32xf32, #tpu.memory_space<vmem>>, vector<32x32xf32>
    %cst_102 = arith.constant dense<0.000000e+00> : vector<32x256xf32>
    %144 = tpu.matmul %143, %142, %cst_102 {dimension_numbers = #tpu.dot_dimension_numbers<[1], [0], [0], [1], [0, 0, 1, 1], [], []>} : vector<32x32xf32>, vector<32x256xf32>, vector<32x256xf32> -> vector<32x256xf32>
    %145 = arith.addf %137, %144 : vector<32x256xf32>
    %c0_103 = arith.constant 0 : index
    %c0_104 = arith.constant 0 : index
    %146 = vector.load %arg5[%c0_103, %c0_104] : memref<32x1xf32, #tpu.memory_space<vmem>>, vector<32x1xf32>
    %147 = vector.broadcast %146 : vector<32x1xf32> to vector<32x256xf32>
    %148 = arith.addf %145, %147 : vector<32x256xf32>
    %c0_105 = arith.constant 0 : index
    %c0_106 = arith.constant 0 : index
    %149 = vector.load %arg6[%c0_105, %c0_106] : memref<32x32xf32, #tpu.memory_space<vmem>>, vector<32x32xf32>
    %150 = arith.mulf %148, %148 : vector<32x256xf32>
    %cst_107 = arith.constant dense<0.000000e+00> : vector<32x256xf32>
    %151 = tpu.matmul %149, %150, %cst_107 {dimension_numbers = #tpu.dot_dimension_numbers<[1], [0], [0], [1], [0, 0, 1, 1], [], []>} : vector<32x32xf32>, vector<32x256xf32>, vector<32x256xf32> -> vector<32x256xf32>
    %cst_108 = arith.constant 2.000000e-05 : f32
    %152 = vector.broadcast %cst_108 : f32 to vector<32x256xf32>
    %153 = arith.mulf %152, %151 : vector<32x256xf32>
    %cst_109 = arith.constant 1.000000e+00 : f32
    %154 = vector.broadcast %cst_109 : f32 to vector<32x256xf32>
    %155 = arith.addf %154, %153 : vector<32x256xf32>
    %156 = math.rsqrt %155 : vector<32x256xf32>
    %157 = math.sqrt %156 : vector<32x256xf32>
    %158 = arith.mulf %156, %157 : vector<32x256xf32>
    %159 = arith.mulf %148, %158 : vector<32x256xf32>
    %c0_110 = arith.constant 0 : index
    %c0_111 = arith.constant 0 : index
    %c0_112 = arith.constant 0 : index
    %160 = vector.load %arg8[%c0_110, %c0_111, %c0_112] : memref<1x32x256xf32, #tpu.memory_space<vmem>>, vector<1x32x256xf32>
    %161 = vector.shape_cast %160 : vector<1x32x256xf32> to vector<32x256xf32>
    %162 = vector.shape_cast %159 : vector<32x256xf32> to vector<1x32x256xf32>
    tpu.vector_store %arg8[%c0_110, %c0_111, %c0_112], %162 {strides = array<i32>} : memref<1x32x256xf32, #tpu.memory_space<vmem>>, vector<1x32x256xf32>,
    return
  }
  func.func @transform_0(%arg0: i32) -> (i32, i32) {
    %c0_i32 = arith.constant 0 : i32
    %c0_i32_0 = arith.constant 0 : i32
    return %c0_i32, %arg0 : i32, i32
  }
  func.func @transform_1(%arg0: i32) -> (i32, i32) {
    %c0_i32 = arith.constant 0 : i32
    %c0_i32_0 = arith.constant 0 : i32
    %c0_i32_1 = arith.constant 0 : i32
    return %c0_i32, %c0_i32_0 : i32, i32
  }
  func.func @transform_2(%arg0: i32) -> (i32, i32) {
    %c0_i32 = arith.constant 0 : i32
    %c0_i32_0 = arith.constant 0 : i32
    %c0_i32_1 = arith.constant 0 : i32
    return %c0_i32, %c0_i32_0 : i32, i32
  }
  func.func @transform_3(%arg0: i32) -> (i32, i32) {
    %c0_i32 = arith.constant 0 : i32
    %c0_i32_0 = arith.constant 0 : i32
    %c0_i32_1 = arith.constant 0 : i32
    return %c0_i32, %c0_i32_0 : i32, i32
  }
  func.func @transform_4(%arg0: i32) -> (i32, i32) {
    %c0_i32 = arith.constant 0 : i32
    %c0_i32_0 = arith.constant 0 : i32
    %c0_i32_1 = arith.constant 0 : i32
    return %c0_i32, %c0_i32_0 : i32, i32
  }
  func.func @transform_5(%arg0: i32) -> (i32, i32) {
    %c0_i32 = arith.constant 0 : i32
    %c0_i32_0 = arith.constant 0 : i32
    %c0_i32_1 = arith.constant 0 : i32
    return %c0_i32, %c0_i32_0 : i32, i32
  }
  func.func @transform_6(%arg0: i32) -> (i32, i32, i32) {
    %c0_i32 = arith.constant 0 : i32
    %c0_i32_0 = arith.constant 0 : i32
    %c0_i32_1 = arith.constant 0 : i32
    %c0_i32_2 = arith.constant 0 : i32
    return %c0_i32, %c0_i32_0, %c0_i32_1 : i32, i32, i32
  }
  func.func @transform_7(%arg0: i32) -> (i32, i32, i32) {
    %c0_i32 = arith.constant 0 : i32
    %c0_i32_0 = arith.constant 0 : i32
    %c0_i32_1 = arith.constant 0 : i32
    return %arg0, %c0_i32, %c0_i32_0 : i32, i32, i32
  }
}

</mosaic_0001>

<llo_original>
// kernel: tpu_custom_call.1
$region0: #{tpu_custom_call.1}
  #allocation0 [shape = 'u32[]', space=smem, size = 0x4, offset = 0x4, fixed_abs, tag = 'smem constant byte address 0x4 - core index']
  #allocation1 [shape = 'u32[144,128]{1,0:T(1,128)}', space=vmem, size = 0x12000, scoped, tag = 'internal scratch']
  %s0 = inlined_call_operand.vmem [shape: f32[8,512], index: 0, kind: input, shape index: {}]
  %s1 = inlined_call_operand.vmem [shape: f32[288,8], index: 1, kind: input, shape index: {}]
  %s2 = inlined_call_operand.vmem [shape: f32[32,1], index: 2, kind: input, shape index: {}]
  %s3 = inlined_call_operand.vmem [shape: f32[288,32], index: 3, kind: input, shape index: {}]
  %s4 = inlined_call_operand.vmem [shape: f32[32,1], index: 4, kind: input, shape index: {}]
  %s5 = inlined_call_operand.vmem [shape: f32[32,32], index: 5, kind: input, shape index: {}]
  %s6 = inlined_call_operand.vmem [shape: f32[9,1,256], index: 6, kind: input, shape index: {}]
  %s7 = inlined_call_operand.hbm [shape: f32[2,32,256], index: 7, kind: output, shape index: {}]
  %s8 = sld [smem:[#allocation0]]
  $region61: #{tpu_custom_call.1} parent=0
    _
  %s10 = ssub.s32 1, %s8
  %s11 = scalar_select 0, %s10, %s8
  $region1: #{tpu_custom_call.1} parent=0
    #allocation2 [shape = 'u8[65536]{0}', space=vmem, size = 0x10000, scoped, tag = 'output window, operand 0']
    #allocation3 [shape = 's32[2]{0}', space=sflag, size = 0x8, scoped, tag = 'scoped memory for tpu_custom_call.1']
    %12 = vsyncpa [#allocation3], 0
    %s13 = scalar_lea.sflag [#allocation3], 1
    %14 = vsyncpa %s13, 0
    loop: start=0, step=1, limit=4
    $region2: #{tpu_custom_call.1} parent=1 // loop_pre_header
      _
    $region3: #{tpu_custom_call.1} parent=1 // loop_header
      %s16 = sphi 0, %s20
      %p17 = scmp.ge.s32.totalorder %s16, 4
      %s26 = sphi 0, %s28
      %s29 = sphi 0, %s26
      %s30 = sphi 0, %s29
      %s46 = sphi 0, %s30
      %s50 = sphi 0, %s50
      %s52 = sphi 0, %s50
      %s53 = sphi 0, %s52
      %s67 = sphi 0, %s53
      %s71 = sphi 0, %s71
      %s73 = sphi 0, %s71
      %s74 = sphi 0, %s73
      %s88 = sphi 0, %s74
      %s92 = sphi 0, %s92
      %s94 = sphi 0, %s92
      %s95 = sphi 0, %s94
      %s109 = sphi 0, %s95
      %s113 = sphi 0, %s113
      %s115 = sphi 0, %s113
      %s116 = sphi 0, %s115
      %s130 = sphi 0, %s116
      %s134 = sphi 0, %s134
      %s136 = sphi 0, %s134
      %s137 = sphi 0, %s136
      %s151 = sphi 0, %s137
      %s155 = sphi 0, %s155
      %s157 = sphi 0, %s155
      %s158 = sphi 0, %s157
      %s172 = sphi 0, %s158
      %s178 = sphi 0, %s180
      %s181 = sphi 0, %s178
      %s182 = sphi 0, %s181
      %s198 = sphi 0, %s182
    $region4: #{tpu_custom_call.1} parent=1 // loop_header_branch
      %19 = sbr.rel (%p17) target = $region8
    $region5: #{tpu_custom_call.1} parent=1 // loop_body
      %s21 = ssub.s32 %s16, 1
      %s22 = ssub.s32 %s16, 2
      %s23 = sadd.s32 %s16, 1
      %s24 = ssub.s32 %s16, %s23
      %p25 = scmp.eq.s32.totalorder %s24, 0
      %s27 = sadd.s32 %s26, 1
      %s28 = scalar_select %p25, %s26, %s27
      %p31 = pneg %p25
      %p32 = scmp.eq.s32.totalorder %s16, 1
      %p33 = por %p31, %p32
      %p34 = scmp.ne.s32.totalorder %s26, %s29
      %p35 = scmp.eq.s32.totalorder %s16, 0
      %p36 = por %p34, %p35
      %p37 = scmp.ne.s32.totalorder %s26, %s29
      %p38 = scmp.eq.s32.totalorder %s21, 1
      %p39 = por %p37, %p38
      %p40 = scmp.ne.s32.totalorder %s29, %s30
      %p41 = scmp.eq.s32.totalorder %s21, 0
      %p42 = por %p40, %p41
      %p43 = scmp.ne.s32.totalorder %s29, %s30
      %p44 = scmp.eq.s32.totalorder %s22, 1
      %p45 = por %p43, %p44
      %p47 = scmp.ne.s32.totalorder %s30, %s46
      %p48 = scmp.eq.s32.totalorder %s22, 0
      %p49 = por %p47, %p48
      %s51 = sadd.s32 %s50, 1
      %p54 = scmp.eq.s32.totalorder %s16, 1
      %p55 = scmp.ne.s32.totalorder %s50, %s52
      %p56 = scmp.eq.s32.totalorder %s16, 0
      %p57 = por %p55, %p56
      %p58 = scmp.ne.s32.totalorder %s50, %s52
      %p59 = scmp.eq.s32.totalorder %s21, 1
      %p60 = por %p58, %p59
      %p61 = scmp.ne.s32.totalorder %s52, %s53
      %p62 = scmp.eq.s32.totalorder %s21, 0
      %p63 = por %p61, %p62
      %p64 = scmp.ne.s32.totalorder %s52, %s53
      %p65 = scmp.eq.s32.totalorder %s22, 1
      %p66 = por %p64, %p65
      %p68 = scmp.ne.s32.totalorder %s53, %s67
      %p69 = scmp.eq.s32.totalorder %s22, 0
      %p70 = por %p68, %p69
      %s72 = sadd.s32 %s71, 1
      %p75 = scmp.eq.s32.totalorder %s16, 1
      %p76 = scmp.ne.s32.totalorder %s71, %s73
      %p77 = scmp.eq.s32.totalorder %s16, 0
      %p78 = por %p76, %p77
      %p79 = scmp.ne.s32.totalorder %s71, %s73
      %p80 = scmp.eq.s32.totalorder %s21, 1
      %p81 = por %p79, %p80
      %p82 = scmp.ne.s32.totalorder %s73, %s74
      %p83 = scmp.eq.s32.totalorder %s21, 0
      %p84 = por %p82, %p83
      %p85 = scmp.ne.s32.totalorder %s73, %s74
      %p86 = scmp.eq.s32.totalorder %s22, 1
      %p87 = por %p85, %p86
      %p89 = scmp.ne.s32.totalorder %s74, %s88
      %p90 = scmp.eq.s32.totalorder %s22, 0
      %p91 = por %p89, %p90
      %s93 = sadd.s32 %s92, 1
      %p96 = scmp.eq.s32.totalorder %s16, 1
      %p97 = scmp.ne.s32.totalorder %s92, %s94
      %p98 = scmp.eq.s32.totalorder %s16, 0
      %p99 = por %p97, %p98
      %p100 = scmp.ne.s32.totalorder %s92, %s94
      %p101 = scmp.eq.s32.totalorder %s21, 1
      %p102 = por %p100, %p101
      %p103 = scmp.ne.s32.totalorder %s94, %s95
      %p104 = scmp.eq.s32.totalorder %s21, 0
      %p105 = por %p103, %p104
      %p106 = scmp.ne.s32.totalorder %s94, %s95
      %p107 = scmp.eq.s32.totalorder %s22, 1
      %p108 = por %p106, %p107
      %p110 = scmp.ne.s32.totalorder %s95, %s109
      %p111 = scmp.eq.s32.totalorder %s22, 0
      %p112 = por %p110, %p111
      %s114 = sadd.s32 %s113, 1
      %p117 = scmp.eq.s32.totalorder %s16, 1
      %p118 = scmp.ne.s32.totalorder %s113, %s115
      %p119 = scmp.eq.s32.totalorder %s16, 0
      %p120 = por %p118, %p119
      %p121 = scmp.ne.s32.totalorder %s113, %s115
      %p122 = scmp.eq.s32.totalorder %s21, 1
      %p123 = por %p121, %p122
      %p124 = scmp.ne.s32.totalorder %s115, %s116
      %p125 = scmp.eq.s32.totalorder %s21, 0
      %p126 = por %p124, %p125
      %p127 = scmp.ne.s32.totalorder %s115, %s116
      %p128 = scmp.eq.s32.totalorder %s22, 1
      %p129 = por %p127, %p128
      %p131 = scmp.ne.s32.totalorder %s116, %s130
      %p132 = scmp.eq.s32.totalorder %s22, 0
      %p133 = por %p131, %p132
      %s135 = sadd.s32 %s134, 1
      %p138 = scmp.eq.s32.totalorder %s16, 1
      %p139 = scmp.ne.s32.totalorder %s134, %s136
      %p140 = scmp.eq.s32.totalorder %s16, 0
      %p141 = por %p139, %p140
      %p142 = scmp.ne.s32.totalorder %s134, %s136
      %p143 = scmp.eq.s32.totalorder %s21, 1
      %p144 = por %p142, %p143
      %p145 = scmp.ne.s32.totalorder %s136, %s137
      %p146 = scmp.eq.s32.totalorder %s21, 0
      %p147 = por %p145, %p146
      %p148 = scmp.ne.s32.totalorder %s136, %s137
      %p149 = scmp.eq.s32.totalorder %s22, 1
      %p150 = por %p148, %p149
      %p152 = scmp.ne.s32.totalorder %s137, %s151
      %p153 = scmp.eq.s32.totalorder %s22, 0
      %p154 = por %p152, %p153
      %s156 = sadd.s32 %s155, 1
      %p159 = scmp.eq.s32.totalorder %s16, 1
      %p160 = scmp.ne.s32.totalorder %s155, %s157
      %p161 = scmp.eq.s32.totalorder %s16, 0
      %p162 = por %p160, %p161
      %p163 = scmp.ne.s32.totalorder %s155, %s157
      %p164 = scmp.eq.s32.totalorder %s21, 1
      %p165 = por %p163, %p164
      %p166 = scmp.ne.s32.totalorder %s157, %s158
      %p167 = scmp.eq.s32.totalorder %s21, 0
      %p168 = por %p166, %p167
      %p169 = scmp.ne.s32.totalorder %s157, %s158
      %p170 = scmp.eq.s32.totalorder %s22, 1
      %p171 = por %p169, %p170
      %p173 = scmp.ne.s32.totalorder %s158, %s172
      %p174 = scmp.eq.s32.totalorder %s22, 0
      %p175 = por %p173, %p174
      %s176 = ssub.s32 %s16, %s23
      %p177 = scmp.eq.s32.totalorder %s176, 0
      %s179 = sadd.s32 %s178, 1
      %s180 = scalar_select %p177, %s178, %s179
      %p183 = pneg %p177
      %p184 = scmp.eq.s32.totalorder %s16, 1
      %p185 = por %p183, %p184
      %p186 = scmp.ne.s32.totalorder %s178, %s181
      %p187 = scmp.eq.s32.totalorder %s16, 0
      %p188 = por %p186, %p187
      %p189 = scmp.ne.s32.totalorder %s178, %s181
      %p190 = scmp.eq.s32.totalorder %s21, 1
      %p191 = por %p189, %p190
      %p192 = scmp.ne.s32.totalorder %s181, %s182
      %p193 = scmp.eq.s32.totalorder %s21, 0
      %p194 = por %p192, %p193
      %p195 = scmp.ne.s32.totalorder %s181, %s182
      %p196 = scmp.eq.s32.totalorder %s22, 1
      %p197 = por %p195, %p196
      %p199 = scmp.ne.s32.totalorder %s182, %s198
      %p200 = scmp.eq.s32.totalorder %s22, 0
      %p201 = por %p199, %p200
      %p202 = scmp.le.s32.totalorder 1, %s16
      %p203 = scmp.lt.s32.totalorder %s16, 3
      %p204 = pnand %p202, %p203
      %p205 = pneg %p204
      // Predicated region
      $region9: #{tpu_custom_call.1} parent=5 // pred_check
        _
      $region10: #{tpu_custom_call.1} parent=5 // pred_check_branch
        %207 = sbr.rel (%p204) target = $region12
      $region11: #{tpu_custom_call.1} parent=5 // pred_region
        %s208 = ssub.s32 %s16, 1
        // Predicated region
        $region13: #{tpu_custom_call.1} parent=11 // pred_check
          %p209 = pneg %p63
        $region14: #{tpu_custom_call.1} parent=11 // pred_check_branch
          %211 = sbr.rel (%p209) target = $region16
        $region15: #{tpu_custom_call.1} parent=11 // pred_region
          _
        $region16: #{tpu_custom_call.1} parent=11 // pred_fallthru
          _
        // Predicated region
        $region17: #{tpu_custom_call.1} parent=11 // pred_check
          %p212 = pneg %p84
        $region18: #{tpu_custom_call.1} parent=11 // pred_check_branch
          %214 = sbr.rel (%p212) target = $region20
        $region19: #{tpu_custom_call.1} parent=11 // pred_region
          _
        $region20: #{tpu_custom_call.1} parent=11 // pred_fallthru
          _
        // Predicated region
        $region21: #{tpu_custom_call.1} parent=11 // pred_check
          %p215 = pneg %p105
        $region22: #{tpu_custom_call.1} parent=11 // pred_check_branch
          %217 = sbr.rel (%p215) target = $region24
        $region23: #{tpu_custom_call.1} parent=11 // pred_region
          _
        $region24: #{tpu_custom_call.1} parent=11 // pred_fallthru
          _
        // Predicated region
        $region25: #{tpu_custom_call.1} parent=11 // pred_check
          %p218 = pneg %p126
        $region26: #{tpu_custom_call.1} parent=11 // pred_check_branch
          %220 = sbr.rel (%p218) target = $region28
        $region27: #{tpu_custom_call.1} parent=11 // pred_region
          _
        $region28: #{tpu_custom_call.1} parent=11 // pred_fallthru
          _
        // Predicated region
        $region29: #{tpu_custom_call.1} parent=11 // pred_check
          %p221 = pneg %p147
        $region30: #{tpu_custom_call.1} parent=11 // pred_check_branch
          %223 = sbr.rel (%p221) target = $region32
        $region31: #{tpu_custom_call.1} parent=11 // pred_region
          _
        $region32: #{tpu_custom_call.1} parent=11 // pred_fallthru
          _
        // Predicated region
        $region33: #{tpu_custom_call.1} parent=11 // pred_check
          %p224 = pneg %p168
        $region34: #{tpu_custom_call.1} parent=11 // pred_check_branch
          %226 = sbr.rel (%p224) target = $region36
        $region35: #{tpu_custom_call.1} parent=11 // pred_region
          _
        $region36: #{tpu_custom_call.1} parent=11 // pred_fallthru
          _
      $region12: #{tpu_custom_call.1} parent=5 // pred_fallthru
        _
      %p227 = scmp.lt.s32.totalorder %s16, 2
      // Predicated region
      $region37: #{tpu_custom_call.1} parent=5 // pred_check
        %p228 = pneg %p227
      $region38: #{tpu_custom_call.1} parent=5 // pred_check_branch
        %230 = sbr.rel (%p228) target = $region40
      $region39: #{tpu_custom_call.1} parent=5 // pred_region
        // Predicated region
        $region41: #{tpu_custom_call.1} parent=39 // pred_check
          %p231 = pneg %p36
        $region42: #{tpu_custom_call.1} parent=39 // pred_check_branch
          %233 = sbr.rel (%p231) target = $region44
        $region43: #{tpu_custom_call.1} parent=39 // pred_region
          %s234 = smul.u32 2, %s16
          %p235 = scmp.lt.s32.totalorder %s234, 3
          %s236 = scalar_select %p235, %s234, 3
          %s237 = smul.addr %s236, 8
          %s238 = scalar_lea.vmem %s0, %s237
          %s239 = smul.u32 2, %s16
        $region44: #{tpu_custom_call.1} parent=39 // pred_fallthru
          _
      $region40: #{tpu_custom_call.1} parent=5 // pred_fallthru
        _
      %p240 = scmp.le.s32.totalorder 1, %s16
      %p241 = scmp.lt.s32.totalorder %s16, 3
      %p242 = pnand %p240, %p241
      %p243 = pneg %p242
      // Predicated region
      $region45: #{tpu_custom_call.1} parent=5 // pred_check
        _
      $region46: #{tpu_custom_call.1} parent=5 // pred_check_branch
        %245 = sbr.rel (%p242) target = $region48
      $region47: #{tpu_custom_call.1} parent=5 // pred_region
        %s246 = ssub.s32 %s16, 1
        %s247 = smul.u32 2, %s21
        %p248 = scmp.lt.s32.totalorder %s247, 3
        %s249 = scalar_select %p248, %s247, 3
        %s250 = smul.addr %s249, 8
        %s251 = scalar_lea.vmem %s0, %s250
        %p252 = pneg %p42
        %p253 = pneg %p39
        %p254 = pneg %p63
        %p255 = pneg %p60
        %p256 = pneg %p84
        %p257 = pneg %p81
        %p258 = pneg %p105
        %p259 = pneg %p102
        %p260 = pneg %p126
        %p261 = pneg %p123
        %p262 = pneg %p147
        %p263 = pneg %p144
        %p264 = pneg %p168
        %p265 = pneg %p165
        %p266 = pneg %p194
        %p267 = pneg %p191
        %s268 = sand.u32 %s181, 1
        %s269 = scalar_lea.sflag [#allocation3], %s268
        %s270 = sand.u32 %s181, 1
        %s271 = smul.addr %s270, 64
        %s272 = scalar_lea.vmem [#allocation2], %s271
        %s273 = smul.u32 2, %s21
        %p274 = scmp.lt.s32.totalorder %s273, 3
        %s275 = scalar_select %p274, %s273, 3
        %s276 = smul.addr %s275, 8
        %s277 = scalar_lea.vmem %s0, %s276
        %s278 = smul.u32 2, %s21
        %v279 = vld [vmem:[%s277] sm:$0xff]
        %v280 = vld [vmem:[%s277 + $0x8] sm:$0xff]
        %281 = vrot.lane.b32.xlu0 %v279, 17
        %v282 = vpop.permute.xlu0 %281
        %283 = vrot.lane.b32.xlu0 %v280, 17
        %v284 = vpop.permute.xlu0 %283
        %v285 = vlaneseq
        %v286 = vand.u32 %v285, 127
        %vm287 = vcmp.lt.s32.totalorder %v286, 17
        %v288 = vsel %vm287, %v282, %v284
        %v289 = vsel %vm287, %v284, %v282
        %v290 = vld [vmem:[%s6] sm:$0x3]
        %v292 = vlaneseq
        %v293 = vshrl.u32 %v292, 7
        %v294 = vsub.s32 0, %v293
        %v295 = vrot.slane %v290, %v294
        %v296 = vlaneseq
        %v297 = vshrl.u32 %v296, 7
        %v298 = vsub.s32 1, %v297
        %v299 = vrot.slane %v290, %v298
        %v302 = vmul.f32 %v289, %v295
        %v303 = vmul.f32 %v288, %v299
        %v304 = vld [vmem:[%s1] sm:$0xff]
        %v305 = vld [vmem:[%s1 + $0x8] sm:$0xff]
        %v306 = vld [vmem:[%s1 + $0x10] sm:$0xff]
        %v307 = vld [vmem:[%s1 + $0x18] sm:$0xff]
        %308 = vrot.lane.b32.xlu0 %v279, 16
        %v309 = vpop.permute.xlu0 %308
        %310 = vrot.lane.b32.xlu0 %v280, 16
        %v311 = vpop.permute.xlu0 %310
        %vm312 = vcmp.lt.s32.totalorder %v286, 16
        %v313 = vsel %vm312, %v309, %v311
        %v314 = vsel %vm312, %v311, %v309
        %s315 = scalar_lea.vmem %s6, 2
        %v316 = vld [vmem:[%s315] sm:$0x3]
        %v318 = vlaneseq
        %v319 = vshrl.u32 %v318, 7
        %v320 = vsub.s32 0, %v319
        %v321 = vrot.slane %v316, %v320
        %v322 = vlaneseq
        %v323 = vshrl.u32 %v322, 7
        %v324 = vsub.s32 1, %v323
        %v325 = vrot.slane %v316, %v324
        %v328 = vmul.f32 %v314, %v321
        %v329 = vmul.f32 %v313, %v325
        %v330 = vld [vmem:[%s1 + $0x20] sm:$0xff]
        %v331 = vld [vmem:[%s1 + $0x28] sm:$0xff]
        %v332 = vld [vmem:[%s1 + $0x30] sm:$0xff]
        %v333 = vld [vmem:[%s1 + $0x38] sm:$0xff]
        %vm334 = vcmask 64512
        %v336 = vsel %vm334, %v330, 0
        %v339 = vsel %vm334, %v331, 0
        %v342 = vsel %vm334, %v332, 0
        %v345 = vsel %vm334, %v333, 0
        %347 = vmatprep.subr.mxu0 %v329
        %348 = vmatpush1.msra.mxu0 %v328
        %349 = vmatprep.subr.mxu0 0.0
        %350 = vmatpush1.msra.mxu0 0.0
        %351 = vmatprep.subr.mxu0 0.0
        %352 = vmatpush1.msra.mxu0 0.0
        %353 = vmatprep.subr.mxu0 0.0
        %354 = vmatpush1.msra.mxu0 0.0
        %355 = vmatprep.subr.mxu0 0.0
        %356 = vmatpush1.msra.mxu0 0.0
        %357 = vmatprep.subr.mxu0 0.0
        %358 = vmatpush1.msra.mxu0 0.0
        %359 = vmatprep.subr.mxu0 0.0
        %360 = vmatpush1.msra.mxu0 0.0
        %361 = vmatprep.subr.mxu0 0.0
        %362 = vmatpush1.msra.mxu0 0.0
        %363 = vmatprep.subr.mxu0 0.0
        %364 = vmatpush1.msra.mxu0 0.0
        %365 = vmatprep.subr.mxu0 0.0
        %366 = vmatpush1.msra.mxu0 0.0
        %367 = vmatprep.subr.mxu0 0.0
        %368 = vmatpush1.msra.mxu0 0.0
        %369 = vmatprep.subr.mxu0 0.0
        %370 = vmatpush1.msra.mxu0 0.0
        %371 = vmatprep.subr.mxu0 0.0
        %372 = vmatpush1.msra.mxu0 0.0
        %373 = vmatprep.subr.mxu0 0.0
        %374 = vmatpush1.msra.mxu0 0.0
        %375 = vmatprep.subr.mxu0 0.0
        %376 = vmatpush1.msra.mxu0 0.0
        %377 = vmatprep.subr.mxu0 0.0
        %378 = vmatpush1.msra.mxu0 0.0
        %379 = vmatprep.subr.mxu0 0.0
        %380 = vmatpush1.msra.mxu0 0.0
        %381 = vmatprep.subr.mxu0 0.0
        %382 = vmatpush1.msra.mxu0 0.0
        %383 = vmatprep.subr.mxu0 0.0
        %384 = vmatpush1.msra.mxu0 0.0
        %385 = vmatprep.subr.mxu0 0.0
        %386 = vmatpush1.msra.mxu0 0.0
        %387 = vmatprep.subr.mxu0 0.0
        %388 = vmatpush1.msra.mxu0 0.0
        %389 = vmatprep.subr.mxu0 0.0
        %390 = vmatpush1.msra.mxu0 0.0
        %391 = vmatprep.subr.mxu0 0.0
        %392 = vmatpush1.msra.mxu0 0.0
        %393 = vmatprep.subr.mxu0 0.0
        %394 = vmatpush1.msra.mxu0 0.0
        %395 = vmatprep.subr.mxu0 0.0
        %396 = vmatpush1.msra.mxu0 0.0
        %397 = vmatprep.subr.mxu0 0.0
        %398 = vmatpush1.msra.mxu0 0.0
        %399 = vmatprep.subr.mxu0 0.0
        %400 = vmatpush1.msra.mxu0 0.0
        %401 = vmatprep.subr.mxu0 0.0
        %402 = vmatpush1.msra.mxu0 0.0
        %403 = vmatprep.subr.mxu0 0.0
        %404 = vmatpush1.msra.mxu0 0.0
        %405 = vmatprep.subr.mxu0 0.0
        %406 = vmatpush1.msra.mxu0 0.0
        %407 = vmatprep.subr.mxu0 0.0
        %408 = vmatpush1.msra.mxu0 0.0
        %409 = vmatprep.subr.mxu0 0.0
        %410 = vmatpush1.msra.mxu0 0.0
        %411 = vmatprep.mubr.f32.mxu0 0.0
        %412 = vmatmul.mubr.f32.gmra.mrb[0].mxu0 %v336
        %v413 = vpop.f32.mrb[0].mxu0
        %v414 = vadd.f32 0.0, %v413
        %v415 = vpop.f32.mrb[0].mxu0
        %v416 = vadd.f32 0.0, %v415
        %417 = vmatprep.mubr.f32.mxu0 0.0
        %418 = vmatmul.mubr.f32.gmra.mrb[0].mxu0 %v339
        %v419 = vpop.f32.mrb[0].mxu0
        %v420 = vadd.f32 0.0, %v419
        %v421 = vpop.f32.mrb[0].mxu0
        %v422 = vadd.f32 0.0, %v421
        %423 = vmatprep.mubr.f32.mxu0 0.0
        %424 = vmatmul.mubr.f32.gmra.mrb[0].mxu0 %v342
        %v425 = vpop.f32.mrb[0].mxu0
        %v426 = vadd.f32 0.0, %v425
        %v427 = vpop.f32.mrb[0].mxu0
        %v428 = vadd.f32 0.0, %v427
        %429 = vmatprep.mubr.f32.mxu0 0.0
        %430 = vmatmul.mubr.f32.gmra.mrb[0].mxu0 %v345
        %v431 = vpop.f32.mrb[0].mxu0
        %v432 = vadd.f32 0.0, %v431
        %v433 = vpop.f32.mrb[0].mxu0
        %v434 = vadd.f32 0.0, %v433
        %435 = vdwg.mxu0
        %v437 = vsel %vm334, %v304, 0
        %v440 = vsel %vm334, %v305, 0
        %v443 = vsel %vm334, %v306, 0
        %v446 = vsel %vm334, %v307, 0
        %448 = vmatprep.subr.mxu0 %v303
        %449 = vmatpush1.msra.mxu0 %v302
        %450 = vmatprep.subr.mxu0 0.0
        %451 = vmatpush1.msra.mxu0 0.0
        %452 = vmatprep.subr.mxu0 0.0
        %453 = vmatpush1.msra.mxu0 0.0
        %454 = vmatprep.subr.mxu0 0.0
        %455 = vmatpush1.msra.mxu0 0.0
        %456 = vmatprep.subr.mxu0 0.0
        %457 = vmatpush1.msra.mxu0 0.0
        %458 = vmatprep.subr.mxu0 0.0
        %459 = vmatpush1.msra.mxu0 0.0
        %460 = vmatprep.subr.mxu0 0.0
        %461 = vmatpush1.msra.mxu0 0.0
        %462 = vmatprep.subr.mxu0 0.0
        %463 = vmatpush1.msra.mxu0 0.0
        %464 = vmatprep.subr.mxu0 0.0
        %465 = vmatpush1.msra.mxu0 0.0
        %466 = vmatprep.subr.mxu0 0.0
        %467 = vmatpush1.msra.mxu0 0.0
        %468 = vmatprep.subr.mxu0 0.0
        %469 = vmatpush1.msra.mxu0 0.0
        %470 = vmatprep.subr.mxu0 0.0
        %471 = vmatpush1.msra.mxu0 0.0
        %472 = vmatprep.subr.mxu0 0.0
        %473 = vmatpush1.msra.mxu0 0.0
        %474 = vmatprep.subr.mxu0 0.0
        %475 = vmatpush1.msra.mxu0 0.0
        %476 = vmatprep.subr.mxu0 0.0
        %477 = vmatpush1.msra.mxu0 0.0
        %478 = vmatprep.subr.mxu0 0.0
        %479 = vmatpush1.msra.mxu0 0.0
        %480 = vmatprep.subr.mxu0 0.0
        %481 = vmatpush1.msra.mxu0 0.0
        %482 = vmatprep.subr.mxu0 0.0
        %483 = vmatpush1.msra.mxu0 0.0
        %484 = vmatprep.subr.mxu0 0.0
        %485 = vmatpush1.msra.mxu0 0.0
        %486 = vmatprep.subr.mxu0 0.0
        %487 = vmatpush1.msra.mxu0 0.0
        %488 = vmatprep.subr.mxu0 0.0
        %489 = vmatpush1.msra.mxu0 0.0
        %490 = vmatprep.subr.mxu0 0.0
        %491 = vmatpush1.msra.mxu0 0.0
        %492 = vmatprep.subr.mxu0 0.0
        %493 = vmatpush1.msra.mxu0 0.0
        %494 = vmatprep.subr.mxu0 0.0
        %495 = vmatpush1.msra.mxu0 0.0
        %496 = vmatprep.subr.mxu0 0.0
        %497 = vmatpush1.msra.mxu0 0.0
        %498 = vmatprep.subr.mxu0 0.0
        %499 = vmatpush1.msra.mxu0 0.0
        %500 = vmatprep.subr.mxu0 0.0
        %501 = vmatpush1.msra.mxu0 0.0
        %502 = vmatprep.subr.mxu0 0.0
        %503 = vmatpush1.msra.mxu0 0.0
        %504 = vmatprep.subr.mxu0 0.0
        %505 = vmatpush1.msra.mxu0 0.0
        %506 = vmatprep.subr.mxu0 0.0
        %507 = vmatpush1.msra.mxu0 0.0
        %508 = vmatprep.subr.mxu0 0.0
        %509 = vmatpush1.msra.mxu0 0.0
        %510 = vmatprep.subr.mxu0 0.0
        %511 = vmatpush1.msra.mxu0 0.0
        %512 = vmatprep.mubr.f32.mxu0 0.0
        %513 = vmatmul.mubr.f32.gmra.mrb[0].mxu0 %v437
        %v514 = vpop.f32.mrb[0].mxu0
        %v515 = vadd.f32 %v414, %v514
        %v516 = vpop.f32.mrb[0].mxu0
        %v517 = vadd.f32 %v416, %v516
        %518 = vmatprep.mubr.f32.mxu0 0.0
        %519 = vmatmul.mubr.f32.gmra.mrb[0].mxu0 %v440
        %v520 = vpop.f32.mrb[0].mxu0
        %v521 = vadd.f32 %v420, %v520
        %v522 = vpop.f32.mrb[0].mxu0
        %v523 = vadd.f32 %v422, %v522
        %524 = vmatprep.mubr.f32.mxu0 0.0
        %525 = vmatmul.mubr.f32.gmra.mrb[0].mxu0 %v443
        %v526 = vpop.f32.mrb[0].mxu0
        %v527 = vadd.f32 %v426, %v526
        %v528 = vpop.f32.mrb[0].mxu0
        %v529 = vadd.f32 %v428, %v528
        %530 = vmatprep.mubr.f32.mxu0 0.0
        %531 = vmatmul.mubr.f32.gmra.mrb[0].mxu0 %v446
        %v532 = vpop.f32.mrb[0].mxu0
        %v533 = vadd.f32 %v432, %v532
        %v534 = vpop.f32.mrb[0].mxu0
        %v535 = vadd.f32 %v434, %v534
        %536 = vdwg.mxu0
        %537 = vrot.lane.b32.xlu0 %v279, 15
        %v538 = vpop.permute.xlu0 %537
        %539 = vrot.lane.b32.xlu0 %v280, 15
        %v540 = vpop.permute.xlu0 %539
        %vm541 = vcmp.lt.s32.totalorder %v286, 15
        %v542 = vsel %vm541, %v538, %v540
        %v543 = vsel %vm541, %v540, %v538
        %s544 = scalar_lea.vmem %s6, 4
        %v545 = vld [vmem:[%s544] sm:$0x3]
        %v547 = vlaneseq
        %v548 = vshrl.u32 %v547, 7
        %v549 = vsub.s32 0, %v548
        %v550 = vrot.slane %v545, %v549
        %v551 = vlaneseq
        %v552 = vshrl.u32 %v551, 7
        %v553 = vsub.s32 1, %v552
        %v554 = vrot.slane %v545, %v553
        %v557 = vmul.f32 %v543, %v550
        %v558 = vmul.f32 %v542, %v554
        %v559 = vld [vmem:[%s1 + $0x40] sm:$0xff]
        %v560 = vld [vmem:[%s1 + $0x48] sm:$0xff]
        %v561 = vld [vmem:[%s1 + $0x50] sm:$0xff]
        %v562 = vld [vmem:[%s1 + $0x58] sm:$0xff]
        %v564 = vsel %vm334, %v559, 0
        %v567 = vsel %vm334, %v560, 0
        %v570 = vsel %vm334, %v561, 0
        %v573 = vsel %vm334, %v562, 0
        %575 = vmatprep.subr.mxu0 %v558
        %576 = vmatpush1.msra.mxu0 %v557
        %577 = vmatprep.subr.mxu0 0.0
        %578 = vmatpush1.msra.mxu0 0.0
        %579 = vmatprep.subr.mxu0 0.0
        %580 = vmatpush1.msra.mxu0 0.0
        %581 = vmatprep.subr.mxu0 0.0
        %582 = vmatpush1.msra.mxu0 0.0
        %583 = vmatprep.subr.mxu0 0.0
        %584 = vmatpush1.msra.mxu0 0.0
        %585 = vmatprep.subr.mxu0 0.0
        %586 = vmatpush1.msra.mxu0 0.0
        %587 = vmatprep.subr.mxu0 0.0
        %588 = vmatpush1.msra.mxu0 0.0
        %589 = vmatprep.subr.mxu0 0.0
        %590 = vmatpush1.msra.mxu0 0.0
        %591 = vmatprep.subr.mxu0 0.0
        %592 = vmatpush1.msra.mxu0 0.0
        %593 = vmatprep.subr.mxu0 0.0
        %594 = vmatpush1.msra.mxu0 0.0
        %595 = vmatprep.subr.mxu0 0.0
        %596 = vmatpush1.msra.mxu0 0.0
        %597 = vmatprep.subr.mxu0 0.0
        %598 = vmatpush1.msra.mxu0 0.0
        %599 = vmatprep.subr.mxu0 0.0
        %600 = vmatpush1.msra.mxu0 0.0
        %601 = vmatprep.subr.mxu0 0.0
        %602 = vmatpush1.msra.mxu0 0.0
        %603 = vmatprep.subr.mxu0 0.0
        %604 = vmatpush1.msra.mxu0 0.0
        %605 = vmatprep.subr.mxu0 0.0
        %606 = vmatpush1.msra.mxu0 0.0
        %607 = vmatprep.subr.mxu0 0.0
        %608 = vmatpush1.msra.mxu0 0.0
        %609 = vmatprep.subr.mxu0 0.0
        %610 = vmatpush1.msra.mxu0 0.0
        %611 = vmatprep.subr.mxu0 0.0
        %612 = vmatpush1.msra.mxu0 0.0
        %613 = vmatprep.subr.mxu0 0.0
        %614 = vmatpush1.msra.mxu0 0.0
        %615 = vmatprep.subr.mxu0 0.0
        %616 = vmatpush1.msra.mxu0 0.0
        %617 = vmatprep.subr.mxu0 0.0
        %618 = vmatpush1.msra.mxu0 0.0
        %619 = vmatprep.subr.mxu0 0.0
        %620 = vmatpush1.msra.mxu0 0.0
        %621 = vmatprep.subr.mxu0 0.0
        %622 = vmatpush1.msra.mxu0 0.0
        %623 = vmatprep.subr.mxu0 0.0
        %624 = vmatpush1.msra.mxu0 0.0
        %625 = vmatprep.subr.mxu0 0.0
        %626 = vmatpush1.msra.mxu0 0.0
        %627 = vmatprep.subr.mxu0 0.0
        %628 = vmatpush1.msra.mxu0 0.0
        %629 = vmatprep.subr.mxu0 0.0
        %630 = vmatpush1.msra.mxu0 0.0
        %631 = vmatprep.subr.mxu0 0.0
        %632 = vmatpush1.msra.mxu0 0.0
        %633 = vmatprep.subr.mxu0 0.0
        %634 = vmatpush1.msra.mxu0 0.0
        %635 = vmatprep.subr.mxu0 0.0
        %636 = vmatpush1.msra.mxu0 0.0
        %637 = vmatprep.subr.mxu0 0.0
        %638 = vmatpush1.msra.mxu0 0.0
        %639 = vmatprep.mubr.f32.mxu0 0.0
        %640 = vmatmul.mubr.f32.gmra.mrb[0].mxu0 %v564
        %v641 = vpop.f32.mrb[0].mxu0
        %v642 = vadd.f32 0.0, %v641
        %v643 = vpop.f32.mrb[0].mxu0
        %v644 = vadd.f32 0.0, %v643
        %645 = vmatprep.mubr.f32.mxu0 0.0
        %646 = vmatmul.mubr.f32.gmra.mrb[0].mxu0 %v567
        %v647 = vpop.f32.mrb[0].mxu0
        %v648 = vadd.f32 0.0, %v647
        %v649 = vpop.f32.mrb[0].mxu0
        %v650 = vadd.f32 0.0, %v649
        %651 = vmatprep.mubr.f32.mxu0 0.0
        %652 = vmatmul.mubr.f32.gmra.mrb[0].mxu0 %v570
        %v653 = vpop.f32.mrb[0].mxu0
        %v654 = vadd.f32 0.0, %v653
        %v655 = vpop.f32.mrb[0].mxu0
        %v656 = vadd.f32 0.0, %v655
        %657 = vmatprep.mubr.f32.mxu0 0.0
        %658 = vmatmul.mubr.f32.gmra.mrb[0].mxu0 %v573
        %v659 = vpop.f32.mrb[0].mxu0
        %v660 = vadd.f32 0.0, %v659
        %v661 = vpop.f32.mrb[0].mxu0
        %v662 = vadd.f32 0.0, %v661
        %663 = vdwg.mxu0
        %v664 = vadd.f32 %v515, %v642
        %v665 = vadd.f32 %v517, %v644
        %v666 = vadd.f32 %v521, %v648
        %v667 = vadd.f32 %v523, %v650
        %v668 = vadd.f32 %v527, %v654
        %v669 = vadd.f32 %v529, %v656
        %v670 = vadd.f32 %v533, %v660
        %v671 = vadd.f32 %v535, %v662
        %672 = vrot.lane.b32.xlu0 %v279, 1
        %v673 = vpop.permute.xlu0 %672
        %674 = vrot.lane.b32.xlu0 %v280, 1
        %v675 = vpop.permute.xlu0 %674
        %vm676 = vcmp.lt.s32.totalorder %v286, 1
        %v677 = vsel %vm676, %v673, %v675
        %v678 = vsel %vm676, %v675, %v673
        %s679 = scalar_lea.vmem %s6, 6
        %v680 = vld [vmem:[%s679] sm:$0x3]
        %v682 = vlaneseq
        %v683 = vshrl.u32 %v682, 7
        %v684 = vsub.s32 0, %v683
        %v685 = vrot.slane %v680, %v684
        %v686 = vlaneseq
        %v687 = vshrl.u32 %v686, 7
        %v688 = vsub.s32 1, %v687
        %v689 = vrot.slane %v680, %v688
        %v692 = vmul.f32 %v678, %v685
        %v693 = vmul.f32 %v677, %v689
        %v694 = vld [vmem:[%s1 + $0x60] sm:$0xff]
        %v695 = vld [vmem:[%s1 + $0x68] sm:$0xff]
        %v696 = vld [vmem:[%s1 + $0x70] sm:$0xff]
        %v697 = vld [vmem:[%s1 + $0x78] sm:$0xff]
        %v699 = vsel %vm334, %v694, 0
        %v702 = vsel %vm334, %v695, 0
        %v705 = vsel %vm334, %v696, 0
        %v708 = vsel %vm334, %v697, 0
        %710 = vmatprep.subr.mxu0 %v693
        %711 = vmatpush1.msra.mxu0 %v692
        %712 = vmatprep.subr.mxu0 0.0
        %713 = vmatpush1.msra.mxu0 0.0
        %714 = vmatprep.subr.mxu0 0.0
        %715 = vmatpush1.msra.mxu0 0.0
        %716 = vmatprep.subr.mxu0 0.0
        %717 = vmatpush1.msra.mxu0 0.0
        %718 = vmatprep.subr.mxu0 0.0
        %719 = vmatpush1.msra.mxu0 0.0
        %720 = vmatprep.subr.mxu0 0.0
        %721 = vmatpush1.msra.mxu0 0.0
        %722 = vmatprep.subr.mxu0 0.0
        %723 = vmatpush1.msra.mxu0 0.0
        %724 = vmatprep.subr.mxu0 0.0
        %725 = vmatpush1.msra.mxu0 0.0
        %726 = vmatprep.subr.mxu0 0.0
        %727 = vmatpush1.msra.mxu0 0.0
        %728 = vmatprep.subr.mxu0 0.0
        %729 = vmatpush1.msra.mxu0 0.0
        %730 = vmatprep.subr.mxu0 0.0
        %731 = vmatpush1.msra.mxu0 0.0
        %732 = vmatprep.subr.mxu0 0.0
        %733 = vmatpush1.msra.mxu0 0.0
        %734 = vmatprep.subr.mxu0 0.0
        %735 = vmatpush1.msra.mxu0 0.0
        %736 = vmatprep.subr.mxu0 0.0
        %737 = vmatpush1.msra.mxu0 0.0
        %738 = vmatprep.subr.mxu0 0.0
        %739 = vmatpush1.msra.mxu0 0.0
        %740 = vmatprep.subr.mxu0 0.0
        %741 = vmatpush1.msra.mxu0 0.0
        %742 = vmatprep.subr.mxu0 0.0
        %743 = vmatpush1.msra.mxu0 0.0
        %744 = vmatprep.subr.mxu0 0.0
        %745 = vmatpush1.msra.mxu0 0.0
        %746 = vmatprep.subr.mxu0 0.0
        %747 = vmatpush1.msra.mxu0 0.0
        %748 = vmatprep.subr.mxu0 0.0
        %749 = vmatpush1.msra.mxu0 0.0
        %750 = vmatprep.subr.mxu0 0.0
        %751 = vmatpush1.msra.mxu0 0.0
        %752 = vmatprep.subr.mxu0 0.0
        %753 = vmatpush1.msra.mxu0 0.0
        %754 = vmatprep.subr.mxu0 0.0
        %755 = vmatpush1.msra.mxu0 0.0
        %756 = vmatprep.subr.mxu0 0.0
        %757 = vmatpush1.msra.mxu0 0.0
        %758 = vmatprep.subr.mxu0 0.0
        %759 = vmatpush1.msra.mxu0 0.0
        %760 = vmatprep.subr.mxu0 0.0
        %761 = vmatpush1.msra.mxu0 0.0
        %762 = vmatprep.subr.mxu0 0.0
        %763 = vmatpush1.msra.mxu0 0.0
        %764 = vmatprep.subr.mxu0 0.0
        %765 = vmatpush1.msra.mxu0 0.0
        %766 = vmatprep.subr.mxu0 0.0
        %767 = vmatpush1.msra.mxu0 0.0
        %768 = vmatprep.subr.mxu0 0.0
        %769 = vmatpush1.msra.mxu0 0.0
        %770 = vmatprep.subr.mxu0 0.0
        %771 = vmatpush1.msra.mxu0 0.0
        %772 = vmatprep.subr.mxu0 0.0
        %773 = vmatpush1.msra.mxu0 0.0
        %774 = vmatprep.mubr.f32.mxu0 0.0
        %775 = vmatmul.mubr.f32.gmra.mrb[0].mxu0 %v699
        %v776 = vpop.f32.mrb[0].mxu0
        %v777 = vadd.f32 0.0, %v776
        %v778 = vpop.f32.mrb[0].mxu0
        %v779 = vadd.f32 0.0, %v778
        %780 = vmatprep.mubr.f32.mxu0 0.0
        %781 = vmatmul.mubr.f32.gmra.mrb[0].mxu0 %v702
        %v782 = vpop.f32.mrb[0].mxu0
        %v783 = vadd.f32 0.0, %v782
        %v784 = vpop.f32.mrb[0].mxu0
        %v785 = vadd.f32 0.0, %v784
        %786 = vmatprep.mubr.f32.mxu0 0.0
        %787 = vmatmul.mubr.f32.gmra.mrb[0].mxu0 %v705
        %v788 = vpop.f32.mrb[0].mxu0
        %v789 = vadd.f32 0.0, %v788
        %v790 = vpop.f32.mrb[0].mxu0
        %v791 = vadd.f32 0.0, %v790
        %792 = vmatprep.mubr.f32.mxu0 0.0
        %793 = vmatmul.mubr.f32.gmra.mrb[0].mxu0 %v708
        %v794 = vpop.f32.mrb[0].mxu0
        %v795 = vadd.f32 0.0, %v794
        %v796 = vpop.f32.mrb[0].mxu0
        %v797 = vadd.f32 0.0, %v796
        %798 = vdwg.mxu0
        %v799 = vadd.f32 %v664, %v777
        %v800 = vadd.f32 %v665, %v779
        %v801 = vadd.f32 %v666, %v783
        %v802 = vadd.f32 %v667, %v785
        %v803 = vadd.f32 %v668, %v789
        %v804 = vadd.f32 %v669, %v791
        %v805 = vadd.f32 %v670, %v795
        %v806 = vadd.f32 %v671, %v797
        %s807 = scalar_lea.vmem %s6, 8
        %v808 = vld [vmem:[%s807] sm:$0x3]
        %v810 = vlaneseq
        %v811 = vshrl.u32 %v810, 7
        %v812 = vsub.s32 0, %v811
        %v813 = vrot.slane %v808, %v812
        %v814 = vlaneseq
        %v815 = vshrl.u32 %v814, 7
        %v816 = vsub.s32 1, %v815
        %v817 = vrot.slane %v808, %v816
        %v820 = vmul.f32 %v279, %v813
        %v821 = vmul.f32 %v280, %v817
        %v822 = vld [vmem:[%s1 + $0x80] sm:$0xff]
        %v823 = vld [vmem:[%s1 + $0x88] sm:$0xff]
        %v824 = vld [vmem:[%s1 + $0x90] sm:$0xff]
        %v825 = vld [vmem:[%s1 + $0x98] sm:$0xff]
        %v827 = vsel %vm334, %v822, 0
        %v830 = vsel %vm334, %v823, 0
        %v833 = vsel %vm334, %v824, 0
        %v836 = vsel %vm334, %v825, 0
        %838 = vmatprep.subr.mxu0 %v821
        %839 = vmatpush1.msra.mxu0 %v820
        %840 = vmatprep.subr.mxu0 0.0
        %841 = vmatpush1.msra.mxu0 0.0
        %842 = vmatprep.subr.mxu0 0.0
        %843 = vmatpush1.msra.mxu0 0.0
        %844 = vmatprep.subr.mxu0 0.0
        %845 = vmatpush1.msra.mxu0 0.0
        %846 = vmatprep.subr.mxu0 0.0
        %847 = vmatpush1.msra.mxu0 0.0
        %848 = vmatprep.subr.mxu0 0.0
        %849 = vmatpush1.msra.mxu0 0.0
        %850 = vmatprep.subr.mxu0 0.0
        %851 = vmatpush1.msra.mxu0 0.0
        %852 = vmatprep.subr.mxu0 0.0
        %853 = vmatpush1.msra.mxu0 0.0
        %854 = vmatprep.subr.mxu0 0.0
        %855 = vmatpush1.msra.mxu0 0.0
        %856 = vmatprep.subr.mxu0 0.0
        %857 = vmatpush1.msra.mxu0 0.0
        %858 = vmatprep.subr.mxu0 0.0
        %859 = vmatpush1.msra.mxu0 0.0
        %860 = vmatprep.subr.mxu0 0.0
        %861 = vmatpush1.msra.mxu0 0.0
        %862 = vmatprep.subr.mxu0 0.0
        %863 = vmatpush1.msra.mxu0 0.0
        %864 = vmatprep.subr.mxu0 0.0
        %865 = vmatpush1.msra.mxu0 0.0
        %866 = vmatprep.subr.mxu0 0.0
        %867 = vmatpush1.msra.mxu0 0.0
        %868 = vmatprep.subr.mxu0 0.0
        %869 = vmatpush1.msra.mxu0 0.0
        %870 = vmatprep.subr.mxu0 0.0
        %871 = vmatpush1.msra.mxu0 0.0
        %872 = vmatprep.subr.mxu0 0.0
        %873 = vmatpush1.msra.mxu0 0.0
        %874 = vmatprep.subr.mxu0 0.0
        %875 = vmatpush1.msra.mxu0 0.0
        %876 = vmatprep.subr.mxu0 0.0
        %877 = vmatpush1.msra.mxu0 0.0
        %878 = vmatprep.subr.mxu0 0.0
        %879 = vmatpush1.msra.mxu0 0.0
        %880 = vmatprep.subr.mxu0 0.0
        %881 = vmatpush1.msra.mxu0 0.0
        %882 = vmatprep.subr.mxu0 0.0
        %883 = vmatpush1.msra.mxu0 0.0
        %884 = vmatprep.subr.mxu0 0.0
        %885 = vmatpush1.msra.mxu0 0.0
        %886 = vmatprep.subr.mxu0 0.0
        %887 = vmatpush1.msra.mxu0 0.0
        %888 = vmatprep.subr.mxu0 0.0
        %889 = vmatpush1.msra.mxu0 0.0
        %890 = vmatprep.subr.mxu0 0.0
        %891 = vmatpush1.msra.mxu0 0.0
        %892 = vmatprep.subr.mxu0 0.0
        %893 = vmatpush1.msra.mxu0 0.0
        %894 = vmatprep.subr.mxu0 0.0
        %895 = vmatpush1.msra.mxu0 0.0
        %896 = vmatprep.subr.mxu0 0.0
        %897 = vmatpush1.msra.mxu0 0.0
        %898 = vmatprep.subr.mxu0 0.0
        %899 = vmatpush1.msra.mxu0 0.0
        %900 = vmatprep.subr.mxu0 0.0
        %901 = vmatpush1.msra.mxu0 0.0
        %902 = vmatprep.mubr.f32.mxu0 0.0
        %903 = vmatmul.mubr.f32.gmra.mrb[0].mxu0 %v827
        %v904 = vpop.f32.mrb[0].mxu0
        %v905 = vadd.f32 0.0, %v904
        %v906 = vpop.f32.mrb[0].mxu0
        %v907 = vadd.f32 0.0, %v906
        %908 = vmatprep.mubr.f32.mxu0 0.0
        %909 = vmatmul.mubr.f32.gmra.mrb[0].mxu0 %v830
        %v910 = vpop.f32.mrb[0].mxu0
        %v911 = vadd.f32 0.0, %v910
        %v912 = vpop.f32.mrb[0].mxu0
        %v913 = vadd.f32 0.0, %v912
        %914 = vmatprep.mubr.f32.mxu0 0.0
        %915 = vmatmul.mubr.f32.gmra.mrb[0].mxu0 %v833
        %v916 = vpop.f32.mrb[0].mxu0
        %v917 = vadd.f32 0.0, %v916
        %v918 = vpop.f32.mrb[0].mxu0
        %v919 = vadd.f32 0.0, %v918
        %920 = vmatprep.mubr.f32.mxu0 0.0
        %921 = vmatmul.mubr.f32.gmra.mrb[0].mxu0 %v836
        %v922 = vpop.f32.mrb[0].mxu0
        %v923 = vadd.f32 0.0, %v922
        %v924 = vpop.f32.mrb[0].mxu0
        %v925 = vadd.f32 0.0, %v924
        %926 = vdwg.mxu0
        %v927 = vadd.f32 %v799, %v905
        %v928 = vadd.f32 %v800, %v907
        %v929 = vadd.f32 %v801, %v911
        %v930 = vadd.f32 %v802, %v913
        %v931 = vadd.f32 %v803, %v917
        %v932 = vadd.f32 %v804, %v919
        %v933 = vadd.f32 %v805, %v923
        %v934 = vadd.f32 %v806, %v925
        %935 = vrot.lane.b32.xlu0 %v279, 127
        %v936 = vpop.permute.xlu0 %935
        %937 = vrot.lane.b32.xlu0 %v280, 127
        %v938 = vpop.permute.xlu0 %937
        %vm939 = vcmp.lt.s32.totalorder %v286, 127
        %v940 = vsel %vm939, %v936, %v938
        %v941 = vsel %vm939, %v938, %v936
        %s942 = scalar_lea.vmem %s6, 10
        %v943 = vld [vmem:[%s942] sm:$0x3]
        %v945 = vlaneseq
        %v946 = vshrl.u32 %v945, 7
        %v947 = vsub.s32 0, %v946
        %v948 = vrot.slane %v943, %v947
        %v949 = vlaneseq
        %v950 = vshrl.u32 %v949, 7
        %v951 = vsub.s32 1, %v950
        %v952 = vrot.slane %v943, %v951
        %v955 = vmul.f32 %v940, %v948
        %v956 = vmul.f32 %v941, %v952
        %v957 = vld [vmem:[%s1 + $0xa0] sm:$0xff]
        %v958 = vld [vmem:[%s1 + $0xa8] sm:$0xff]
        %v959 = vld [vmem:[%s1 + $0xb0] sm:$0xff]
        %v960 = vld [vmem:[%s1 + $0xb8] sm:$0xff]
        %v962 = vsel %vm334, %v957, 0
        %v965 = vsel %vm334, %v958, 0
        %v968 = vsel %vm334, %v959, 0
        %v971 = vsel %vm334, %v960, 0
        %973 = vmatprep.subr.mxu0 %v956
        %974 = vmatpush1.msra.mxu0 %v955
        %975 = vmatprep.subr.mxu0 0.0
        %976 = vmatpush1.msra.mxu0 0.0
        %977 = vmatprep.subr.mxu0 0.0
        %978 = vmatpush1.msra.mxu0 0.0
        %979 = vmatprep.subr.mxu0 0.0
        %980 = vmatpush1.msra.mxu0 0.0
        %981 = vmatprep.subr.mxu0 0.0
        %982 = vmatpush1.msra.mxu0 0.0
        %983 = vmatprep.subr.mxu0 0.0
        %984 = vmatpush1.msra.mxu0 0.0
        %985 = vmatprep.subr.mxu0 0.0
        %986 = vmatpush1.msra.mxu0 0.0
        %987 = vmatprep.subr.mxu0 0.0
        %988 = vmatpush1.msra.mxu0 0.0
        %989 = vmatprep.subr.mxu0 0.0
        %990 = vmatpush1.msra.mxu0 0.0
        %991 = vmatprep.subr.mxu0 0.0
        %992 = vmatpush1.msra.mxu0 0.0
        %993 = vmatprep.subr.mxu0 0.0
        %994 = vmatpush1.msra.mxu0 0.0
        %995 = vmatprep.subr.mxu0 0.0
        %996 = vmatpush1.msra.mxu0 0.0
        %997 = vmatprep.subr.mxu0 0.0
        %998 = vmatpush1.msra.mxu0 0.0
        %999 = vmatprep.subr.mxu0 0.0
        %1000 = vmatpush1.msra.mxu0 0.0
        %1001 = vmatprep.subr.mxu0 0.0
        %1002 = vmatpush1.msra.mxu0 0.0
        %1003 = vmatprep.subr.mxu0 0.0
        %1004 = vmatpush1.msra.mxu0 0.0
        %1005 = vmatprep.subr.mxu0 0.0
        %1006 = vmatpush1.msra.mxu0 0.0
        %1007 = vmatprep.subr.mxu0 0.0
        %1008 = vmatpush1.msra.mxu0 0.0
        %1009 = vmatprep.subr.mxu0 0.0
        %1010 = vmatpush1.msra.mxu0 0.0
        %1011 = vmatprep.subr.mxu0 0.0
        %1012 = vmatpush1.msra.mxu0 0.0
        %1013 = vmatprep.subr.mxu0 0.0
        %1014 = vmatpush1.msra.mxu0 0.0
        %1015 = vmatprep.subr.mxu0 0.0
        %1016 = vmatpush1.msra.mxu0 0.0
        %1017 = vmatprep.subr.mxu0 0.0
        %1018 = vmatpush1.msra.mxu0 0.0
        %1019 = vmatprep.subr.mxu0 0.0
        %1020 = vmatpush1.msra.mxu0 0.0
        %1021 = vmatprep.subr.mxu0 0.0
        %1022 = vmatpush1.msra.mxu0 0.0
        %1023 = vmatprep.subr.mxu0 0.0
        %1024 = vmatpush1.msra.mxu0 0.0
        %1025 = vmatprep.subr.mxu0 0.0
        %1026 = vmatpush1.msra.mxu0 0.0
        %1027 = vmatprep.subr.mxu0 0.0
        %1028 = vmatpush1.msra.mxu0 0.0
        %1029 = vmatprep.subr.mxu0 0.0
        %1030 = vmatpush1.msra.mxu0 0.0
        %1031 = vmatprep.subr.mxu0 0.0
        %1032 = vmatpush1.msra.mxu0 0.0
        %1033 = vmatprep.subr.mxu0 0.0
        %1034 = vmatpush1.msra.mxu0 0.0
        %1035 = vmatprep.subr.mxu0 0.0
        %1036 = vmatpush1.msra.mxu0 0.0
        %1037 = vmatprep.mubr.f32.mxu0 0.0
        %1038 = vmatmul.mubr.f32.gmra.mrb[0].mxu0 %v962
        %v1039 = vpop.f32.mrb[0].mxu0
        %v1040 = vadd.f32 0.0, %v1039
        %v1041 = vpop.f32.mrb[0].mxu0
        %v1042 = vadd.f32 0.0, %v1041
        %1043 = vmatprep.mubr.f32.mxu0 0.0
        %1044 = vmatmul.mubr.f32.gmra.mrb[0].mxu0 %v965
        %v1045 = vpop.f32.mrb[0].mxu0
        %v1046 = vadd.f32 0.0, %v1045
        %v1047 = vpop.f32.mrb[0].mxu0
        %v1048 = vadd.f32 0.0, %v1047
        %1049 = vmatprep.mubr.f32.mxu0 0.0
        %1050 = vmatmul.mubr.f32.gmra.mrb[0].mxu0 %v968
        %v1051 = vpop.f32.mrb[0].mxu0
        %v1052 = vadd.f32 0.0, %v1051
        %v1053 = vpop.f32.mrb[0].mxu0
        %v1054 = vadd.f32 0.0, %v1053
        %1055 = vmatprep.mubr.f32.mxu0 0.0
        %1056 = vmatmul.mubr.f32.gmra.mrb[0].mxu0 %v971
        %v1057 = vpop.f32.mrb[0].mxu0
        %v1058 = vadd.f32 0.0, %v1057
        %v1059 = vpop.f32.mrb[0].mxu0
        %v1060 = vadd.f32 0.0, %v1059
        %1061 = vdwg.mxu0
        %v1062 = vadd.f32 %v927, %v1040
        %v1063 = vadd.f32 %v928, %v1042
        %v1064 = vadd.f32 %v929, %v1046
        %v1065 = vadd.f32 %v930, %v1048
        %v1066 = vadd.f32 %v931, %v1052
        %v1067 = vadd.f32 %v932, %v1054
        %v1068 = vadd.f32 %v933, %v1058
        %v1069 = vadd.f32 %v934, %v1060
        %1070 = vrot.lane.b32.xlu0 %v279, 113
        %v1071 = vpop.permute.xlu0 %1070
        %1072 = vrot.lane.b32.xlu0 %v280, 113
        %v1073 = vpop.permute.xlu0 %1072
        %vm1074 = vcmp.lt.s32.totalorder %v286, 113
        %v1075 = vsel %vm1074, %v1071, %v1073
        %v1076 = vsel %vm1074, %v1073, %v1071
        %s1077 = scalar_lea.vmem %s6, 12
        %v1078 = vld [vmem:[%s1077] sm:$0x3]
        %v1080 = vlaneseq
        %v1081 = vshrl.u32 %v1080, 7
        %v1082 = vsub.s32 0, %v1081
        %v1083 = vrot.slane %v1078, %v1082
        %v1084 = vlaneseq
        %v1085 = vshrl.u32 %v1084, 7
        %v1086 = vsub.s32 1, %v1085
        %v1087 = vrot.slane %v1078, %v1086
        %v1090 = vmul.f32 %v1075, %v1083
        %v1091 = vmul.f32 %v1076, %v1087
        %v1092 = vld [vmem:[%s1 + $0xc0] sm:$0xff]
        %v1093 = vld [vmem:[%s1 + $0xc8] sm:$0xff]
        %v1094 = vld [vmem:[%s1 + $0xd0] sm:$0xff]
        %v1095 = vld [vmem:[%s1 + $0xd8] sm:$0xff]
        %v1097 = vsel %vm334, %v1092, 0
        %v1100 = vsel %vm334, %v1093, 0
        %v1103 = vsel %vm334, %v1094, 0
        %v1106 = vsel %vm334, %v1095, 0
        %1108 = vmatprep.subr.mxu0 %v1091
        %1109 = vmatpush1.msra.mxu0 %v1090
        %1110 = vmatprep.subr.mxu0 0.0
        %1111 = vmatpush1.msra.mxu0 0.0
        %1112 = vmatprep.subr.mxu0 0.0
        %1113 = vmatpush1.msra.mxu0 0.0
        %1114 = vmatprep.subr.mxu0 0.0
        %1115 = vmatpush1.msra.mxu0 0.0
        %1116 = vmatprep.subr.mxu0 0.0
        %1117 = vmatpush1.msra.mxu0 0.0
        %1118 = vmatprep.subr.mxu0 0.0
        %1119 = vmatpush1.msra.mxu0 0.0
        %1120 = vmatprep.subr.mxu0 0.0
        %1121 = vmatpush1.msra.mxu0 0.0
        %1122 = vmatprep.subr.mxu0 0.0
        %1123 = vmatpush1.msra.mxu0 0.0
        %1124 = vmatprep.subr.mxu0 0.0
        %1125 = vmatpush1.msra.mxu0 0.0
        %1126 = vmatprep.subr.mxu0 0.0
        %1127 = vmatpush1.msra.mxu0 0.0
        %1128 = vmatprep.subr.mxu0 0.0
        %1129 = vmatpush1.msra.mxu0 0.0
        %1130 = vmatprep.subr.mxu0 0.0
        %1131 = vmatpush1.msra.mxu0 0.0
        %1132 = vmatprep.subr.mxu0 0.0
        %1133 = vmatpush1.msra.mxu0 0.0
        %1134 = vmatprep.subr.mxu0 0.0
        %1135 = vmatpush1.msra.mxu0 0.0
        %1136 = vmatprep.subr.mxu0 0.0
        %1137 = vmatpush1.msra.mxu0 0.0
        %1138 = vmatprep.subr.mxu0 0.0
        %1139 = vmatpush1.msra.mxu0 0.0
        %1140 = vmatprep.subr.mxu0 0.0
        %1141 = vmatpush1.msra.mxu0 0.0
        %1142 = vmatprep.subr.mxu0 0.0
        %1143 = vmatpush1.msra.mxu0 0.0
        %1144 = vmatprep.subr.mxu0 0.0
        %1145 = vmatpush1.msra.mxu0 0.0
        %1146 = vmatprep.subr.mxu0 0.0
        %1147 = vmatpush1.msra.mxu0 0.0
        %1148 = vmatprep.subr.mxu0 0.0
        %1149 = vmatpush1.msra.mxu0 0.0
        %1150 = vmatprep.subr.mxu0 0.0
        %1151 = vmatpush1.msra.mxu0 0.0
        %1152 = vmatprep.subr.mxu0 0.0
        %1153 = vmatpush1.msra.mxu0 0.0
        %1154 = vmatprep.subr.mxu0 0.0
        %1155 = vmatpush1.msra.mxu0 0.0
        %1156 = vmatprep.subr.mxu0 0.0
        %1157 = vmatpush1.msra.mxu0 0.0
        %1158 = vmatprep.subr.mxu0 0.0
        %1159 = vmatpush1.msra.mxu0 0.0
        %1160 = vmatprep.subr.mxu0 0.0
        %1161 = vmatpush1.msra.mxu0 0.0
        %1162 = vmatprep.subr.mxu0 0.0
        %1163 = vmatpush1.msra.mxu0 0.0
        %1164 = vmatprep.subr.mxu0 0.0
        %1165 = vmatpush1.msra.mxu0 0.0
        %1166 = vmatprep.subr.mxu0 0.0
        %1167 = vmatpush1.msra.mxu0 0.0
        %1168 = vmatprep.subr.mxu0 0.0
        %1169 = vmatpush1.msra.mxu0 0.0
        %1170 = vmatprep.subr.mxu0 0.0
        %1171 = vmatpush1.msra.mxu0 0.0
        %1172 = vmatprep.mubr.f32.mxu0 0.0
        %1173 = vmatmul.mubr.f32.gmra.mrb[0].mxu0 %v1097
        %v1174 = vpop.f32.mrb[0].mxu0
        %v1175 = vadd.f32 0.0, %v1174
        %v1176 = vpop.f32.mrb[0].mxu0
        %v1177 = vadd.f32 0.0, %v1176
        %1178 = vmatprep.mubr.f32.mxu0 0.0
        %1179 = vmatmul.mubr.f32.gmra.mrb[0].mxu0 %v1100
        %v1180 = vpop.f32.mrb[0].mxu0
        %v1181 = vadd.f32 0.0, %v1180
        %v1182 = vpop.f32.mrb[0].mxu0
        %v1183 = vadd.f32 0.0, %v1182
        %1184 = vmatprep.mubr.f32.mxu0 0.0
        %1185 = vmatmul.mubr.f32.gmra.mrb[0].mxu0 %v1103
        %v1186 = vpop.f32.mrb[0].mxu0
        %v1187 = vadd.f32 0.0, %v1186
        %v1188 = vpop.f32.mrb[0].mxu0
        %v1189 = vadd.f32 0.0, %v1188
        %1190 = vmatprep.mubr.f32.mxu0 0.0
        %1191 = vmatmul.mubr.f32.gmra.mrb[0].mxu0 %v1106
        %v1192 = vpop.f32.mrb[0].mxu0
        %v1193 = vadd.f32 0.0, %v1192
        %v1194 = vpop.f32.mrb[0].mxu0
        %v1195 = vadd.f32 0.0, %v1194
        %1196 = vdwg.mxu0
        %v1197 = vadd.f32 %v1062, %v1175
        %v1198 = vadd.f32 %v1063, %v1177
        %v1199 = vadd.f32 %v1064, %v1181
        %v1200 = vadd.f32 %v1065, %v1183
        %v1201 = vadd.f32 %v1066, %v1187
        %v1202 = vadd.f32 %v1067, %v1189
        %v1203 = vadd.f32 %v1068, %v1193
        %v1204 = vadd.f32 %v1069, %v1195
        %1205 = vrot.lane.b32.xlu0 %v279, 112
        %v1206 = vpop.permute.xlu0 %1205
        %1207 = vrot.lane.b32.xlu0 %v280, 112
        %v1208 = vpop.permute.xlu0 %1207
        %vm1209 = vcmp.lt.s32.totalorder %v286, 112
        %v1210 = vsel %vm1209, %v1206, %v1208
        %v1211 = vsel %vm1209, %v1208, %v1206
        %s1212 = scalar_lea.vmem %s6, 14
        %v1213 = vld [vmem:[%s1212] sm:$0x3]
        %v1215 = vlaneseq
        %v1216 = vshrl.u32 %v1215, 7
        %v1217 = vsub.s32 0, %v1216
        %v1218 = vrot.slane %v1213, %v1217
        %v1219 = vlaneseq
        %v1220 = vshrl.u32 %v1219, 7
        %v1221 = vsub.s32 1, %v1220
        %v1222 = vrot.slane %v1213, %v1221
        %v1225 = vmul.f32 %v1210, %v1218
        %v1226 = vmul.f32 %v1211, %v1222
        %v1227 = vld [vmem:[%s1 + $0xe0] sm:$0xff]
        %v1228 = vld [vmem:[%s1 + $0xe8] sm:$0xff]
        %v1229 = vld [vmem:[%s1 + $0xf0] sm:$0xff]
        %v1230 = vld [vmem:[%s1 + $0xf8] sm:$0xff]
        %v1232 = vsel %vm334, %v1227, 0
        %v1235 = vsel %vm334, %v1228, 0
        %v1238 = vsel %vm334, %v1229, 0
        %v1241 = vsel %vm334, %v1230, 0
        %1243 = vmatprep.subr.mxu0 %v1226
        %1244 = vmatpush1.msra.mxu0 %v1225
        %1245 = vmatprep.subr.mxu0 0.0
        %1246 = vmatpush1.msra.mxu0 0.0
        %1247 = vmatprep.subr.mxu0 0.0
        %1248 = vmatpush1.msra.mxu0 0.0
        %1249 = vmatprep.subr.mxu0 0.0
        %1250 = vmatpush1.msra.mxu0 0.0
        %1251 = vmatprep.subr.mxu0 0.0
        %1252 = vmatpush1.msra.mxu0 0.0
        %1253 = vmatprep.subr.mxu0 0.0
        %1254 = vmatpush1.msra.mxu0 0.0
        %1255 = vmatprep.subr.mxu0 0.0
        %1256 = vmatpush1.msra.mxu0 0.0
        %1257 = vmatprep.subr.mxu0 0.0
        %1258 = vmatpush1.msra.mxu0 0.0
        %1259 = vmatprep.subr.mxu0 0.0
        %1260 = vmatpush1.msra.mxu0 0.0
        %1261 = vmatprep.subr.mxu0 0.0
        %1262 = vmatpush1.msra.mxu0 0.0
        %1263 = vmatprep.subr.mxu0 0.0
        %1264 = vmatpush1.msra.mxu0 0.0
        %1265 = vmatprep.subr.mxu0 0.0
        %1266 = vmatpush1.msra.mxu0 0.0
        %1267 = vmatprep.subr.mxu0 0.0
        %1268 = vmatpush1.msra.mxu0 0.0
        %1269 = vmatprep.subr.mxu0 0.0
        %1270 = vmatpush1.msra.mxu0 0.0
        %1271 = vmatprep.subr.mxu0 0.0
        %1272 = vmatpush1.msra.mxu0 0.0
        %1273 = vmatprep.subr.mxu0 0.0
        %1274 = vmatpush1.msra.mxu0 0.0
        %1275 = vmatprep.subr.mxu0 0.0
        %1276 = vmatpush1.msra.mxu0 0.0
        %1277 = vmatprep.subr.mxu0 0.0
        %1278 = vmatpush1.msra.mxu0 0.0
        %1279 = vmatprep.subr.mxu0 0.0
        %1280 = vmatpush1.msra.mxu0 0.0
        %1281 = vmatprep.subr.mxu0 0.0
        %1282 = vmatpush1.msra.mxu0 0.0
        %1283 = vmatprep.subr.mxu0 0.0
        %1284 = vmatpush1.msra.mxu0 0.0
        %1285 = vmatprep.subr.mxu0 0.0
        %1286 = vmatpush1.msra.mxu0 0.0
        %1287 = vmatprep.subr.mxu0 0.0
        %1288 = vmatpush1.msra.mxu0 0.0
        %1289 = vmatprep.subr.mxu0 0.0
        %1290 = vmatpush1.msra.mxu0 0.0
        %1291 = vmatprep.subr.mxu0 0.0
        %1292 = vmatpush1.msra.mxu0 0.0
        %1293 = vmatprep.subr.mxu0 0.0
        %1294 = vmatpush1.msra.mxu0 0.0
        %1295 = vmatprep.subr.mxu0 0.0
        %1296 = vmatpush1.msra.mxu0 0.0
        %1297 = vmatprep.subr.mxu0 0.0
        %1298 = vmatpush1.msra.mxu0 0.0
        %1299 = vmatprep.subr.mxu0 0.0
        %1300 = vmatpush1.msra.mxu0 0.0
        %1301 = vmatprep.subr.mxu0 0.0
        %1302 = vmatpush1.msra.mxu0 0.0
        %1303 = vmatprep.subr.mxu0 0.0
        %1304 = vmatpush1.msra.mxu0 0.0
        %1305 = vmatprep.subr.mxu0 0.0
        %1306 = vmatpush1.msra.mxu0 0.0
        %1307 = vmatprep.mubr.f32.mxu0 0.0
        %1308 = vmatmul.mubr.f32.gmra.mrb[0].mxu0 %v1232
        %v1309 = vpop.f32.mrb[0].mxu0
        %v1310 = vadd.f32 0.0, %v1309
        %v1311 = vpop.f32.mrb[0].mxu0
        %v1312 = vadd.f32 0.0, %v1311
        %1313 = vmatprep.mubr.f32.mxu0 0.0
        %1314 = vmatmul.mubr.f32.gmra.mrb[0].mxu0 %v1235
        %v1315 = vpop.f32.mrb[0].mxu0
        %v1316 = vadd.f32 0.0, %v1315
        %v1317 = vpop.f32.mrb[0].mxu0
        %v1318 = vadd.f32 0.0, %v1317
        %1319 = vmatprep.mubr.f32.mxu0 0.0
        %1320 = vmatmul.mubr.f32.gmra.mrb[0].mxu0 %v1238
        %v1321 = vpop.f32.mrb[0].mxu0
        %v1322 = vadd.f32 0.0, %v1321
        %v1323 = vpop.f32.mrb[0].mxu0
        %v1324 = vadd.f32 0.0, %v1323
        %1325 = vmatprep.mubr.f32.mxu0 0.0
        %1326 = vmatmul.mubr.f32.gmra.mrb[0].mxu0 %v1241
        %v1327 = vpop.f32.mrb[0].mxu0
        %v1328 = vadd.f32 0.0, %v1327
        %v1329 = vpop.f32.mrb[0].mxu0
        %v1330 = vadd.f32 0.0, %v1329
        %1331 = vdwg.mxu0
        %v1332 = vadd.f32 %v1197, %v1310
        %v1333 = vadd.f32 %v1198, %v1312
        %v1334 = vadd.f32 %v1199, %v1316
        %v1335 = vadd.f32 %v1200, %v1318
        %v1336 = vadd.f32 %v1201, %v1322
        %v1337 = vadd.f32 %v1202, %v1324
        %v1338 = vadd.f32 %v1203, %v1328
        %v1339 = vadd.f32 %v1204, %v1330
        %1340 = vrot.lane.b32.xlu0 %v279, 111
        %v1341 = vpop.permute.xlu0 %1340
        %1342 = vrot.lane.b32.xlu0 %v280, 111
        %v1343 = vpop.permute.xlu0 %1342
        %vm1344 = vcmp.lt.s32.totalorder %v286, 111
        %v1345 = vsel %vm1344, %v1341, %v1343
        %v1346 = vsel %vm1344, %v1343, %v1341
        %s1347 = scalar_lea.vmem %s6, 16
        %v1348 = vld [vmem:[%s1347] sm:$0x3]
        %v1350 = vlaneseq
        %v1351 = vshrl.u32 %v1350, 7
        %v1352 = vsub.s32 0, %v1351
        %v1353 = vrot.slane %v1348, %v1352
        %v1354 = vlaneseq
        %v1355 = vshrl.u32 %v1354, 7
        %v1356 = vsub.s32 1, %v1355
        %v1357 = vrot.slane %v1348, %v1356
        %v1360 = vmul.f32 %v1345, %v1353
        %v1361 = vmul.f32 %v1346, %v1357
        %v1362 = vld [vmem:[%s1 + $0x100] sm:$0xff]
        %v1363 = vld [vmem:[%s1 + $0x108] sm:$0xff]
        %v1364 = vld [vmem:[%s1 + $0x110] sm:$0xff]
        %v1365 = vld [vmem:[%s1 + $0x118] sm:$0xff]
        %v1367 = vsel %vm334, %v1362, 0
        %v1370 = vsel %vm334, %v1363, 0
        %v1373 = vsel %vm334, %v1364, 0
        %v1376 = vsel %vm334, %v1365, 0
        %1378 = vmatprep.subr.mxu0 %v1361
        %1379 = vmatpush1.msra.mxu0 %v1360
        %1380 = vmatprep.subr.mxu0 0.0
        %1381 = vmatpush1.msra.mxu0 0.0
        %1382 = vmatprep.subr.mxu0 0.0
        %1383 = vmatpush1.msra.mxu0 0.0
        %1384 = vmatprep.subr.mxu0 0.0
        %1385 = vmatpush1.msra.mxu0 0.0
        %1386 = vmatprep.subr.mxu0 0.0
        %1387 = vmatpush1.msra.mxu0 0.0
        %1388 = vmatprep.subr.mxu0 0.0
        %1389 = vmatpush1.msra.mxu0 0.0
        %1390 = vmatprep.subr.mxu0 0.0
        %1391 = vmatpush1.msra.mxu0 0.0
        %1392 = vmatprep.subr.mxu0 0.0
        %1393 = vmatpush1.msra.mxu0 0.0
        %1394 = vmatprep.subr.mxu0 0.0
        %1395 = vmatpush1.msra.mxu0 0.0
        %1396 = vmatprep.subr.mxu0 0.0
        %1397 = vmatpush1.msra.mxu0 0.0
        %1398 = vmatprep.subr.mxu0 0.0
        %1399 = vmatpush1.msra.mxu0 0.0
        %1400 = vmatprep.subr.mxu0 0.0
        %1401 = vmatpush1.msra.mxu0 0.0
        %1402 = vmatprep.subr.mxu0 0.0
        %1403 = vmatpush1.msra.mxu0 0.0
        %1404 = vmatprep.subr.mxu0 0.0
        %1405 = vmatpush1.msra.mxu0 0.0
        %1406 = vmatprep.subr.mxu0 0.0
        %1407 = vmatpush1.msra.mxu0 0.0
        %1408 = vmatprep.subr.mxu0 0.0
        %1409 = vmatpush1.msra.mxu0 0.0
        %1410 = vmatprep.subr.mxu0 0.0
        %1411 = vmatpush1.msra.mxu0 0.0
        %1412 = vmatprep.subr.mxu0 0.0
        %1413 = vmatpush1.msra.mxu0 0.0
        %1414 = vmatprep.subr.mxu0 0.0
        %1415 = vmatpush1.msra.mxu0 0.0
        %1416 = vmatprep.subr.mxu0 0.0
        %1417 = vmatpush1.msra.mxu0 0.0
        %1418 = vmatprep.subr.mxu0 0.0
        %1419 = vmatpush1.msra.mxu0 0.0
        %1420 = vmatprep.subr.mxu0 0.0
        %1421 = vmatpush1.msra.mxu0 0.0
        %1422 = vmatprep.subr.mxu0 0.0
        %1423 = vmatpush1.msra.mxu0 0.0
        %1424 = vmatprep.subr.mxu0 0.0
        %1425 = vmatpush1.msra.mxu0 0.0
        %1426 = vmatprep.subr.mxu0 0.0
        %1427 = vmatpush1.msra.mxu0 0.0
        %1428 = vmatprep.subr.mxu0 0.0
        %1429 = vmatpush1.msra.mxu0 0.0
        %1430 = vmatprep.subr.mxu0 0.0
        %1431 = vmatpush1.msra.mxu0 0.0
        %1432 = vmatprep.subr.mxu0 0.0
        %1433 = vmatpush1.msra.mxu0 0.0
        %1434 = vmatprep.subr.mxu0 0.0
        %1435 = vmatpush1.msra.mxu0 0.0
        %1436 = vmatprep.subr.mxu0 0.0
        %1437 = vmatpush1.msra.mxu0 0.0
        %1438 = vmatprep.subr.mxu0 0.0
        %1439 = vmatpush1.msra.mxu0 0.0
        %1440 = vmatprep.subr.mxu0 0.0
        %1441 = vmatpush1.msra.mxu0 0.0
        %1442 = vmatprep.mubr.f32.mxu0 0.0
        %1443 = vmatmul.mubr.f32.gmra.mrb[0].mxu0 %v1367
        %v1444 = vpop.f32.mrb[0].mxu0
        %v1445 = vadd.f32 0.0, %v1444
        %v1446 = vpop.f32.mrb[0].mxu0
        %v1447 = vadd.f32 0.0, %v1446
        %1448 = vmatprep.mubr.f32.mxu0 0.0
        %1449 = vmatmul.mubr.f32.gmra.mrb[0].mxu0 %v1370
        %v1450 = vpop.f32.mrb[0].mxu0
        %v1451 = vadd.f32 0.0, %v1450
        %v1452 = vpop.f32.mrb[0].mxu0
        %v1453 = vadd.f32 0.0, %v1452
        %1454 = vmatprep.mubr.f32.mxu0 0.0
        %1455 = vmatmul.mubr.f32.gmra.mrb[0].mxu0 %v1373
        %v1456 = vpop.f32.mrb[0].mxu0
        %v1457 = vadd.f32 0.0, %v1456
        %v1458 = vpop.f32.mrb[0].mxu0
        %v1459 = vadd.f32 0.0, %v1458
        %1460 = vmatprep.mubr.f32.mxu0 0.0
        %1461 = vmatmul.mubr.f32.gmra.mrb[0].mxu0 %v1376
        %v1462 = vpop.f32.mrb[0].mxu0
        %v1463 = vadd.f32 0.0, %v1462
        %v1464 = vpop.f32.mrb[0].mxu0
        %v1465 = vadd.f32 0.0, %v1464
        %1466 = vdwg.mxu0
        %v1467 = vadd.f32 %v1332, %v1445
        %v1468 = vadd.f32 %v1333, %v1447
        %v1469 = vadd.f32 %v1334, %v1451
        %v1470 = vadd.f32 %v1335, %v1453
        %v1471 = vadd.f32 %v1336, %v1457
        %v1472 = vadd.f32 %v1337, %v1459
        %v1473 = vadd.f32 %v1338, %v1463
        %v1474 = vadd.f32 %v1339, %v1465
        %v1475 = vld [vmem:[%s2] sm:$0xff]
        %v1476 = vld [vmem:[%s2 + $0x8] sm:$0xff]
        %v1477 = vld [vmem:[%s2 + $0x10] sm:$0xff]
        %v1478 = vld [vmem:[%s2 + $0x18] sm:$0xff]
        %1480 = vset.pattern.permute.xlu0 0
        %1481 = vperm.xlu0 %1480, %v1475
        %v1482 = vpop.permute.xlu0 %1481
        %1485 = vset.pattern.permute.xlu0 0
        %1486 = vperm.xlu0 %1485, %v1476
        %v1487 = vpop.permute.xlu0 %1486
        %1490 = vset.pattern.permute.xlu0 0
        %1491 = vperm.xlu0 %1490, %v1477
        %v1492 = vpop.permute.xlu0 %1491
        %1495 = vset.pattern.permute.xlu0 0
        %1496 = vperm.xlu0 %1495, %v1478
        %v1497 = vpop.permute.xlu0 %1496
        %v1499 = vadd.f32 %v1467, %v1482
        %v1500 = vadd.f32 %v1468, %v1482
        %v1501 = vadd.f32 %v1469, %v1487
        %v1502 = vadd.f32 %v1470, %v1487
        %v1503 = vadd.f32 %v1471, %v1492
        %v1504 = vadd.f32 %v1472, %v1492
        %v1505 = vadd.f32 %v1473, %v1497
        %v1506 = vadd.f32 %v1474, %v1497
        %v1507 = vmax.f32 %v1499, 0.0
        %v1508 = vmax.f32 %v1500, 0.0
        %v1509 = vmax.f32 %v1501, 0.0
        %v1510 = vmax.f32 %v1502, 0.0
        %v1511 = vmax.f32 %v1503, 0.0
        %v1512 = vmax.f32 %v1504, 0.0
        %v1513 = vmax.f32 %v1505, 0.0
        %v1514 = vmax.f32 %v1506, 0.0
        %1515 = vrot.lane.b32.xlu0 %v1507, 17
        %v1516 = vpop.permute.xlu0 %1515
        %1517 = vrot.lane.b32.xlu0 %v1509, 17
        %v1518 = vpop.permute.xlu0 %1517
        %1519 = vrot.lane.b32.xlu0 %v1511, 17
        %v1520 = vpop.permute.xlu0 %1519
        %1521 = vrot.lane.b32.xlu0 %v1513, 17
        %v1522 = vpop.permute.xlu0 %1521
        %1523 = vrot.lane.b32.xlu0 %v1508, 17
        %v1524 = vpop.permute.xlu0 %1523
        %1525 = vrot.lane.b32.xlu0 %v1510, 17
        %v1526 = vpop.permute.xlu0 %1525
        %1527 = vrot.lane.b32.xlu0 %v1512, 17
        %v1528 = vpop.permute.xlu0 %1527
        %1529 = vrot.lane.b32.xlu0 %v1514, 17
        %v1530 = vpop.permute.xlu0 %1529
        %v1531 = vsel %vm287, %v1516, %v1524
        %v1532 = vsel %vm287, %v1518, %v1526
        %v1533 = vsel %vm287, %v1520, %v1528
        %v1534 = vsel %vm287, %v1522, %v1530
        %v1535 = vsel %vm287, %v1524, %v1516
        %v1536 = vsel %vm287, %v1526, %v1518
        %v1537 = vsel %vm287, %v1528, %v1520
        %v1538 = vsel %vm287, %v1530, %v1522
        %v1539 = vmul.f32 %v1535, %v295
        %v1540 = vmul.f32 %v1531, %v299
        %v1541 = vmul.f32 %v1536, %v295
        %v1542 = vmul.f32 %v1532, %v299
        %v1543 = vmul.f32 %v1537, %v295
        %v1544 = vmul.f32 %v1533, %v299
        %v1545 = vmul.f32 %v1538, %v295
        %v1546 = vmul.f32 %v1534, %v299
        %v1547 = vld [vmem:[%s3] sm:$0xff]
        %v1548 = vld [vmem:[%s3 + $0x8] sm:$0xff]
        %v1549 = vld [vmem:[%s3 + $0x10] sm:$0xff]
        %v1550 = vld [vmem:[%s3 + $0x18] sm:$0xff]
        %1551 = vrot.lane.b32.xlu0 %v1507, 16
        %v1552 = vpop.permute.xlu0 %1551
        %1553 = vrot.lane.b32.xlu0 %v1509, 16
        %v1554 = vpop.permute.xlu0 %1553
        %1555 = vrot.lane.b32.xlu0 %v1511, 16
        %v1556 = vpop.permute.xlu0 %1555
        %1557 = vrot.lane.b32.xlu0 %v1513, 16
        %v1558 = vpop.permute.xlu0 %1557
        %1559 = vrot.lane.b32.xlu0 %v1508, 16
        %v1560 = vpop.permute.xlu0 %1559
        %1561 = vrot.lane.b32.xlu0 %v1510, 16
        %v1562 = vpop.permute.xlu0 %1561
        %1563 = vrot.lane.b32.xlu0 %v1512, 16
        %v1564 = vpop.permute.xlu0 %1563
        %1565 = vrot.lane.b32.xlu0 %v1514, 16
        %v1566 = vpop.permute.xlu0 %1565
        %v1567 = vsel %vm312, %v1552, %v1560
        %v1568 = vsel %vm312, %v1554, %v1562
        %v1569 = vsel %vm312, %v1556, %v1564
        %v1570 = vsel %vm312, %v1558, %v1566
        %v1571 = vsel %vm312, %v1560, %v1552
        %v1572 = vsel %vm312, %v1562, %v1554
        %v1573 = vsel %vm312, %v1564, %v1556
        %v1574 = vsel %vm312, %v1566, %v1558
        %v1575 = vmul.f32 %v1571, %v321
        %v1576 = vmul.f32 %v1567, %v325
        %v1577 = vmul.f32 %v1572, %v321
        %v1578 = vmul.f32 %v1568, %v325
        %v1579 = vmul.f32 %v1573, %v321
        %v1580 = vmul.f32 %v1569, %v325
        %v1581 = vmul.f32 %v1574, %v321
        %v1582 = vmul.f32 %v1570, %v325
        %v1583 = vld [vmem:[%s3 + $0x20] sm:$0xff]
        %v1584 = vld [vmem:[%s3 + $0x28] sm:$0xff]
        %v1585 = vld [vmem:[%s3 + $0x30] sm:$0xff]
        %v1586 = vld [vmem:[%s3 + $0x38] sm:$0xff]
        %vm1587 = vcmask 261120
        %v1589 = vsel %vm1587, %v1583, 0
        %v1592 = vsel %vm1587, %v1584, 0
        %v1595 = vsel %vm1587, %v1585, 0
        %v1598 = vsel %vm1587, %v1586, 0
        %1600 = vmatprep.subr.mxu0 %v1576
        %1601 = vmatpush1.msra.mxu0 %v1575
        %1602 = vmatprep.subr.mxu0 %v1578
        %1603 = vmatpush1.msra.mxu0 %v1577
        %1604 = vmatprep.subr.mxu0 %v1580
        %1605 = vmatpush1.msra.mxu0 %v1579
        %1606 = vmatprep.subr.mxu0 %v1582
        %1607 = vmatpush1.msra.mxu0 %v1581
        %1608 = vmatprep.subr.mxu0 0.0
        %1609 = vmatpush1.msra.mxu0 0.0
        %1610 = vmatprep.subr.mxu0 0.0
        %1611 = vmatpush1.msra.mxu0 0.0
        %1612 = vmatprep.subr.mxu0 0.0
        %1613 = vmatpush1.msra.mxu0 0.0
        %1614 = vmatprep.subr.mxu0 0.0
        %1615 = vmatpush1.msra.mxu0 0.0
        %1616 = vmatprep.subr.mxu0 0.0
        %1617 = vmatpush1.msra.mxu0 0.0
        %1618 = vmatprep.subr.mxu0 0.0
        %1619 = vmatpush1.msra.mxu0 0.0
        %1620 = vmatprep.subr.mxu0 0.0
        %1621 = vmatpush1.msra.mxu0 0.0
        %1622 = vmatprep.subr.mxu0 0.0
        %1623 = vmatpush1.msra.mxu0 0.0
        %1624 = vmatprep.subr.mxu0 0.0
        %1625 = vmatpush1.msra.mxu0 0.0
        %1626 = vmatprep.subr.mxu0 0.0
        %1627 = vmatpush1.msra.mxu0 0.0
        %1628 = vmatprep.subr.mxu0 0.0
        %1629 = vmatpush1.msra.mxu0 0.0
        %1630 = vmatprep.subr.mxu0 0.0
        %1631 = vmatpush1.msra.mxu0 0.0
        %1632 = vmatprep.subr.mxu0 0.0
        %1633 = vmatpush1.msra.mxu0 0.0
        %1634 = vmatprep.subr.mxu0 0.0
        %1635 = vmatpush1.msra.mxu0 0.0
        %1636 = vmatprep.subr.mxu0 0.0
        %1637 = vmatpush1.msra.mxu0 0.0
        %1638 = vmatprep.subr.mxu0 0.0
        %1639 = vmatpush1.msra.mxu0 0.0
        %1640 = vmatprep.subr.mxu0 0.0
        %1641 = vmatpush1.msra.mxu0 0.0
        %1642 = vmatprep.subr.mxu0 0.0
        %1643 = vmatpush1.msra.mxu0 0.0
        %1644 = vmatprep.subr.mxu0 0.0
        %1645 = vmatpush1.msra.mxu0 0.0
        %1646 = vmatprep.subr.mxu0 0.0
        %1647 = vmatpush1.msra.mxu0 0.0
        %1648 = vmatprep.subr.mxu0 0.0
        %1649 = vmatpush1.msra.mxu0 0.0
        %1650 = vmatprep.subr.mxu0 0.0
        %1651 = vmatpush1.msra.mxu0 0.0
        %1652 = vmatprep.subr.mxu0 0.0
        %1653 = vmatpush1.msra.mxu0 0.0
        %1654 = vmatprep.subr.mxu0 0.0
        %1655 = vmatpush1.msra.mxu0 0.0
        %1656 = vmatprep.subr.mxu0 0.0
        %1657 = vmatpush1.msra.mxu0 0.0
        %1658 = vmatprep.subr.mxu0 0.0
        %1659 = vmatpush1.msra.mxu0 0.0
        %1660 = vmatprep.subr.mxu0 0.0
        %1661 = vmatpush1.msra.mxu0 0.0
        %1662 = vmatprep.subr.mxu0 0.0
        %1663 = vmatpush1.msra.mxu0 0.0
        %1664 = vmatprep.mubr.f32.mxu0 0.0
        %1665 = vmatmul.mubr.f32.gmra.mrb[0].mxu0 %v1589
        %v1666 = vpop.f32.mrb[0].mxu0
        %v1667 = vadd.f32 0.0, %v1666
        %v1668 = vpop.f32.mrb[0].mxu0
        %v1669 = vadd.f32 0.0, %v1668
        %1670 = vmatprep.mubr.f32.mxu0 0.0
        %1671 = vmatmul.mubr.f32.gmra.mrb[0].mxu0 %v1592
        %v1672 = vpop.f32.mrb[0].mxu0
        %v1673 = vadd.f32 0.0, %v1672
        %v1674 = vpop.f32.mrb[0].mxu0
        %v1675 = vadd.f32 0.0, %v1674
        %1676 = vmatprep.mubr.f32.mxu0 0.0
        %1677 = vmatmul.mubr.f32.gmra.mrb[0].mxu0 %v1595
        %v1678 = vpop.f32.mrb[0].mxu0
        %v1679 = vadd.f32 0.0, %v1678
        %v1680 = vpop.f32.mrb[0].mxu0
        %v1681 = vadd.f32 0.0, %v1680
        %1682 = vmatprep.mubr.f32.mxu0 0.0
        %1683 = vmatmul.mubr.f32.gmra.mrb[0].mxu0 %v1598
        %v1684 = vpop.f32.mrb[0].mxu0
        %v1685 = vadd.f32 0.0, %v1684
        %v1686 = vpop.f32.mrb[0].mxu0
        %v1687 = vadd.f32 0.0, %v1686
        %1688 = vdwg.mxu0
        %v1690 = vsel %vm1587, %v1547, 0
        %v1693 = vsel %vm1587, %v1548, 0
        %v1696 = vsel %vm1587, %v1549, 0
        %v1699 = vsel %vm1587, %v1550, 0
        %1701 = vmatprep.subr.mxu0 %v1540
        %1702 = vmatpush1.msra.mxu0 %v1539
        %1703 = vmatprep.subr.mxu0 %v1542
        %1704 = vmatpush1.msra.mxu0 %v1541
        %1705 = vmatprep.subr.mxu0 %v1544
        %1706 = vmatpush1.msra.mxu0 %v1543
        %1707 = vmatprep.subr.mxu0 %v1546
        %1708 = vmatpush1.msra.mxu0 %v1545
        %1709 = vmatprep.subr.mxu0 0.0
        %1710 = vmatpush1.msra.mxu0 0.0
        %1711 = vmatprep.subr.mxu0 0.0
        %1712 = vmatpush1.msra.mxu0 0.0
        %1713 = vmatprep.subr.mxu0 0.0
        %1714 = vmatpush1.msra.mxu0 0.0
        %1715 = vmatprep.subr.mxu0 0.0
        %1716 = vmatpush1.msra.mxu0 0.0
        %1717 = vmatprep.subr.mxu0 0.0
        %1718 = vmatpush1.msra.mxu0 0.0
        %1719 = vmatprep.subr.mxu0 0.0
        %1720 = vmatpush1.msra.mxu0 0.0
        %1721 = vmatprep.subr.mxu0 0.0
        %1722 = vmatpush1.msra.mxu0 0.0
        %1723 = vmatprep.subr.mxu0 0.0
        %1724 = vmatpush1.msra.mxu0 0.0
        %1725 = vmatprep.subr.mxu0 0.0
        %1726 = vmatpush1.msra.mxu0 0.0
        %1727 = vmatprep.subr.mxu0 0.0
        %1728 = vmatpush1.msra.mxu0 0.0
        %1729 = vmatprep.subr.mxu0 0.0
        %1730 = vmatpush1.msra.mxu0 0.0
        %1731 = vmatprep.subr.mxu0 0.0
        %1732 = vmatpush1.msra.mxu0 0.0
        %1733 = vmatprep.subr.mxu0 0.0
        %1734 = vmatpush1.msra.mxu0 0.0
        %1735 = vmatprep.subr.mxu0 0.0
        %1736 = vmatpush1.msra.mxu0 0.0
        %1737 = vmatprep.subr.mxu0 0.0
        %1738 = vmatpush1.msra.mxu0 0.0
        %1739 = vmatprep.subr.mxu0 0.0
        %1740 = vmatpush1.msra.mxu0 0.0
        %1741 = vmatprep.subr.mxu0 0.0
        %1742 = vmatpush1.msra.mxu0 0.0
        %1743 = vmatprep.subr.mxu0 0.0
        %1744 = vmatpush1.msra.mxu0 0.0
        %1745 = vmatprep.subr.mxu0 0.0
        %1746 = vmatpush1.msra.mxu0 0.0
        %1747 = vmatprep.subr.mxu0 0.0
        %1748 = vmatpush1.msra.mxu0 0.0
        %1749 = vmatprep.subr.mxu0 0.0
        %1750 = vmatpush1.msra.mxu0 0.0
        %1751 = vmatprep.subr.mxu0 0.0
        %1752 = vmatpush1.msra.mxu0 0.0
        %1753 = vmatprep.subr.mxu0 0.0
        %1754 = vmatpush1.msra.mxu0 0.0
        %1755 = vmatprep.subr.mxu0 0.0
        %1756 = vmatpush1.msra.mxu0 0.0
        %1757 = vmatprep.subr.mxu0 0.0
        %1758 = vmatpush1.msra.mxu0 0.0
        %1759 = vmatprep.subr.mxu0 0.0
        %1760 = vmatpush1.msra.mxu0 0.0
        %1761 = vmatprep.subr.mxu0 0.0
        %1762 = vmatpush1.msra.mxu0 0.0
        %1763 = vmatprep.subr.mxu0 0.0
        %1764 = vmatpush1.msra.mxu0 0.0
        %1765 = vmatprep.mubr.f32.mxu0 0.0
        %1766 = vmatmul.mubr.f32.gmra.mrb[0].mxu0 %v1690
        %v1767 = vpop.f32.mrb[0].mxu0
        %v1768 = vadd.f32 %v1667, %v1767
        %v1769 = vpop.f32.mrb[0].mxu0
        %v1770 = vadd.f32 %v1669, %v1769
        %1771 = vmatprep.mubr.f32.mxu0 0.0
        %1772 = vmatmul.mubr.f32.gmra.mrb[0].mxu0 %v1693
        %v1773 = vpop.f32.mrb[0].mxu0
        %v1774 = vadd.f32 %v1673, %v1773
        %v1775 = vpop.f32.mrb[0].mxu0
        %v1776 = vadd.f32 %v1675, %v1775
        %1777 = vmatprep.mubr.f32.mxu0 0.0
        %1778 = vmatmul.mubr.f32.gmra.mrb[0].mxu0 %v1696
        %v1779 = vpop.f32.mrb[0].mxu0
        %v1780 = vadd.f32 %v1679, %v1779
        %v1781 = vpop.f32.mrb[0].mxu0
        %v1782 = vadd.f32 %v1681, %v1781
        %1783 = vmatprep.mubr.f32.mxu0 0.0
        %1784 = vmatmul.mubr.f32.gmra.mrb[0].mxu0 %v1699
        %v1785 = vpop.f32.mrb[0].mxu0
        %v1786 = vadd.f32 %v1685, %v1785
        %v1787 = vpop.f32.mrb[0].mxu0
        %v1788 = vadd.f32 %v1687, %v1787
        %1789 = vdwg.mxu0
        %1790 = vrot.lane.b32.xlu0 %v1507, 15
        %v1791 = vpop.permute.xlu0 %1790
        %1792 = vrot.lane.b32.xlu0 %v1509, 15
        %v1793 = vpop.permute.xlu0 %1792
        %1794 = vrot.lane.b32.xlu0 %v1511, 15
        %v1795 = vpop.permute.xlu0 %1794
        %1796 = vrot.lane.b32.xlu0 %v1513, 15
        %v1797 = vpop.permute.xlu0 %1796
        %1798 = vrot.lane.b32.xlu0 %v1508, 15
        %v1799 = vpop.permute.xlu0 %1798
        %1800 = vrot.lane.b32.xlu0 %v1510, 15
        %v1801 = vpop.permute.xlu0 %1800
        %1802 = vrot.lane.b32.xlu0 %v1512, 15
        %v1803 = vpop.permute.xlu0 %1802
        %1804 = vrot.lane.b32.xlu0 %v1514, 15
        %v1805 = vpop.permute.xlu0 %1804
        %v1806 = vsel %vm541, %v1791, %v1799
        %v1807 = vsel %vm541, %v1793, %v1801
        %v1808 = vsel %vm541, %v1795, %v1803
        %v1809 = vsel %vm541, %v1797, %v1805
        %v1810 = vsel %vm541, %v1799, %v1791
        %v1811 = vsel %vm541, %v1801, %v1793
        %v1812 = vsel %vm541, %v1803, %v1795
        %v1813 = vsel %vm541, %v1805, %v1797
        %v1814 = vmul.f32 %v1810, %v550
        %v1815 = vmul.f32 %v1806, %v554
        %v1816 = vmul.f32 %v1811, %v550
        %v1817 = vmul.f32 %v1807, %v554
        %v1818 = vmul.f32 %v1812, %v550
        %v1819 = vmul.f32 %v1808, %v554
        %v1820 = vmul.f32 %v1813, %v550
        %v1821 = vmul.f32 %v1809, %v554
        %v1822 = vld [vmem:[%s3 + $0x40] sm:$0xff]
        %v1823 = vld [vmem:[%s3 + $0x48] sm:$0xff]
        %v1824 = vld [vmem:[%s3 + $0x50] sm:$0xff]
        %v1825 = vld [vmem:[%s3 + $0x58] sm:$0xff]
        %v1827 = vsel %vm1587, %v1822, 0
        %v1830 = vsel %vm1587, %v1823, 0
        %v1833 = vsel %vm1587, %v1824, 0
        %v1836 = vsel %vm1587, %v1825, 0
        %1838 = vmatprep.subr.mxu0 %v1815
        %1839 = vmatpush1.msra.mxu0 %v1814
        %1840 = vmatprep.subr.mxu0 %v1817
        %1841 = vmatpush1.msra.mxu0 %v1816
        %1842 = vmatprep.subr.mxu0 %v1819
        %1843 = vmatpush1.msra.mxu0 %v1818
        %1844 = vmatprep.subr.mxu0 %v1821
        %1845 = vmatpush1.msra.mxu0 %v1820
        %1846 = vmatprep.subr.mxu0 0.0
        %1847 = vmatpush1.msra.mxu0 0.0
        %1848 = vmatprep.subr.mxu0 0.0
        %1849 = vmatpush1.msra.mxu0 0.0
        %1850 = vmatprep.subr.mxu0 0.0
        %1851 = vmatpush1.msra.mxu0 0.0
        %1852 = vmatprep.subr.mxu0 0.0
        %1853 = vmatpush1.msra.mxu0 0.0
        %1854 = vmatprep.subr.mxu0 0.0
        %1855 = vmatpush1.msra.mxu0 0.0
        %1856 = vmatprep.subr.mxu0 0.0
        %1857 = vmatpush1.msra.mxu0 0.0
        %1858 = vmatprep.subr.mxu0 0.0
        %1859 = vmatpush1.msra.mxu0 0.0
        %1860 = vmatprep.subr.mxu0 0.0
        %1861 = vmatpush1.msra.mxu0 0.0
        %1862 = vmatprep.subr.mxu0 0.0
        %1863 = vmatpush1.msra.mxu0 0.0
        %1864 = vmatprep.subr.mxu0 0.0
        %1865 = vmatpush1.msra.mxu0 0.0
        %1866 = vmatprep.subr.mxu0 0.0
        %1867 = vmatpush1.msra.mxu0 0.0
        %1868 = vmatprep.subr.mxu0 0.0
        %1869 = vmatpush1.msra.mxu0 0.0
        %1870 = vmatprep.subr.mxu0 0.0
        %1871 = vmatpush1.msra.mxu0 0.0
        %1872 = vmatprep.subr.mxu0 0.0
        %1873 = vmatpush1.msra.mxu0 0.0
        %1874 = vmatprep.subr.mxu0 0.0
        %1875 = vmatpush1.msra.mxu0 0.0
        %1876 = vmatprep.subr.mxu0 0.0
        %1877 = vmatpush1.msra.mxu0 0.0
        %1878 = vmatprep.subr.mxu0 0.0
        %1879 = vmatpush1.msra.mxu0 0.0
        %1880 = vmatprep.subr.mxu0 0.0
        %1881 = vmatpush1.msra.mxu0 0.0
        %1882 = vmatprep.subr.mxu0 0.0
        %1883 = vmatpush1.msra.mxu0 0.0
        %1884 = vmatprep.subr.mxu0 0.0
        %1885 = vmatpush1.msra.mxu0 0.0
        %1886 = vmatprep.subr.mxu0 0.0
        %1887 = vmatpush1.msra.mxu0 0.0
        %1888 = vmatprep.subr.mxu0 0.0
        %1889 = vmatpush1.msra.mxu0 0.0
        %1890 = vmatprep.subr.mxu0 0.0
        %1891 = vmatpush1.msra.mxu0 0.0
        %1892 = vmatprep.subr.mxu0 0.0
        %1893 = vmatpush1.msra.mxu0 0.0
        %1894 = vmatprep.subr.mxu0 0.0
        %1895 = vmatpush1.msra.mxu0 0.0
        %1896 = vmatprep.subr.mxu0 0.0
        %1897 = vmatpush1.msra.mxu0 0.0
        %1898 = vmatprep.subr.mxu0 0.0
        %1899 = vmatpush1.msra.mxu0 0.0
        %1900 = vmatprep.subr.mxu0 0.0
        %1901 = vmatpush1.msra.mxu0 0.0
        %1902 = vmatprep.mubr.f32.mxu0 0.0
        %1903 = vmatmul.mubr.f32.gmra.mrb[0].mxu0 %v1827
        %v1904 = vpop.f32.mrb[0].mxu0
        %v1905 = vadd.f32 0.0, %v1904
        %v1906 = vpop.f32.mrb[0].mxu0
        %v1907 = vadd.f32 0.0, %v1906
        %1908 = vmatprep.mubr.f32.mxu0 0.0
        %1909 = vmatmul.mubr.f32.gmra.mrb[0].mxu0 %v1830
        %v1910 = vpop.f32.mrb[0].mxu0
        %v1911 = vadd.f32 0.0, %v1910
        %v1912 = vpop.f32.mrb[0].mxu0
        %v1913 = vadd.f32 0.0, %v1912
        %1914 = vmatprep.mubr.f32.mxu0 0.0
        %1915 = vmatmul.mubr.f32.gmra.mrb[0].mxu0 %v1833
        %v1916 = vpop.f32.mrb[0].mxu0
        %v1917 = vadd.f32 0.0, %v1916
        %v1918 = vpop.f32.mrb[0].mxu0
        %v1919 = vadd.f32 0.0, %v1918
        %1920 = vmatprep.mubr.f32.mxu0 0.0
        %1921 = vmatmul.mubr.f32.gmra.mrb[0].mxu0 %v1836
        %v1922 = vpop.f32.mrb[0].mxu0
        %v1923 = vadd.f32 0.0, %v1922
        %v1924 = vpop.f32.mrb[0].mxu0
        %v1925 = vadd.f32 0.0, %v1924
        %1926 = vdwg.mxu0
        %v1927 = vadd.f32 %v1768, %v1905
        %v1928 = vadd.f32 %v1770, %v1907
        %v1929 = vadd.f32 %v1774, %v1911
        %v1930 = vadd.f32 %v1776, %v1913
        %v1931 = vadd.f32 %v1780, %v1917
        %v1932 = vadd.f32 %v1782, %v1919
        %v1933 = vadd.f32 %v1786, %v1923
        %v1934 = vadd.f32 %v1788, %v1925
        %1935 = vrot.lane.b32.xlu0 %v1507, 1
        %v1936 = vpop.permute.xlu0 %1935
        %1937 = vrot.lane.b32.xlu0 %v1509, 1
        %v1938 = vpop.permute.xlu0 %1937
        %1939 = vrot.lane.b32.xlu0 %v1511, 1
        %v1940 = vpop.permute.xlu0 %1939
        %1941 = vrot.lane.b32.xlu0 %v1513, 1
        %v1942 = vpop.permute.xlu0 %1941
        %1943 = vrot.lane.b32.xlu0 %v1508, 1
        %v1944 = vpop.permute.xlu0 %1943
        %1945 = vrot.lane.b32.xlu0 %v1510, 1
        %v1946 = vpop.permute.xlu0 %1945
        %1947 = vrot.lane.b32.xlu0 %v1512, 1
        %v1948 = vpop.permute.xlu0 %1947
        %1949 = vrot.lane.b32.xlu0 %v1514, 1
        %v1950 = vpop.permute.xlu0 %1949
        %v1951 = vsel %vm676, %v1936, %v1944
        %v1952 = vsel %vm676, %v1938, %v1946
        %v1953 = vsel %vm676, %v1940, %v1948
        %v1954 = vsel %vm676, %v1942, %v1950
        %v1955 = vsel %vm676, %v1944, %v1936
        %v1956 = vsel %vm676, %v1946, %v1938
        %v1957 = vsel %vm676, %v1948, %v1940
        %v1958 = vsel %vm676, %v1950, %v1942
        %v1959 = vmul.f32 %v1955, %v685
        %v1960 = vmul.f32 %v1951, %v689
        %v1961 = vmul.f32 %v1956, %v685
        %v1962 = vmul.f32 %v1952, %v689
        %v1963 = vmul.f32 %v1957, %v685
        %v1964 = vmul.f32 %v1953, %v689
        %v1965 = vmul.f32 %v1958, %v685
        %v1966 = vmul.f32 %v1954, %v689
        %v1967 = vld [vmem:[%s3 + $0x60] sm:$0xff]
        %v1968 = vld [vmem:[%s3 + $0x68] sm:$0xff]
        %v1969 = vld [vmem:[%s3 + $0x70] sm:$0xff]
        %v1970 = vld [vmem:[%s3 + $0x78] sm:$0xff]
        %v1972 = vsel %vm1587, %v1967, 0
        %v1975 = vsel %vm1587, %v1968, 0
        %v1978 = vsel %vm1587, %v1969, 0
        %v1981 = vsel %vm1587, %v1970, 0
        %1983 = vmatprep.subr.mxu0 %v1960
        %1984 = vmatpush1.msra.mxu0 %v1959
        %1985 = vmatprep.subr.mxu0 %v1962
        %1986 = vmatpush1.msra.mxu0 %v1961
        %1987 = vmatprep.subr.mxu0 %v1964
        %1988 = vmatpush1.msra.mxu0 %v1963
        %1989 = vmatprep.subr.mxu0 %v1966
        %1990 = vmatpush1.msra.mxu0 %v1965
        %1991 = vmatprep.subr.mxu0 0.0
        %1992 = vmatpush1.msra.mxu0 0.0
        %1993 = vmatprep.subr.mxu0 0.0
        %1994 = vmatpush1.msra.mxu0 0.0
        %1995 = vmatprep.subr.mxu0 0.0
        %1996 = vmatpush1.msra.mxu0 0.0
        %1997 = vmatprep.subr.mxu0 0.0
        %1998 = vmatpush1.msra.mxu0 0.0
        %1999 = vmatprep.subr.mxu0 0.0
        %2000 = vmatpush1.msra.mxu0 0.0
        %2001 = vmatprep.subr.mxu0 0.0
        %2002 = vmatpush1.msra.mxu0 0.0
        %2003 = vmatprep.subr.mxu0 0.0
        %2004 = vmatpush1.msra.mxu0 0.0
        %2005 = vmatprep.subr.mxu0 0.0
        %2006 = vmatpush1.msra.mxu0 0.0
        %2007 = vmatprep.subr.mxu0 0.0
        %2008 = vmatpush1.msra.mxu0 0.0
        %2009 = vmatprep.subr.mxu0 0.0
        %2010 = vmatpush1.msra.mxu0 0.0
        %2011 = vmatprep.subr.mxu0 0.0
        %2012 = vmatpush1.msra.mxu0 0.0
        %2013 = vmatprep.subr.mxu0 0.0
        %2014 = vmatpush1.msra.mxu0 0.0
        %2015 = vmatprep.subr.mxu0 0.0
        %2016 = vmatpush1.msra.mxu0 0.0
        %2017 = vmatprep.subr.mxu0 0.0
        %2018 = vmatpush1.msra.mxu0 0.0
        %2019 = vmatprep.subr.mxu0 0.0
        %2020 = vmatpush1.msra.mxu0 0.0
        %2021 = vmatprep.subr.mxu0 0.0
        %2022 = vmatpush1.msra.mxu0 0.0
        %2023 = vmatprep.subr.mxu0 0.0
        %2024 = vmatpush1.msra.mxu0 0.0
        %2025 = vmatprep.subr.mxu0 0.0
        %2026 = vmatpush1.msra.mxu0 0.0
        %2027 = vmatprep.subr.mxu0 0.0
        %2028 = vmatpush1.msra.mxu0 0.0
        %2029 = vmatprep.subr.mxu0 0.0
        %2030 = vmatpush1.msra.mxu0 0.0
        %2031 = vmatprep.subr.mxu0 0.0
        %2032 = vmatpush1.msra.mxu0 0.0
        %2033 = vmatprep.subr.mxu0 0.0
        %2034 = vmatpush1.msra.mxu0 0.0
        %2035 = vmatprep.subr.mxu0 0.0
        %2036 = vmatpush1.msra.mxu0 0.0
        %2037 = vmatprep.subr.mxu0 0.0
        %2038 = vmatpush1.msra.mxu0 0.0
        %2039 = vmatprep.subr.mxu0 0.0
        %2040 = vmatpush1.msra.mxu0 0.0
        %2041 = vmatprep.subr.mxu0 0.0
        %2042 = vmatpush1.msra.mxu0 0.0
        %2043 = vmatprep.subr.mxu0 0.0
        %2044 = vmatpush1.msra.mxu0 0.0
        %2045 = vmatprep.subr.mxu0 0.0
        %2046 = vmatpush1.msra.mxu0 0.0
        %2047 = vmatprep.mubr.f32.mxu0 0.0
        %2048 = vmatmul.mubr.f32.gmra.mrb[0].mxu0 %v1972
        %v2049 = vpop.f32.mrb[0].mxu0
        %v2050 = vadd.f32 0.0, %v2049
        %v2051 = vpop.f32.mrb[0].mxu0
        %v2052 = vadd.f32 0.0, %v2051
        %2053 = vmatprep.mubr.f32.mxu0 0.0
        %2054 = vmatmul.mubr.f32.gmra.mrb[0].mxu0 %v1975
        %v2055 = vpop.f32.mrb[0].mxu0
        %v2056 = vadd.f32 0.0, %v2055
        %v2057 = vpop.f32.mrb[0].mxu0
        %v2058 = vadd.f32 0.0, %v2057
        %2059 = vmatprep.mubr.f32.mxu0 0.0
        %2060 = vmatmul.mubr.f32.gmra.mrb[0].mxu0 %v1978
        %v2061 = vpop.f32.mrb[0].mxu0
        %v2062 = vadd.f32 0.0, %v2061
        %v2063 = vpop.f32.mrb[0].mxu0
        %v2064 = vadd.f32 0.0, %v2063
        %2065 = vmatprep.mubr.f32.mxu0 0.0
        %2066 = vmatmul.mubr.f32.gmra.mrb[0].mxu0 %v1981
        %v2067 = vpop.f32.mrb[0].mxu0
        %v2068 = vadd.f32 0.0, %v2067
        %v2069 = vpop.f32.mrb[0].mxu0
        %v2070 = vadd.f32 0.0, %v2069
        %2071 = vdwg.mxu0
        %v2072 = vadd.f32 %v1927, %v2050
        %v2073 = vadd.f32 %v1928, %v2052
        %v2074 = vadd.f32 %v1929, %v2056
        %v2075 = vadd.f32 %v1930, %v2058
        %v2076 = vadd.f32 %v1931, %v2062
        %v2077 = vadd.f32 %v1932, %v2064
        %v2078 = vadd.f32 %v1933, %v2068
        %v2079 = vadd.f32 %v1934, %v2070
        %v2080 = vmul.f32 %v1507, %v813
        %v2081 = vmul.f32 %v1508, %v817
        %v2082 = vmul.f32 %v1509, %v813
        %v2083 = vmul.f32 %v1510, %v817
        %v2084 = vmul.f32 %v1511, %v813
        %v2085 = vmul.f32 %v1512, %v817
        %v2086 = vmul.f32 %v1513, %v813
        %v2087 = vmul.f32 %v1514, %v817
        %v2088 = vld [vmem:[%s3 + $0x80] sm:$0xff]
        %v2089 = vld [vmem:[%s3 + $0x88] sm:$0xff]
        %v2090 = vld [vmem:[%s3 + $0x90] sm:$0xff]
        %v2091 = vld [vmem:[%s3 + $0x98] sm:$0xff]
        %v2093 = vsel %vm1587, %v2088, 0
        %v2096 = vsel %vm1587, %v2089, 0
        %v2099 = vsel %vm1587, %v2090, 0
        %v2102 = vsel %vm1587, %v2091, 0
        %2104 = vmatprep.subr.mxu0 %v2081
        %2105 = vmatpush1.msra.mxu0 %v2080
        %2106 = vmatprep.subr.mxu0 %v2083
        %2107 = vmatpush1.msra.mxu0 %v2082
        %2108 = vmatprep.subr.mxu0 %v2085
        %2109 = vmatpush1.msra.mxu0 %v2084
        %2110 = vmatprep.subr.mxu0 %v2087
        %2111 = vmatpush1.msra.mxu0 %v2086
        %2112 = vmatprep.subr.mxu0 0.0
        %2113 = vmatpush1.msra.mxu0 0.0
        %2114 = vmatprep.subr.mxu0 0.0
        %2115 = vmatpush1.msra.mxu0 0.0
        %2116 = vmatprep.subr.mxu0 0.0
        %2117 = vmatpush1.msra.mxu0 0.0
        %2118 = vmatprep.subr.mxu0 0.0
        %2119 = vmatpush1.msra.mxu0 0.0
        %2120 = vmatprep.subr.mxu0 0.0
        %2121 = vmatpush1.msra.mxu0 0.0
        %2122 = vmatprep.subr.mxu0 0.0
        %2123 = vmatpush1.msra.mxu0 0.0
        %2124 = vmatprep.subr.mxu0 0.0
        %2125 = vmatpush1.msra.mxu0 0.0
        %2126 = vmatprep.subr.mxu0 0.0
        %2127 = vmatpush1.msra.mxu0 0.0
        %2128 = vmatprep.subr.mxu0 0.0
        %2129 = vmatpush1.msra.mxu0 0.0
        %2130 = vmatprep.subr.mxu0 0.0
        %2131 = vmatpush1.msra.mxu0 0.0
        %2132 = vmatprep.subr.mxu0 0.0
        %2133 = vmatpush1.msra.mxu0 0.0
        %2134 = vmatprep.subr.mxu0 0.0
        %2135 = vmatpush1.msra.mxu0 0.0
        %2136 = vmatprep.subr.mxu0 0.0
        %2137 = vmatpush1.msra.mxu0 0.0
        %2138 = vmatprep.subr.mxu0 0.0
        %2139 = vmatpush1.msra.mxu0 0.0
        %2140 = vmatprep.subr.mxu0 0.0
        %2141 = vmatpush1.msra.mxu0 0.0
        %2142 = vmatprep.subr.mxu0 0.0
        %2143 = vmatpush1.msra.mxu0 0.0
        %2144 = vmatprep.subr.mxu0 0.0
        %2145 = vmatpush1.msra.mxu0 0.0
        %2146 = vmatprep.subr.mxu0 0.0
        %2147 = vmatpush1.msra.mxu0 0.0
        %2148 = vmatprep.subr.mxu0 0.0
        %2149 = vmatpush1.msra.mxu0 0.0
        %2150 = vmatprep.subr.mxu0 0.0
        %2151 = vmatpush1.msra.mxu0 0.0
        %2152 = vmatprep.subr.mxu0 0.0
        %2153 = vmatpush1.msra.mxu0 0.0
        %2154 = vmatprep.subr.mxu0 0.0
        %2155 = vmatpush1.msra.mxu0 0.0
        %2156 = vmatprep.subr.mxu0 0.0
        %2157 = vmatpush1.msra.mxu0 0.0
        %2158 = vmatprep.subr.mxu0 0.0
        %2159 = vmatpush1.msra.mxu0 0.0
        %2160 = vmatprep.subr.mxu0 0.0
        %2161 = vmatpush1.msra.mxu0 0.0
        %2162 = vmatprep.subr.mxu0 0.0
        %2163 = vmatpush1.msra.mxu0 0.0
        %2164 = vmatprep.subr.mxu0 0.0
        %2165 = vmatpush1.msra.mxu0 0.0
        %2166 = vmatprep.subr.mxu0 0.0
        %2167 = vmatpush1.msra.mxu0 0.0
        %2168 = vmatprep.mubr.f32.mxu0 0.0
        %2169 = vmatmul.mubr.f32.gmra.mrb[0].mxu0 %v2093
        %v2170 = vpop.f32.mrb[0].mxu0
        %v2171 = vadd.f32 0.0, %v2170
        %v2172 = vpop.f32.mrb[0].mxu0
        %v2173 = vadd.f32 0.0, %v2172
        %2174 = vmatprep.mubr.f32.mxu0 0.0
        %2175 = vmatmul.mubr.f32.gmra.mrb[0].mxu0 %v2096
        %v2176 = vpop.f32.mrb[0].mxu0
        %v2177 = vadd.f32 0.0, %v2176
        %v2178 = vpop.f32.mrb[0].mxu0
        %v2179 = vadd.f32 0.0, %v2178
        %2180 = vmatprep.mubr.f32.mxu0 0.0
        %2181 = vmatmul.mubr.f32.gmra.mrb[0].mxu0 %v2099
        %v2182 = vpop.f32.mrb[0].mxu0
        %v2183 = vadd.f32 0.0, %v2182
        %v2184 = vpop.f32.mrb[0].mxu0
        %v2185 = vadd.f32 0.0, %v2184
        %2186 = vmatprep.mubr.f32.mxu0 0.0
        %2187 = vmatmul.mubr.f32.gmra.mrb[0].mxu0 %v2102
        %v2188 = vpop.f32.mrb[0].mxu0
        %v2189 = vadd.f32 0.0, %v2188
        %v2190 = vpop.f32.mrb[0].mxu0
        %v2191 = vadd.f32 0.0, %v2190
        %2192 = vdwg.mxu0
        %v2193 = vadd.f32 %v2072, %v2171
        %v2194 = vadd.f32 %v2073, %v2173
        %v2195 = vadd.f32 %v2074, %v2177
        %v2196 = vadd.f32 %v2075, %v2179
        %v2197 = vadd.f32 %v2076, %v2183
        %v2198 = vadd.f32 %v2077, %v2185
        %v2199 = vadd.f32 %v2078, %v2189
        %v2200 = vadd.f32 %v2079, %v2191
        %2201 = vrot.lane.b32.xlu0 %v1507, 127
        %v2202 = vpop.permute.xlu0 %2201
        %2203 = vrot.lane.b32.xlu0 %v1509, 127
        %v2204 = vpop.permute.xlu0 %2203
        %2205 = vrot.lane.b32.xlu0 %v1511, 127
        %v2206 = vpop.permute.xlu0 %2205
        %2207 = vrot.lane.b32.xlu0 %v1513, 127
        %v2208 = vpop.permute.xlu0 %2207
        %2209 = vrot.lane.b32.xlu0 %v1508, 127
        %v2210 = vpop.permute.xlu0 %2209
        %2211 = vrot.lane.b32.xlu0 %v1510, 127
        %v2212 = vpop.permute.xlu0 %2211
        %2213 = vrot.lane.b32.xlu0 %v1512, 127
        %v2214 = vpop.permute.xlu0 %2213
        %2215 = vrot.lane.b32.xlu0 %v1514, 127
        %v2216 = vpop.permute.xlu0 %2215
        %v2217 = vsel %vm939, %v2202, %v2210
        %v2218 = vsel %vm939, %v2204, %v2212
        %v2219 = vsel %vm939, %v2206, %v2214
        %v2220 = vsel %vm939, %v2208, %v2216
        %v2221 = vsel %vm939, %v2210, %v2202
        %v2222 = vsel %vm939, %v2212, %v2204
        %v2223 = vsel %vm939, %v2214, %v2206
        %v2224 = vsel %vm939, %v2216, %v2208
        %v2225 = vmul.f32 %v2217, %v948
        %v2226 = vmul.f32 %v2221, %v952
        %v2227 = vmul.f32 %v2218, %v948
        %v2228 = vmul.f32 %v2222, %v952
        %v2229 = vmul.f32 %v2219, %v948
        %v2230 = vmul.f32 %v2223, %v952
        %v2231 = vmul.f32 %v2220, %v948
        %v2232 = vmul.f32 %v2224, %v952
        %v2233 = vld [vmem:[%s3 + $0xa0] sm:$0xff]
        %v2234 = vld [vmem:[%s3 + $0xa8] sm:$0xff]
        %v2235 = vld [vmem:[%s3 + $0xb0] sm:$0xff]
        %v2236 = vld [vmem:[%s3 + $0xb8] sm:$0xff]
        %v2238 = vsel %vm1587, %v2233, 0
        %v2241 = vsel %vm1587, %v2234, 0
        %v2244 = vsel %vm1587, %v2235, 0
        %v2247 = vsel %vm1587, %v2236, 0
        %2249 = vmatprep.subr.mxu0 %v2226
        %2250 = vmatpush1.msra.mxu0 %v2225
        %2251 = vmatprep.subr.mxu0 %v2228
        %2252 = vmatpush1.msra.mxu0 %v2227
        %2253 = vmatprep.subr.mxu0 %v2230
        %2254 = vmatpush1.msra.mxu0 %v2229
        %2255 = vmatprep.subr.mxu0 %v2232
        %2256 = vmatpush1.msra.mxu0 %v2231
        %2257 = vmatprep.subr.mxu0 0.0
        %2258 = vmatpush1.msra.mxu0 0.0
        %2259 = vmatprep.subr.mxu0 0.0
        %2260 = vmatpush1.msra.mxu0 0.0
        %2261 = vmatprep.subr.mxu0 0.0
        %2262 = vmatpush1.msra.mxu0 0.0
        %2263 = vmatprep.subr.mxu0 0.0
        %2264 = vmatpush1.msra.mxu0 0.0
        %2265 = vmatprep.subr.mxu0 0.0
        %2266 = vmatpush1.msra.mxu0 0.0
        %2267 = vmatprep.subr.mxu0 0.0
        %2268 = vmatpush1.msra.mxu0 0.0
        %2269 = vmatprep.subr.mxu0 0.0
        %2270 = vmatpush1.msra.mxu0 0.0
        %2271 = vmatprep.subr.mxu0 0.0
        %2272 = vmatpush1.msra.mxu0 0.0
        %2273 = vmatprep.subr.mxu0 0.0
        %2274 = vmatpush1.msra.mxu0 0.0
        %2275 = vmatprep.subr.mxu0 0.0
        %2276 = vmatpush1.msra.mxu0 0.0
        %2277 = vmatprep.subr.mxu0 0.0
        %2278 = vmatpush1.msra.mxu0 0.0
        %2279 = vmatprep.subr.mxu0 0.0
        %2280 = vmatpush1.msra.mxu0 0.0
        %2281 = vmatprep.subr.mxu0 0.0
        %2282 = vmatpush1.msra.mxu0 0.0
        %2283 = vmatprep.subr.mxu0 0.0
        %2284 = vmatpush1.msra.mxu0 0.0
        %2285 = vmatprep.subr.mxu0 0.0
        %2286 = vmatpush1.msra.mxu0 0.0
        %2287 = vmatprep.subr.mxu0 0.0
        %2288 = vmatpush1.msra.mxu0 0.0
        %2289 = vmatprep.subr.mxu0 0.0
        %2290 = vmatpush1.msra.mxu0 0.0
        %2291 = vmatprep.subr.mxu0 0.0
        %2292 = vmatpush1.msra.mxu0 0.0
        %2293 = vmatprep.subr.mxu0 0.0
        %2294 = vmatpush1.msra.mxu0 0.0
        %2295 = vmatprep.subr.mxu0 0.0
        %2296 = vmatpush1.msra.mxu0 0.0
        %2297 = vmatprep.subr.mxu0 0.0
        %2298 = vmatpush1.msra.mxu0 0.0
        %2299 = vmatprep.subr.mxu0 0.0
        %2300 = vmatpush1.msra.mxu0 0.0
        %2301 = vmatprep.subr.mxu0 0.0
        %2302 = vmatpush1.msra.mxu0 0.0
        %2303 = vmatprep.subr.mxu0 0.0
        %2304 = vmatpush1.msra.mxu0 0.0
        %2305 = vmatprep.subr.mxu0 0.0
        %2306 = vmatpush1.msra.mxu0 0.0
        %2307 = vmatprep.subr.mxu0 0.0
        %2308 = vmatpush1.msra.mxu0 0.0
        %2309 = vmatprep.subr.mxu0 0.0
        %2310 = vmatpush1.msra.mxu0 0.0
        %2311 = vmatprep.subr.mxu0 0.0
        %2312 = vmatpush1.msra.mxu0 0.0
        %2313 = vmatprep.mubr.f32.mxu0 0.0
        %2314 = vmatmul.mubr.f32.gmra.mrb[0].mxu0 %v2238
        %v2315 = vpop.f32.mrb[0].mxu0
        %v2316 = vadd.f32 0.0, %v2315
        %v2317 = vpop.f32.mrb[0].mxu0
        %v2318 = vadd.f32 0.0, %v2317
        %2319 = vmatprep.mubr.f32.mxu0 0.0
        %2320 = vmatmul.mubr.f32.gmra.mrb[0].mxu0 %v2241
        %v2321 = vpop.f32.mrb[0].mxu0
        %v2322 = vadd.f32 0.0, %v2321
        %v2323 = vpop.f32.mrb[0].mxu0
        %v2324 = vadd.f32 0.0, %v2323
        %2325 = vmatprep.mubr.f32.mxu0 0.0
        %2326 = vmatmul.mubr.f32.gmra.mrb[0].mxu0 %v2244
        %v2327 = vpop.f32.mrb[0].mxu0
        %v2328 = vadd.f32 0.0, %v2327
        %v2329 = vpop.f32.mrb[0].mxu0
        %v2330 = vadd.f32 0.0, %v2329
        %2331 = vmatprep.mubr.f32.mxu0 0.0
        %2332 = vmatmul.mubr.f32.gmra.mrb[0].mxu0 %v2247
        %v2333 = vpop.f32.mrb[0].mxu0
        %v2334 = vadd.f32 0.0, %v2333
        %v2335 = vpop.f32.mrb[0].mxu0
        %v2336 = vadd.f32 0.0, %v2335
        %2337 = vdwg.mxu0
        %v2338 = vadd.f32 %v2193, %v2316
        %v2339 = vadd.f32 %v2194, %v2318
        %v2340 = vadd.f32 %v2195, %v2322
        %v2341 = vadd.f32 %v2196, %v2324
        %v2342 = vadd.f32 %v2197, %v2328
        %v2343 = vadd.f32 %v2198, %v2330
        %v2344 = vadd.f32 %v2199, %v2334
        %v2345 = vadd.f32 %v2200, %v2336
        %2346 = vrot.lane.b32.xlu0 %v1507, 113
        %v2347 = vpop.permute.xlu0 %2346
        %2348 = vrot.lane.b32.xlu0 %v1509, 113
        %v2349 = vpop.permute.xlu0 %2348
        %2350 = vrot.lane.b32.xlu0 %v1511, 113
        %v2351 = vpop.permute.xlu0 %2350
        %2352 = vrot.lane.b32.xlu0 %v1513, 113
        %v2353 = vpop.permute.xlu0 %2352
        %2354 = vrot.lane.b32.xlu0 %v1508, 113
        %v2355 = vpop.permute.xlu0 %2354
        %2356 = vrot.lane.b32.xlu0 %v1510, 113
        %v2357 = vpop.permute.xlu0 %2356
        %2358 = vrot.lane.b32.xlu0 %v1512, 113
        %v2359 = vpop.permute.xlu0 %2358
        %2360 = vrot.lane.b32.xlu0 %v1514, 113
        %v2361 = vpop.permute.xlu0 %2360
        %v2362 = vsel %vm1074, %v2347, %v2355
        %v2363 = vsel %vm1074, %v2349, %v2357
        %v2364 = vsel %vm1074, %v2351, %v2359
        %v2365 = vsel %vm1074, %v2353, %v2361
        %v2366 = vsel %vm1074, %v2355, %v2347
        %v2367 = vsel %vm1074, %v2357, %v2349
        %v2368 = vsel %vm1074, %v2359, %v2351
        %v2369 = vsel %vm1074, %v2361, %v2353
        %v2370 = vmul.f32 %v2362, %v1083
        %v2371 = vmul.f32 %v2366, %v1087
        %v2372 = vmul.f32 %v2363, %v1083
        %v2373 = vmul.f32 %v2367, %v1087
        %v2374 = vmul.f32 %v2364, %v1083
        %v2375 = vmul.f32 %v2368, %v1087
        %v2376 = vmul.f32 %v2365, %v1083
        %v2377 = vmul.f32 %v2369, %v1087
        %v2378 = vld [vmem:[%s3 + $0xc0] sm:$0xff]
        %v2379 = vld [vmem:[%s3 + $0xc8] sm:$0xff]
        %v2380 = vld [vmem:[%s3 + $0xd0] sm:$0xff]
        %v2381 = vld [vmem:[%s3 + $0xd8] sm:$0xff]
        %v2383 = vsel %vm1587, %v2378, 0
        %v2386 = vsel %vm1587, %v2379, 0
        %v2389 = vsel %vm1587, %v2380, 0
        %v2392 = vsel %vm1587, %v2381, 0
        %2394 = vmatprep.subr.mxu0 %v2371
        %2395 = vmatpush1.msra.mxu0 %v2370
        %2396 = vmatprep.subr.mxu0 %v2373
        %2397 = vmatpush1.msra.mxu0 %v2372
        %2398 = vmatprep.subr.mxu0 %v2375
        %2399 = vmatpush1.msra.mxu0 %v2374
        %2400 = vmatprep.subr.mxu0 %v2377
        %2401 = vmatpush1.msra.mxu0 %v2376
        %2402 = vmatprep.subr.mxu0 0.0
        %2403 = vmatpush1.msra.mxu0 0.0
        %2404 = vmatprep.subr.mxu0 0.0
        %2405 = vmatpush1.msra.mxu0 0.0
        %2406 = vmatprep.subr.mxu0 0.0
        %2407 = vmatpush1.msra.mxu0 0.0
        %2408 = vmatprep.subr.mxu0 0.0
        %2409 = vmatpush1.msra.mxu0 0.0
        %2410 = vmatprep.subr.mxu0 0.0
        %2411 = vmatpush1.msra.mxu0 0.0
        %2412 = vmatprep.subr.mxu0 0.0
        %2413 = vmatpush1.msra.mxu0 0.0
        %2414 = vmatprep.subr.mxu0 0.0
        %2415 = vmatpush1.msra.mxu0 0.0
        %2416 = vmatprep.subr.mxu0 0.0
        %2417 = vmatpush1.msra.mxu0 0.0
        %2418 = vmatprep.subr.mxu0 0.0
        %2419 = vmatpush1.msra.mxu0 0.0
        %2420 = vmatprep.subr.mxu0 0.0
        %2421 = vmatpush1.msra.mxu0 0.0
        %2422 = vmatprep.subr.mxu0 0.0
        %2423 = vmatpush1.msra.mxu0 0.0
        %2424 = vmatprep.subr.mxu0 0.0
        %2425 = vmatpush1.msra.mxu0 0.0
        %2426 = vmatprep.subr.mxu0 0.0
        %2427 = vmatpush1.msra.mxu0 0.0
        %2428 = vmatprep.subr.mxu0 0.0
        %2429 = vmatpush1.msra.mxu0 0.0
        %2430 = vmatprep.subr.mxu0 0.0
        %2431 = vmatpush1.msra.mxu0 0.0
        %2432 = vmatprep.subr.mxu0 0.0
        %2433 = vmatpush1.msra.mxu0 0.0
        %2434 = vmatprep.subr.mxu0 0.0
        %2435 = vmatpush1.msra.mxu0 0.0
        %2436 = vmatprep.subr.mxu0 0.0
        %2437 = vmatpush1.msra.mxu0 0.0
        %2438 = vmatprep.subr.mxu0 0.0
        %2439 = vmatpush1.msra.mxu0 0.0
        %2440 = vmatprep.subr.mxu0 0.0
        %2441 = vmatpush1.msra.mxu0 0.0
        %2442 = vmatprep.subr.mxu0 0.0
        %2443 = vmatpush1.msra.mxu0 0.0
        %2444 = vmatprep.subr.mxu0 0.0
        %2445 = vmatpush1.msra.mxu0 0.0
        %2446 = vmatprep.subr.mxu0 0.0
        %2447 = vmatpush1.msra.mxu0 0.0
        %2448 = vmatprep.subr.mxu0 0.0
        %2449 = vmatpush1.msra.mxu0 0.0
        %2450 = vmatprep.subr.mxu0 0.0
        %2451 = vmatpush1.msra.mxu0 0.0
        %2452 = vmatprep.subr.mxu0 0.0
        %2453 = vmatpush1.msra.mxu0 0.0
        %2454 = vmatprep.subr.mxu0 0.0
        %2455 = vmatpush1.msra.mxu0 0.0
        %2456 = vmatprep.subr.mxu0 0.0
        %2457 = vmatpush1.msra.mxu0 0.0
        %2458 = vmatprep.mubr.f32.mxu0 0.0
        %2459 = vmatmul.mubr.f32.gmra.mrb[0].mxu0 %v2383
        %v2460 = vpop.f32.mrb[0].mxu0
        %v2461 = vadd.f32 0.0, %v2460
        %v2462 = vpop.f32.mrb[0].mxu0
        %v2463 = vadd.f32 0.0, %v2462
        %2464 = vmatprep.mubr.f32.mxu0 0.0
        %2465 = vmatmul.mubr.f32.gmra.mrb[0].mxu0 %v2386
        %v2466 = vpop.f32.mrb[0].mxu0
        %v2467 = vadd.f32 0.0, %v2466
        %v2468 = vpop.f32.mrb[0].mxu0
        %v2469 = vadd.f32 0.0, %v2468
        %2470 = vmatprep.mubr.f32.mxu0 0.0
        %2471 = vmatmul.mubr.f32.gmra.mrb[0].mxu0 %v2389
        %v2472 = vpop.f32.mrb[0].mxu0
        %v2473 = vadd.f32 0.0, %v2472
        %v2474 = vpop.f32.mrb[0].mxu0
        %v2475 = vadd.f32 0.0, %v2474
        %2476 = vmatprep.mubr.f32.mxu0 0.0
        %2477 = vmatmul.mubr.f32.gmra.mrb[0].mxu0 %v2392
        %v2478 = vpop.f32.mrb[0].mxu0
        %v2479 = vadd.f32 0.0, %v2478
        %v2480 = vpop.f32.mrb[0].mxu0
        %v2481 = vadd.f32 0.0, %v2480
        %2482 = vdwg.mxu0
        %v2483 = vadd.f32 %v2338, %v2461
        %v2484 = vadd.f32 %v2339, %v2463
        %v2485 = vadd.f32 %v2340, %v2467
        %v2486 = vadd.f32 %v2341, %v2469
        %v2487 = vadd.f32 %v2342, %v2473
        %v2488 = vadd.f32 %v2343, %v2475
        %v2489 = vadd.f32 %v2344, %v2479
        %v2490 = vadd.f32 %v2345, %v2481
        %2491 = vrot.lane.b32.xlu0 %v1507, 112
        %v2492 = vpop.permute.xlu0 %2491
        %2493 = vrot.lane.b32.xlu0 %v1509, 112
        %v2494 = vpop.permute.xlu0 %2493
        %2495 = vrot.lane.b32.xlu0 %v1511, 112
        %v2496 = vpop.permute.xlu0 %2495
        %2497 = vrot.lane.b32.xlu0 %v1513, 112
        %v2498 = vpop.permute.xlu0 %2497
        %2499 = vrot.lane.b32.xlu0 %v1508, 112
        %v2500 = vpop.permute.xlu0 %2499
        %2501 = vrot.lane.b32.xlu0 %v1510, 112
        %v2502 = vpop.permute.xlu0 %2501
        %2503 = vrot.lane.b32.xlu0 %v1512, 112
        %v2504 = vpop.permute.xlu0 %2503
        %2505 = vrot.lane.b32.xlu0 %v1514, 112
        %v2506 = vpop.permute.xlu0 %2505
        %v2507 = vsel %vm1209, %v2492, %v2500
        %v2508 = vsel %vm1209, %v2494, %v2502
        %v2509 = vsel %vm1209, %v2496, %v2504
        %v2510 = vsel %vm1209, %v2498, %v2506
        %v2511 = vsel %vm1209, %v2500, %v2492
        %v2512 = vsel %vm1209, %v2502, %v2494
        %v2513 = vsel %vm1209, %v2504, %v2496
        %v2514 = vsel %vm1209, %v2506, %v2498
        %v2515 = vmul.f32 %v2507, %v1218
        %v2516 = vmul.f32 %v2511, %v1222
        %v2517 = vmul.f32 %v2508, %v1218
        %v2518 = vmul.f32 %v2512, %v1222
        %v2519 = vmul.f32 %v2509, %v1218
        %v2520 = vmul.f32 %v2513, %v1222
        %v2521 = vmul.f32 %v2510, %v1218
        %v2522 = vmul.f32 %v2514, %v1222
        %v2523 = vld [vmem:[%s3 + $0xe0] sm:$0xff]
        %v2524 = vld [vmem:[%s3 + $0xe8] sm:$0xff]
        %v2525 = vld [vmem:[%s3 + $0xf0] sm:$0xff]
        %v2526 = vld [vmem:[%s3 + $0xf8] sm:$0xff]
        %v2528 = vsel %vm1587, %v2523, 0
        %v2531 = vsel %vm1587, %v2524, 0
        %v2534 = vsel %vm1587, %v2525, 0
        %v2537 = vsel %vm1587, %v2526, 0
        %2539 = vmatprep.subr.mxu0 %v2516
        %2540 = vmatpush1.msra.mxu0 %v2515
        %2541 = vmatprep.subr.mxu0 %v2518
        %2542 = vmatpush1.msra.mxu0 %v2517
        %2543 = vmatprep.subr.mxu0 %v2520
        %2544 = vmatpush1.msra.mxu0 %v2519
        %2545 = vmatprep.subr.mxu0 %v2522
        %2546 = vmatpush1.msra.mxu0 %v2521
        %2547 = vmatprep.subr.mxu0 0.0
        %2548 = vmatpush1.msra.mxu0 0.0
        %2549 = vmatprep.subr.mxu0 0.0
        %2550 = vmatpush1.msra.mxu0 0.0
        %2551 = vmatprep.subr.mxu0 0.0
        %2552 = vmatpush1.msra.mxu0 0.0
        %2553 = vmatprep.subr.mxu0 0.0
        %2554 = vmatpush1.msra.mxu0 0.0
        %2555 = vmatprep.subr.mxu0 0.0
        %2556 = vmatpush1.msra.mxu0 0.0
        %2557 = vmatprep.subr.mxu0 0.0
        %2558 = vmatpush1.msra.mxu0 0.0
        %2559 = vmatprep.subr.mxu0 0.0
        %2560 = vmatpush1.msra.mxu0 0.0
        %2561 = vmatprep.subr.mxu0 0.0
        %2562 = vmatpush1.msra.mxu0 0.0
        %2563 = vmatprep.subr.mxu0 0.0
        %2564 = vmatpush1.msra.mxu0 0.0
        %2565 = vmatprep.subr.mxu0 0.0
        %2566 = vmatpush1.msra.mxu0 0.0
        %2567 = vmatprep.subr.mxu0 0.0
        %2568 = vmatpush1.msra.mxu0 0.0
        %2569 = vmatprep.subr.mxu0 0.0
        %2570 = vmatpush1.msra.mxu0 0.0
        %2571 = vmatprep.subr.mxu0 0.0
        %2572 = vmatpush1.msra.mxu0 0.0
        %2573 = vmatprep.subr.mxu0 0.0
        %2574 = vmatpush1.msra.mxu0 0.0
        %2575 = vmatprep.subr.mxu0 0.0
        %2576 = vmatpush1.msra.mxu0 0.0
        %2577 = vmatprep.subr.mxu0 0.0
        %2578 = vmatpush1.msra.mxu0 0.0
        %2579 = vmatprep.subr.mxu0 0.0
        %2580 = vmatpush1.msra.mxu0 0.0
        %2581 = vmatprep.subr.mxu0 0.0
        %2582 = vmatpush1.msra.mxu0 0.0
        %2583 = vmatprep.subr.mxu0 0.0
        %2584 = vmatpush1.msra.mxu0 0.0
        %2585 = vmatprep.subr.mxu0 0.0
        %2586 = vmatpush1.msra.mxu0 0.0
        %2587 = vmatprep.subr.mxu0 0.0
        %2588 = vmatpush1.msra.mxu0 0.0
        %2589 = vmatprep.subr.mxu0 0.0
        %2590 = vmatpush1.msra.mxu0 0.0
        %2591 = vmatprep.subr.mxu0 0.0
        %2592 = vmatpush1.msra.mxu0 0.0
        %2593 = vmatprep.subr.mxu0 0.0
        %2594 = vmatpush1.msra.mxu0 0.0
        %2595 = vmatprep.subr.mxu0 0.0
        %2596 = vmatpush1.msra.mxu0 0.0
        %2597 = vmatprep.subr.mxu0 0.0
        %2598 = vmatpush1.msra.mxu0 0.0
        %2599 = vmatprep.subr.mxu0 0.0
        %2600 = vmatpush1.msra.mxu0 0.0
        %2601 = vmatprep.subr.mxu0 0.0
        %2602 = vmatpush1.msra.mxu0 0.0
        %2603 = vmatprep.mubr.f32.mxu0 0.0
        %2604 = vmatmul.mubr.f32.gmra.mrb[0].mxu0 %v2528
        %v2605 = vpop.f32.mrb[0].mxu0
        %v2606 = vadd.f32 0.0, %v2605
        %v2607 = vpop.f32.mrb[0].mxu0
        %v2608 = vadd.f32 0.0, %v2607
        %2609 = vmatprep.mubr.f32.mxu0 0.0
        %2610 = vmatmul.mubr.f32.gmra.mrb[0].mxu0 %v2531
        %v2611 = vpop.f32.mrb[0].mxu0
        %v2612 = vadd.f32 0.0, %v2611
        %v2613 = vpop.f32.mrb[0].mxu0
        %v2614 = vadd.f32 0.0, %v2613
        %2615 = vmatprep.mubr.f32.mxu0 0.0
        %2616 = vmatmul.mubr.f32.gmra.mrb[0].mxu0 %v2534
        %v2617 = vpop.f32.mrb[0].mxu0
        %v2618 = vadd.f32 0.0, %v2617
        %v2619 = vpop.f32.mrb[0].mxu0
        %v2620 = vadd.f32 0.0, %v2619
        %2621 = vmatprep.mubr.f32.mxu0 0.0
        %2622 = vmatmul.mubr.f32.gmra.mrb[0].mxu0 %v2537
        %v2623 = vpop.f32.mrb[0].mxu0
        %v2624 = vadd.f32 0.0, %v2623
        %v2625 = vpop.f32.mrb[0].mxu0
        %v2626 = vadd.f32 0.0, %v2625
        %2627 = vdwg.mxu0
        %v2628 = vadd.f32 %v2483, %v2606
        %v2629 = vadd.f32 %v2484, %v2608
        %v2630 = vadd.f32 %v2485, %v2612
        %v2631 = vadd.f32 %v2486, %v2614
        %v2632 = vadd.f32 %v2487, %v2618
        %v2633 = vadd.f32 %v2488, %v2620
        %v2634 = vadd.f32 %v2489, %v2624
        %v2635 = vadd.f32 %v2490, %v2626
        %2636 = vrot.lane.b32.xlu0 %v1507, 111
        %v2637 = vpop.permute.xlu0 %2636
        %2638 = vrot.lane.b32.xlu0 %v1509, 111
        %v2639 = vpop.permute.xlu0 %2638
        %2640 = vrot.lane.b32.xlu0 %v1511, 111
        %v2641 = vpop.permute.xlu0 %2640
        %2642 = vrot.lane.b32.xlu0 %v1513, 111
        %v2643 = vpop.permute.xlu0 %2642
        %2644 = vrot.lane.b32.xlu0 %v1508, 111
        %v2645 = vpop.permute.xlu0 %2644
        %2646 = vrot.lane.b32.xlu0 %v1510, 111
        %v2647 = vpop.permute.xlu0 %2646
        %2648 = vrot.lane.b32.xlu0 %v1512, 111
        %v2649 = vpop.permute.xlu0 %2648
        %2650 = vrot.lane.b32.xlu0 %v1514, 111
        %v2651 = vpop.permute.xlu0 %2650
        %v2652 = vsel %vm1344, %v2637, %v2645
        %v2653 = vsel %vm1344, %v2639, %v2647
        %v2654 = vsel %vm1344, %v2641, %v2649
        %v2655 = vsel %vm1344, %v2643, %v2651
        %v2656 = vsel %vm1344, %v2645, %v2637
        %v2657 = vsel %vm1344, %v2647, %v2639
        %v2658 = vsel %vm1344, %v2649, %v2641
        %v2659 = vsel %vm1344, %v2651, %v2643
        %v2660 = vmul.f32 %v2652, %v1353
        %v2661 = vmul.f32 %v2656, %v1357
        %v2662 = vmul.f32 %v2653, %v1353
        %v2663 = vmul.f32 %v2657, %v1357
        %v2664 = vmul.f32 %v2654, %v1353
        %v2665 = vmul.f32 %v2658, %v1357
        %v2666 = vmul.f32 %v2655, %v1353
        %v2667 = vmul.f32 %v2659, %v1357
        %v2668 = vld [vmem:[%s3 + $0x100] sm:$0xff]
        %v2669 = vld [vmem:[%s3 + $0x108] sm:$0xff]
        %v2670 = vld [vmem:[%s3 + $0x110] sm:$0xff]
        %v2671 = vld [vmem:[%s3 + $0x118] sm:$0xff]
        %v2673 = vsel %vm1587, %v2668, 0
        %v2676 = vsel %vm1587, %v2669, 0
        %v2679 = vsel %vm1587, %v2670, 0
        %v2682 = vsel %vm1587, %v2671, 0
        %2684 = vmatprep.subr.mxu0 %v2661
        %2685 = vmatpush1.msra.mxu0 %v2660
        %2686 = vmatprep.subr.mxu0 %v2663
        %2687 = vmatpush1.msra.mxu0 %v2662
        %2688 = vmatprep.subr.mxu0 %v2665
        %2689 = vmatpush1.msra.mxu0 %v2664
        %2690 = vmatprep.subr.mxu0 %v2667
        %2691 = vmatpush1.msra.mxu0 %v2666
        %2692 = vmatprep.subr.mxu0 0.0
        %2693 = vmatpush1.msra.mxu0 0.0
        %2694 = vmatprep.subr.mxu0 0.0
        %2695 = vmatpush1.msra.mxu0 0.0
        %2696 = vmatprep.subr.mxu0 0.0
        %2697 = vmatpush1.msra.mxu0 0.0
        %2698 = vmatprep.subr.mxu0 0.0
        %2699 = vmatpush1.msra.mxu0 0.0
        %2700 = vmatprep.subr.mxu0 0.0
        %2701 = vmatpush1.msra.mxu0 0.0
        %2702 = vmatprep.subr.mxu0 0.0
        %2703 = vmatpush1.msra.mxu0 0.0
        %2704 = vmatprep.subr.mxu0 0.0
        %2705 = vmatpush1.msra.mxu0 0.0
        %2706 = vmatprep.subr.mxu0 0.0
        %2707 = vmatpush1.msra.mxu0 0.0
        %2708 = vmatprep.subr.mxu0 0.0
        %2709 = vmatpush1.msra.mxu0 0.0
        %2710 = vmatprep.subr.mxu0 0.0
        %2711 = vmatpush1.msra.mxu0 0.0
        %2712 = vmatprep.subr.mxu0 0.0
        %2713 = vmatpush1.msra.mxu0 0.0
        %2714 = vmatprep.subr.mxu0 0.0
        %2715 = vmatpush1.msra.mxu0 0.0
        %2716 = vmatprep.subr.mxu0 0.0
        %2717 = vmatpush1.msra.mxu0 0.0
        %2718 = vmatprep.subr.mxu0 0.0
        %2719 = vmatpush1.msra.mxu0 0.0
        %2720 = vmatprep.subr.mxu0 0.0
        %2721 = vmatpush1.msra.mxu0 0.0
        %2722 = vmatprep.subr.mxu0 0.0
        %2723 = vmatpush1.msra.mxu0 0.0
        %2724 = vmatprep.subr.mxu0 0.0
        %2725 = vmatpush1.msra.mxu0 0.0
        %2726 = vmatprep.subr.mxu0 0.0
        %2727 = vmatpush1.msra.mxu0 0.0
        %2728 = vmatprep.subr.mxu0 0.0
        %2729 = vmatpush1.msra.mxu0 0.0
        %2730 = vmatprep.subr.mxu0 0.0
        %2731 = vmatpush1.msra.mxu0 0.0
        %2732 = vmatprep.subr.mxu0 0.0
        %2733 = vmatpush1.msra.mxu0 0.0
        %2734 = vmatprep.subr.mxu0 0.0
        %2735 = vmatpush1.msra.mxu0 0.0
        %2736 = vmatprep.subr.mxu0 0.0
        %2737 = vmatpush1.msra.mxu0 0.0
        %2738 = vmatprep.subr.mxu0 0.0
        %2739 = vmatpush1.msra.mxu0 0.0
        %2740 = vmatprep.subr.mxu0 0.0
        %2741 = vmatpush1.msra.mxu0 0.0
        %2742 = vmatprep.subr.mxu0 0.0
        %2743 = vmatpush1.msra.mxu0 0.0
        %2744 = vmatprep.subr.mxu0 0.0
        %2745 = vmatpush1.msra.mxu0 0.0
        %2746 = vmatprep.subr.mxu0 0.0
        %2747 = vmatpush1.msra.mxu0 0.0
        %2748 = vmatprep.mubr.f32.mxu0 0.0
        %2749 = vmatmul.mubr.f32.gmra.mrb[0].mxu0 %v2673
        %v2750 = vpop.f32.mrb[0].mxu0
        %v2751 = vadd.f32 0.0, %v2750
        %v2752 = vpop.f32.mrb[0].mxu0
        %v2753 = vadd.f32 0.0, %v2752
        %2754 = vmatprep.mubr.f32.mxu0 0.0
        %2755 = vmatmul.mubr.f32.gmra.mrb[0].mxu0 %v2676
        %v2756 = vpop.f32.mrb[0].mxu0
        %v2757 = vadd.f32 0.0, %v2756
        %v2758 = vpop.f32.mrb[0].mxu0
        %v2759 = vadd.f32 0.0, %v2758
        %2760 = vmatprep.mubr.f32.mxu0 0.0
        %2761 = vmatmul.mubr.f32.gmra.mrb[0].mxu0 %v2679
        %v2762 = vpop.f32.mrb[0].mxu0
        %v2763 = vadd.f32 0.0, %v2762
        %v2764 = vpop.f32.mrb[0].mxu0
        %v2765 = vadd.f32 0.0, %v2764
        %2766 = vmatprep.mubr.f32.mxu0 0.0
        %2767 = vmatmul.mubr.f32.gmra.mrb[0].mxu0 %v2682
        %v2768 = vpop.f32.mrb[0].mxu0
        %v2769 = vadd.f32 0.0, %v2768
        %v2770 = vpop.f32.mrb[0].mxu0
        %v2771 = vadd.f32 0.0, %v2770
        %2772 = vdwg.mxu0
        %v2773 = vadd.f32 %v2628, %v2751
        %v2774 = vadd.f32 %v2629, %v2753
        %v2775 = vadd.f32 %v2630, %v2757
        %v2776 = vadd.f32 %v2631, %v2759
        %v2777 = vadd.f32 %v2632, %v2763
        %v2778 = vadd.f32 %v2633, %v2765
        %v2779 = vadd.f32 %v2634, %v2769
        %v2780 = vadd.f32 %v2635, %v2771
        %v2781 = vld [vmem:[%s4] sm:$0xff]
        %v2782 = vld [vmem:[%s4 + $0x8] sm:$0xff]
        %v2783 = vld [vmem:[%s4 + $0x10] sm:$0xff]
        %v2784 = vld [vmem:[%s4 + $0x18] sm:$0xff]
        %2786 = vset.pattern.permute.xlu0 0
        %2787 = vperm.xlu0 %2786, %v2781
        %v2788 = vpop.permute.xlu0 %2787
        %2791 = vset.pattern.permute.xlu0 0
        %2792 = vperm.xlu0 %2791, %v2782
        %v2793 = vpop.permute.xlu0 %2792
        %2796 = vset.pattern.permute.xlu0 0
        %2797 = vperm.xlu0 %2796, %v2783
        %v2798 = vpop.permute.xlu0 %2797
        %2801 = vset.pattern.permute.xlu0 0
        %2802 = vperm.xlu0 %2801, %v2784
        %v2803 = vpop.permute.xlu0 %2802
        %v2805 = vadd.f32 %v2773, %v2788
        %v2806 = vadd.f32 %v2774, %v2788
        %v2807 = vadd.f32 %v2775, %v2793
        %v2808 = vadd.f32 %v2776, %v2793
        %v2809 = vadd.f32 %v2777, %v2798
        %v2810 = vadd.f32 %v2778, %v2798
        %v2811 = vadd.f32 %v2779, %v2803
        %v2812 = vadd.f32 %v2780, %v2803
        %v2813 = vld [vmem:[%s5] sm:$0xff]
        %v2814 = vld [vmem:[%s5 + $0x8] sm:$0xff]
        %v2815 = vld [vmem:[%s5 + $0x10] sm:$0xff]
        %v2816 = vld [vmem:[%s5 + $0x18] sm:$0xff]
        %v2817 = vmul.f32 %v2805, %v2805
        %v2818 = vmul.f32 %v2806, %v2806
        %v2819 = vmul.f32 %v2807, %v2807
        %v2820 = vmul.f32 %v2808, %v2808
        %v2821 = vmul.f32 %v2809, %v2809
        %v2822 = vmul.f32 %v2810, %v2810
        %v2823 = vmul.f32 %v2811, %v2811
        %v2824 = vmul.f32 %v2812, %v2812
        %v2826 = vsel %vm1587, %v2813, 0
        %v2829 = vsel %vm1587, %v2814, 0
        %v2832 = vsel %vm1587, %v2815, 0
        %v2835 = vsel %vm1587, %v2816, 0
        %2837 = vmatprep.subr.mxu0 %v2818
        %2838 = vmatpush1.msra.mxu0 %v2817
        %2839 = vmatprep.subr.mxu0 %v2820
        %2840 = vmatpush1.msra.mxu0 %v2819
        %2841 = vmatprep.subr.mxu0 %v2822
        %2842 = vmatpush1.msra.mxu0 %v2821
        %2843 = vmatprep.subr.mxu0 %v2824
        %2844 = vmatpush1.msra.mxu0 %v2823
        %2845 = vmatprep.subr.mxu0 0.0
        %2846 = vmatpush1.msra.mxu0 0.0
        %2847 = vmatprep.subr.mxu0 0.0
        %2848 = vmatpush1.msra.mxu0 0.0
        %2849 = vmatprep.subr.mxu0 0.0
        %2850 = vmatpush1.msra.mxu0 0.0
        %2851 = vmatprep.subr.mxu0 0.0
        %2852 = vmatpush1.msra.mxu0 0.0
        %2853 = vmatprep.subr.mxu0 0.0
        %2854 = vmatpush1.msra.mxu0 0.0
        %2855 = vmatprep.subr.mxu0 0.0
        %2856 = vmatpush1.msra.mxu0 0.0
        %2857 = vmatprep.subr.mxu0 0.0
        %2858 = vmatpush1.msra.mxu0 0.0
        %2859 = vmatprep.subr.mxu0 0.0
        %2860 = vmatpush1.msra.mxu0 0.0
        %2861 = vmatprep.subr.mxu0 0.0
        %2862 = vmatpush1.msra.mxu0 0.0
        %2863 = vmatprep.subr.mxu0 0.0
        %2864 = vmatpush1.msra.mxu0 0.0
        %2865 = vmatprep.subr.mxu0 0.0
        %2866 = vmatpush1.msra.mxu0 0.0
        %2867 = vmatprep.subr.mxu0 0.0
        %2868 = vmatpush1.msra.mxu0 0.0
        %2869 = vmatprep.subr.mxu0 0.0
        %2870 = vmatpush1.msra.mxu0 0.0
        %2871 = vmatprep.subr.mxu0 0.0
        %2872 = vmatpush1.msra.mxu0 0.0
        %2873 = vmatprep.subr.mxu0 0.0
        %2874 = vmatpush1.msra.mxu0 0.0
        %2875 = vmatprep.subr.mxu0 0.0
        %2876 = vmatpush1.msra.mxu0 0.0
        %2877 = vmatprep.subr.mxu0 0.0
        %2878 = vmatpush1.msra.mxu0 0.0
        %2879 = vmatprep.subr.mxu0 0.0
        %2880 = vmatpush1.msra.mxu0 0.0
        %2881 = vmatprep.subr.mxu0 0.0
        %2882 = vmatpush1.msra.mxu0 0.0
        %2883 = vmatprep.subr.mxu0 0.0
        %2884 = vmatpush1.msra.mxu0 0.0
        %2885 = vmatprep.subr.mxu0 0.0
        %2886 = vmatpush1.msra.mxu0 0.0
        %2887 = vmatprep.subr.mxu0 0.0
        %2888 = vmatpush1.msra.mxu0 0.0
        %2889 = vmatprep.subr.mxu0 0.0
        %2890 = vmatpush1.msra.mxu0 0.0
        %2891 = vmatprep.subr.mxu0 0.0
        %2892 = vmatpush1.msra.mxu0 0.0
        %2893 = vmatprep.subr.mxu0 0.0
        %2894 = vmatpush1.msra.mxu0 0.0
        %2895 = vmatprep.subr.mxu0 0.0
        %2896 = vmatpush1.msra.mxu0 0.0
        %2897 = vmatprep.subr.mxu0 0.0
        %2898 = vmatpush1.msra.mxu0 0.0
        %2899 = vmatprep.subr.mxu0 0.0
        %2900 = vmatpush1.msra.mxu0 0.0
        %2901 = vmatprep.mubr.f32.mxu0 0.0
        %2902 = vmatmul.mubr.f32.gmra.mrb[0].mxu0 %v2826
        %v2903 = vpop.f32.mrb[0].mxu0
        %v2904 = vadd.f32 0.0, %v2903
        %v2905 = vpop.f32.mrb[0].mxu0
        %v2906 = vadd.f32 0.0, %v2905
        %2907 = vmatprep.mubr.f32.mxu0 0.0
        %2908 = vmatmul.mubr.f32.gmra.mrb[0].mxu0 %v2829
        %v2909 = vpop.f32.mrb[0].mxu0
        %v2910 = vadd.f32 0.0, %v2909
        %v2911 = vpop.f32.mrb[0].mxu0
        %v2912 = vadd.f32 0.0, %v2911
        %2913 = vmatprep.mubr.f32.mxu0 0.0
        %2914 = vmatmul.mubr.f32.gmra.mrb[0].mxu0 %v2832
        %v2915 = vpop.f32.mrb[0].mxu0
        %v2916 = vadd.f32 0.0, %v2915
        %v2917 = vpop.f32.mrb[0].mxu0
        %v2918 = vadd.f32 0.0, %v2917
        %2919 = vmatprep.mubr.f32.mxu0 0.0
        %2920 = vmatmul.mubr.f32.gmra.mrb[0].mxu0 %v2835
        %v2921 = vpop.f32.mrb[0].mxu0
        %v2922 = vadd.f32 0.0, %v2921
        %v2923 = vpop.f32.mrb[0].mxu0
        %v2924 = vadd.f32 0.0, %v2923
        %2925 = vdwg.mxu0
        %v2926 = vmul.f32 %v2904, 2e-05
        %v2927 = vmul.f32 %v2906, 2e-05
        %v2928 = vmul.f32 %v2910, 2e-05
        %v2929 = vmul.f32 %v2912, 2e-05
        %v2930 = vmul.f32 %v2916, 2e-05
        %v2931 = vmul.f32 %v2918, 2e-05
        %v2932 = vmul.f32 %v2922, 2e-05
        %v2933 = vmul.f32 %v2924, 2e-05
        %v2934 = vadd.f32 %v2926, 1.0
        %v2935 = vadd.f32 %v2927, 1.0
        %v2936 = vadd.f32 %v2928, 1.0
        %v2937 = vadd.f32 %v2929, 1.0
        %v2938 = vadd.f32 %v2930, 1.0
        %v2939 = vadd.f32 %v2931, 1.0
        %v2940 = vadd.f32 %v2932, 1.0
        %v2941 = vadd.f32 %v2933, 1.0
        %v2942 = vrsqrt.pop %v2934
        %v2943 = vrsqrt.pop %v2935
        %v2944 = vrsqrt.pop %v2936
        %v2945 = vrsqrt.pop %v2937
        %v2946 = vrsqrt.pop %v2938
        %v2947 = vrsqrt.pop %v2939
        %v2948 = vrsqrt.pop %v2940
        %v2949 = vrsqrt.pop %v2941
        %v2950 = vrsqrt.pop %v2942
        %v2951 = vmul.f32 %v2942, %v2950
        %vm2952 = vcmp.eq.f32.partialorder %v2942, inf
        %v2953 = vsel %vm2952, %v2942, %v2951
        %vm2954 = vcmp.eq.f32.partialorder %v2942, 0.0
        %v2955 = vand.u32 %v2942, 2147483648
        %v2956 = vsel %vm2954, %v2955, %v2953
        %v2957 = vrsqrt.pop %v2943
        %v2958 = vmul.f32 %v2943, %v2957
        %vm2959 = vcmp.eq.f32.partialorder %v2943, inf
        %v2960 = vsel %vm2959, %v2943, %v2958
        %vm2961 = vcmp.eq.f32.partialorder %v2943, 0.0
        %v2962 = vand.u32 %v2943, 2147483648
        %v2963 = vsel %vm2961, %v2962, %v2960
        %v2964 = vrsqrt.pop %v2944
        %v2965 = vmul.f32 %v2944, %v2964
        %vm2966 = vcmp.eq.f32.partialorder %v2944, inf
        %v2967 = vsel %vm2966, %v2944, %v2965
        %vm2968 = vcmp.eq.f32.partialorder %v2944, 0.0
        %v2969 = vand.u32 %v2944, 2147483648
        %v2970 = vsel %vm2968, %v2969, %v2967
        %v2971 = vrsqrt.pop %v2945
        %v2972 = vmul.f32 %v2945, %v2971
        %vm2973 = vcmp.eq.f32.partialorder %v2945, inf
        %v2974 = vsel %vm2973, %v2945, %v2972
        %vm2975 = vcmp.eq.f32.partialorder %v2945, 0.0
        %v2976 = vand.u32 %v2945, 2147483648
        %v2977 = vsel %vm2975, %v2976, %v2974
        %v2978 = vrsqrt.pop %v2946
        %v2979 = vmul.f32 %v2946, %v2978
        %vm2980 = vcmp.eq.f32.partialorder %v2946, inf
        %v2981 = vsel %vm2980, %v2946, %v2979
        %vm2982 = vcmp.eq.f32.partialorder %v2946, 0.0
        %v2983 = vand.u32 %v2946, 2147483648
        %v2984 = vsel %vm2982, %v2983, %v2981
        %v2985 = vrsqrt.pop %v2947
        %v2986 = vmul.f32 %v2947, %v2985
        %vm2987 = vcmp.eq.f32.partialorder %v2947, inf
        %v2988 = vsel %vm2987, %v2947, %v2986
        %vm2989 = vcmp.eq.f32.partialorder %v2947, 0.0
        %v2990 = vand.u32 %v2947, 2147483648
        %v2991 = vsel %vm2989, %v2990, %v2988
        %v2992 = vrsqrt.pop %v2948
        %v2993 = vmul.f32 %v2948, %v2992
        %vm2994 = vcmp.eq.f32.partialorder %v2948, inf
        %v2995 = vsel %vm2994, %v2948, %v2993
        %vm2996 = vcmp.eq.f32.partialorder %v2948, 0.0
        %v2997 = vand.u32 %v2948, 2147483648
        %v2998 = vsel %vm2996, %v2997, %v2995
        %v2999 = vrsqrt.pop %v2949
        %v3000 = vmul.f32 %v2949, %v2999
        %vm3001 = vcmp.eq.f32.partialorder %v2949, inf
        %v3002 = vsel %vm3001, %v2949, %v3000
        %vm3003 = vcmp.eq.f32.partialorder %v2949, 0.0
        %v3004 = vand.u32 %v2949, 2147483648
        %v3005 = vsel %vm3003, %v3004, %v3002
        %v3006 = vmul.f32 %v2942, %v2956
        %v3007 = vmul.f32 %v2943, %v2963
        %v3008 = vmul.f32 %v2944, %v2970
        %v3009 = vmul.f32 %v2945, %v2977
        %v3010 = vmul.f32 %v2946, %v2984
        %v3011 = vmul.f32 %v2947, %v2991
        %v3012 = vmul.f32 %v2948, %v2998
        %v3013 = vmul.f32 %v2949, %v3005
        %v3014 = vmul.f32 %v2805, %v3006
        %v3015 = vmul.f32 %v2806, %v3007
        %v3016 = vmul.f32 %v2807, %v3008
        %v3017 = vmul.f32 %v2808, %v3009
        %v3018 = vmul.f32 %v2809, %v3010
        %v3019 = vmul.f32 %v2810, %v3011
        %v3020 = vmul.f32 %v2811, %v3012
        %v3021 = vmul.f32 %v2812, %v3013
        %3022 = vst [vmem:[%s272] sm:$0xff] %v3014
        %3023 = vst [vmem:[%s272 + $0x8] sm:$0xff] %v3015
        %3024 = vst [vmem:[%s272 + $0x10] sm:$0xff] %v3016
        %3025 = vst [vmem:[%s272 + $0x18] sm:$0xff] %v3017
        %3026 = vst [vmem:[%s272 + $0x20] sm:$0xff] %v3018
        %3027 = vst [vmem:[%s272 + $0x28] sm:$0xff] %v3019
        %3028 = vst [vmem:[%s272 + $0x30] sm:$0xff] %v3020
        %3029 = vst [vmem:[%s272 + $0x38] sm:$0xff] %v3021
        %s3030 = sand.u32 %s181, 1
        %s3031 = scalar_lea.sflag [#allocation3], %s3030
        %s3032 = sand.u32 %s181, 1
        %s3033 = smul.addr %s3032, 64
        %s3034 = scalar_lea.vmem [#allocation2], %s3033
        // Predicated region
        $region49: #{tpu_custom_call.1} parent=47 // pred_check
          %p3035 = pneg %p191
        $region50: #{tpu_custom_call.1} parent=47 // pred_check_branch
          %3037 = sbr.rel (%p3035) target = $region52
        $region51: #{tpu_custom_call.1} parent=47 // pred_region
          %s3039 = ssub.s32 1024, 1024
          %3040 = vsyncadd %s3031, %s3039
          %s3041 = smul.addr %s21, 8
          %s3042 = smul.addr %s3041, 128
          %s3043 = scalar_lea.hbm %s7, %s3042
          %s3044 = sshll.u32 %s3034, 4
          %s3045 = int_to_ptr.vmem [resolvable:$true] %s3044
          %3050 = dma.vmem_to_hbm [thread:$0]  %s3045, 1024, %s3043, %s3031, 256, 256, 16
        $region52: #{tpu_custom_call.1} parent=47 // pred_fallthru
          _
      $region48: #{tpu_custom_call.1} parent=5 // pred_fallthru
        _
      %p3051 = scmp.le.s32.totalorder 2, %s16
      // Predicated region
      $region53: #{tpu_custom_call.1} parent=5 // pred_check
        %p3052 = pneg %p3051
      $region54: #{tpu_custom_call.1} parent=5 // pred_check_branch
        %3054 = sbr.rel (%p3052) target = $region56
      $region55: #{tpu_custom_call.1} parent=5 // pred_region
        %s3055 = ssub.s32 %s16, 2
        // Predicated region
        $region57: #{tpu_custom_call.1} parent=55 // pred_check
          %p3056 = pneg %p197
        $region58: #{tpu_custom_call.1} parent=55 // pred_check_branch
          %3058 = sbr.rel (%p3056) target = $region60
        $region59: #{tpu_custom_call.1} parent=55 // pred_region
          %s3059 = sand.u32 %s182, 1
          %s3060 = scalar_lea.sflag [#allocation3], %s3059
          %s3061 = sand.u32 %s182, 1
          %s3062 = smul.addr %s3061, 64
          %s3063 = scalar_lea.vmem [#allocation2], %s3062
          %3064 = dma.done %s3060, 1024
        $region60: #{tpu_custom_call.1} parent=55 // pred_fallthru
          _
      $region56: #{tpu_custom_call.1} parent=5 // pred_fallthru
        _
    $region6: #{tpu_custom_call.1} parent=1 // loop_footer
      %s20 = sadd.s32 1, %s16
    $region7: #{tpu_custom_call.1} parent=1 // loop_footer_branch
      %15 = sbr.rel target = $region3
    $region8: #{tpu_custom_call.1} parent=1 // loop_exit
      _
    %3065 = vsyncpa [#allocation3], 1
    %s3066 = scalar_lea.sflag [#allocation3], 1
    %3067 = vsyncpa %s3066, 1

</llo_original>
